<compile_context>
chip_gen: v6e
topology: v6e:2x2x1
jax: 0.10.0
libtpu: 0.0.40
codegen_flags: <defaults>
</compile_context>

<pallas_src>
import functools
import math

import jax
import jax.numpy as jnp
from jax.experimental import pallas as pl
from jax.experimental.pallas import tpu as pltpu


def _layer_norm(v, w, b, eps=1e-5):
    """fp32 LayerNorm (matches the fp16-safe LayerNorm subclass)."""
    mu = jnp.mean(v, axis=-1, keepdims=True)
    var = jnp.mean(jnp.square(v - mu), axis=-1, keepdims=True)
    return (v - mu) * jax.lax.rsqrt(var + eps) * w + b


def transformer_kernel(
    x_ref,
    ln1w_ref, ln1b_ref, wqkv_t_ref, bqkv_ref, wo_t_ref, bo_ref,
    ln2w_ref, ln2b_ref, wfc_t_ref, bfc_ref, wproj_t_ref, bproj_ref,
    out_x_ref, out_score_ref,
    x_acc_ref,
    *, n_head):
    """One layer grid step over the whole batch.

    grid = (layers,).  The f32 residual-stream accumulator `x_acc_ref` (N, L, E)
    is carried across layers entirely in VMEM, while per-layer bf16 weights are
    streamed (next layer prefetched) by BlockSpec pipelining.
    """
    layer = pl.program_id(0)
    n_layers = pl.num_programs(0)

    @pl.when(layer == 0)
    def _():
        x_acc_ref[...] = x_ref[...].astype(jnp.float32)

    x = x_acc_ref[...]                                   # (N, L, E) f32 residual stream
    N, L, E = x.shape
    H = n_head
    hd = E // H
    NL = N * L

    # ---- attention branch: LN -> fused QKV -> batched-head MHA -> out-proj ----
    xn = _layer_norm(x, ln1w_ref[...], ln1b_ref[...])
    qkv = jnp.dot(xn.reshape(NL, E).astype(jnp.bfloat16), wqkv_t_ref[...],
                  preferred_element_type=jnp.float32) + bqkv_ref[...]       # (NL, 3E) f32
    # (NL, 3E) -> (3H, NL, hd): all heads of all batch elements in one relayout.
    qkv_h = pltpu.einshape("lgd->gld", qkv.reshape(NL, 3 * H, hd))
    # Leading-axis reshape (H, N*L, hd) -> (H*N, L, hd) is contiguous (no data movement).
    q = qkv_h[0 * H:1 * H].reshape(H * N, L, hd).astype(jnp.bfloat16)  # scale folded in W_q/b_q
    k = qkv_h[1 * H:2 * H].reshape(H * N, L, hd).astype(jnp.bfloat16)
    v = qkv_h[2 * H:3 * H].reshape(H * N, L, hd).astype(jnp.bfloat16)

    s = jnp.einsum('bqd,bkd->bqk', q, k,
                   preferred_element_type=jnp.float32)                 # (H*N, L, L) f32
    s = s - jnp.max(s, axis=-1, keepdims=True)
    e = jnp.exp(s)
    p = e * pl.reciprocal(jnp.sum(e, axis=-1, keepdims=True), approx=True)

    # need_weights=True, average_attn_weights=True -> mean over heads.
    out_score_ref[...] = (jnp.sum(p.reshape(H, N, L, L), axis=0)
                          * (1.0 / H)).astype(out_score_ref.dtype)

    o = jnp.einsum('bqk,bkd->bqd', p.astype(jnp.bfloat16), v,
                   preferred_element_type=jnp.float32)                 # (H*N, L, hd) f32
    o = pltpu.einshape("hqd->qhd", o.reshape(H, NL, hd)).reshape(NL, E)  # heads back to lanes
    attn = jnp.dot(o.astype(jnp.bfloat16), wo_t_ref[...],
                   preferred_element_type=jnp.float32) + bo_ref[...]
    x = x + attn.reshape(N, L, E)                                      # residual 1

    # ---- MLP branch: LN -> c_fc -> QuickGELU -> c_proj ----
    xn = _layer_norm(x, ln2w_ref[...], ln2b_ref[...])
    h1 = jnp.dot(xn.reshape(NL, E).astype(jnp.bfloat16), wfc_t_ref[...],
                 preferred_element_type=jnp.float32) + bfc_ref[...]    # (NL, 4E) f32
    h1 = h1 * jax.nn.sigmoid(1.702 * h1)                               # QuickGELU in f32
    h2 = jnp.dot(h1.astype(jnp.bfloat16), wproj_t_ref[...],
                 preferred_element_type=jnp.float32) + bproj_ref[...]
    x = x + h2.reshape(N, L, E)                                        # residual 2

    x_acc_ref[...] = x

    @pl.when(layer == n_layers - 1)
    def _():
        out_x_ref[...] = x.astype(out_x_ref.dtype)


def transformer_forward(x_lne, params, n_head):
    """x_lne: (L, N, E), sequence-first like PyTorch.

    Returns (x_out (L, N, E), [attention_score (N, L, L)] * layers).
    """
    L, N, E = x_lne.shape
    layers = params['wqkv_t'].shape[0]
    x = jnp.transpose(x_lne, (1, 0, 2))            # (N, L, E): batch-first inside the kernel

    kernel = functools.partial(transformer_kernel, n_head=n_head)

    def wspec(shape):  # per-layer weight block, indexed by the layer grid axis
        return pl.BlockSpec((None,) + shape, lambda l: (l,) + (0,) * len(shape))

    in_specs = [
        pl.BlockSpec((N, L, E), lambda l: (0, 0, 0)),   # x: fetched once, resident
        wspec((1, E)), wspec((1, E)),                   # ln_1 weight / bias
        wspec((E, 3 * E)), wspec((1, 3 * E)),           # in_proj (QKV)
        wspec((E, E)), wspec((1, E)),                   # out_proj
        wspec((1, E)), wspec((1, E)),                   # ln_2 weight / bias
        wspec((E, 4 * E)), wspec((1, 4 * E)),           # mlp.c_fc
        wspec((4 * E, E)), wspec((1, E)),               # mlp.c_proj
    ]
    out_specs = (
        pl.BlockSpec((N, L, E), lambda l: (0, 0, 0)),           # final activations
        pl.BlockSpec((None, N, L, L), lambda l: (l, 0, 0, 0)),  # per-layer scores
    )
    out_shape = (
        jax.ShapeDtypeStruct((N, L, E), x.dtype),
        jax.ShapeDtypeStruct((layers, N, L, L), x.dtype),
    )

    out_x, scores = pl.pallas_call(
        kernel,
        grid=(layers,),
        in_specs=in_specs,
        out_specs=out_specs,
        out_shape=out_shape,
        scratch_shapes=[pltpu.VMEM((N, L, E), jnp.float32)],    # residual-stream accumulator
        compiler_params=pltpu.CompilerParams(
            dimension_semantics=("arbitrary",),
            vmem_limit_bytes=60 * 1024 * 1024,
        ),
    )(x,
      params['ln1_w'], params['ln1_b'],
      params['wqkv_t'], params['bqkv'],
      params['wo_t'], params['bo'],
      params['ln2_w'], params['ln2_b'],
      params['wfc_t'], params['bfc'],
      params['wproj_t'], params['bproj'])

    return jnp.transpose(out_x, (1, 0, 2)), [scores[i] for i in range(layers)]


def init_transformer_params(key, width, layers):
    """Deterministic synthetic per-layer parameters in PyTorch layout."""
    E = width
    params = []
    for i in range(layers):
        keys = jax.random.split(jax.random.fold_in(key, i), 4)
        params.append(dict(
            ln1_w=jnp.ones((E,), jnp.float32), ln1_b=jnp.zeros((E,), jnp.float32),
            in_proj_w=0.02 * jax.random.normal(keys[0], (3 * E, E), jnp.float32),
            in_proj_b=jnp.zeros((3 * E,), jnp.float32),
            out_proj_w=0.02 * jax.random.normal(keys[1], (E, E), jnp.float32),
            out_proj_b=jnp.zeros((E,), jnp.float32),
            ln2_w=jnp.ones((E,), jnp.float32), ln2_b=jnp.zeros((E,), jnp.float32),
            c_fc_w=0.02 * jax.random.normal(keys[2], (4 * E, E), jnp.float32),
            c_fc_b=jnp.zeros((4 * E,), jnp.float32),
            c_proj_w=0.02 * jax.random.normal(keys[3], (E, 4 * E), jnp.float32),
            c_proj_b=jnp.zeros((E,), jnp.float32),
        ))
    return params


def prepare_params(raw, n_head):
    """One-time layout prep (done once, not per forward call): stack layers,
    pre-transpose weights for `x @ W_t`, fold the 1/sqrt(head_dim) query scale into
    W_q / b_q, cast matmul weights to bf16 (LN params / biases stay f32)."""
    E = raw[0]['in_proj_w'].shape[1]
    hd = E // n_head
    scale = 1.0 / math.sqrt(hd)

    def stack(fn):
        return jnp.stack([fn(p) for p in raw], axis=0)

    def scaled_qkv_w(p):
        w = p['in_proj_w']
        return jnp.concatenate([w[:E] * scale, w[E:]], axis=0)

    def scaled_qkv_b(p):
        b = p['in_proj_b']
        return jnp.concatenate([b[:E] * scale, b[E:]], axis=0)

    return dict(
        ln1_w=stack(lambda p: p['ln1_w'].reshape(1, E)),
        ln1_b=stack(lambda p: p['ln1_b'].reshape(1, E)),
        wqkv_t=stack(lambda p: scaled_qkv_w(p).T.astype(jnp.bfloat16)),
        bqkv=stack(lambda p: scaled_qkv_b(p).reshape(1, 3 * E)),
        wo_t=stack(lambda p: p['out_proj_w'].T.astype(jnp.bfloat16)),
        bo=stack(lambda p: p['out_proj_b'].reshape(1, E)),
        ln2_w=stack(lambda p: p['ln2_w'].reshape(1, E)),
        ln2_b=stack(lambda p: p['ln2_b'].reshape(1, E)),
        wfc_t=stack(lambda p: p['c_fc_w'].T.astype(jnp.bfloat16)),
        bfc=stack(lambda p: p['c_fc_b'].reshape(1, 4 * E)),
        wproj_t=stack(lambda p: p['c_proj_w'].T.astype(jnp.bfloat16)),
        bproj=stack(lambda p: p['c_proj_b'].reshape(1, E)),
    )


# ---------------- pure-JAX reference (mirrors the PyTorch module) ----------------
def _layer_norm_ref(x, w, b, eps=1e-5):
    mu = jnp.mean(x, axis=-1, keepdims=True)
    var = jnp.mean(jnp.square(x - mu), axis=-1, keepdims=True)
    return (x - mu) / jnp.sqrt(var + eps) * w + b


def transformer_reference(x_lne, raw, n_head):
    L, N, E = x_lne.shape
    hd = E // n_head
    x = x_lne
    scores = []
    for p in raw:
        xn = _layer_norm_ref(x, p['ln1_w'], p['ln1_b'])
        qkv = xn @ p['in_proj_w'].T + p['in_proj_b']            # (L, N, 3E)
        q, k, v = jnp.split(qkv, 3, axis=-1)
        q = q / math.sqrt(hd)

        def heads(t):
            return t.reshape(L, N * n_head, hd).transpose(1, 0, 2)   # (N*H, L, hd)

        qh, kh, vh = heads(q), heads(k), heads(v)
        s = jnp.einsum('bqd,bkd->bqk', qh, kh)
        w = jax.nn.softmax(s, axis=-1)
        o = jnp.einsum('bqk,bkd->bqd', w, vh)                   # (N*H, L, hd)
        o = o.transpose(1, 0, 2).reshape(L, N, E)
        x = x + (o @ p['out_proj_w'].T + p['out_proj_b'])
        xn2 = _layer_norm_ref(x, p['ln2_w'], p['ln2_b'])
        h = xn2 @ p['c_fc_w'].T + p['c_fc_b']
        h = h * jax.nn.sigmoid(1.702 * h)
        x = x + (h @ p['c_proj_w'].T + p['c_proj_b'])
        scores.append(w.reshape(N, n_head, L, L).mean(axis=1))
    return x, scores


if __name__ == "__main__":
    # Small shapes consistent with the module: seq=8, batch=2, width=32, heads=4, layers=2
    L, N, width, heads, layers = 8, 2, 32, 4, 2
    key = jax.random.PRNGKey(0)
    kx, kp = jax.random.split(key)
    x = jax.random.normal(kx, (L, N, width), jnp.float32)
    raw = init_transformer_params(kp, width, layers)
    params = prepare_params(raw, heads)

    out, scores = transformer_forward(x, params, heads)
    out = jax.block_until_ready(out)
    scores = [jax.block_until_ready(s) for s in scores]

    assert out.shape == (L, N, width)
    assert all(s.shape == (N, L, L) for s in scores)
    assert bool(jnp.isfinite(out).all())
    assert all(bool(jnp.isfinite(s).all()) for s in scores)
    # attention-weight rows should sum to ~1 (bf16 matmuls + approx reciprocal)
    assert bool(jnp.allclose(jnp.sum(scores[0], axis=-1), 1.0, atol=1e-2))

    # correctness vs pure-JAX f32 reference (loose tolerance: bf16 matmuls in kernel)
    out_ref, scores_ref = transformer_reference(x, raw, heads)
    assert bool(jnp.allclose(out, out_ref, atol=3e-2, rtol=3e-2))
    assert all(bool(jnp.allclose(s, sr, atol=1e-2, rtol=3e-2))
               for s, sr in zip(scores, scores_ref))

    print("KERNEL_OK")
</pallas_src>

<mosaic_0001>
module attributes {stable_mosaic.version = 11 : i64} {
  func.func @transformer_kernel(%arg0: i32, %arg1: memref<2x8x32xf32, #tpu.memory_space<vmem>>, %arg2: memref<1x1x32xf32, #tpu.memory_space<vmem>>, %arg3: memref<1x1x32xf32, #tpu.memory_space<vmem>>, %arg4: memref<1x32x96xbf16, #tpu.memory_space<vmem>>, %arg5: memref<1x1x96xf32, #tpu.memory_space<vmem>>, %arg6: memref<1x32x32xbf16, #tpu.memory_space<vmem>>, %arg7: memref<1x1x32xf32, #tpu.memory_space<vmem>>, %arg8: memref<1x1x32xf32, #tpu.memory_space<vmem>>, %arg9: memref<1x1x32xf32, #tpu.memory_space<vmem>>, %arg10: memref<1x32x128xbf16, #tpu.memory_space<vmem>>, %arg11: memref<1x1x128xf32, #tpu.memory_space<vmem>>, %arg12: memref<1x128x32xbf16, #tpu.memory_space<vmem>>, %arg13: memref<1x1x32xf32, #tpu.memory_space<vmem>>, %arg14: memref<2x8x32xf32, #tpu.memory_space<vmem>>, %arg15: memref<1x2x8x8xf32, #tpu.memory_space<vmem>>, %arg16: memref<2x8x32xf32, #tpu.memory_space<vmem>>) attributes {dimension_semantics = [#tpu.dimension_semantics<arbitrary>], iteration_bounds = array<i64: 2>, scalar_prefetch = 0 : i64, scratch_operands = 1 : i64, tpu.core_type = #tpu.core_type<tc>, window_params = [{pipeline_mode = #tpu.pipeline_mode<synchronous>, transform_indices = @transform_0, window_bounds = array<i64: 2, 8, 32>}, {transform_indices = @transform_1, window_bounds = array<i64: 1, 1, 32>}, {transform_indices = @transform_2, window_bounds = array<i64: 1, 1, 32>}, {transform_indices = @transform_3, window_bounds = array<i64: 1, 32, 96>}, {transform_indices = @transform_4, window_bounds = array<i64: 1, 1, 96>}, {transform_indices = @transform_5, window_bounds = array<i64: 1, 32, 32>}, {transform_indices = @transform_6, window_bounds = array<i64: 1, 1, 32>}, {transform_indices = @transform_7, window_bounds = array<i64: 1, 1, 32>}, {transform_indices = @transform_8, window_bounds = array<i64: 1, 1, 32>}, {transform_indices = @transform_9, window_bounds = array<i64: 1, 32, 128>}, {transform_indices = @transform_10, window_bounds = array<i64: 1, 1, 128>}, {transform_indices = @transform_11, window_bounds = array<i64: 1, 128, 32>}, {transform_indices = @transform_12, window_bounds = array<i64: 1, 1, 32>}, {pipeline_mode = #tpu.pipeline_mode<synchronous>, transform_indices = @transform_13, window_bounds = array<i64: 2, 8, 32>}, {transform_indices = @transform_14, window_bounds = array<i64: 1, 2, 8, 8>}]} {
    %c0_i32 = arith.constant 0 : i32
    %0 = arith.cmpi eq, %arg0, %c0_i32 : i32
    %1 = arith.extui %0 : i1 to i32
    %c0_i32_0 = arith.constant 0 : i32
    %2 = arith.cmpi ne, %1, %c0_i32_0 : i32
    scf.if %2 {
      %c0_68 = arith.constant 0 : index
      %c0_69 = arith.constant 0 : index
      %c0_70 = arith.constant 0 : index
      %144 = vector.load %arg1[%c0_68, %c0_69, %c0_70] : memref<2x8x32xf32, #tpu.memory_space<vmem>>, vector<2x8x32xf32>
      %c0_71 = arith.constant 0 : index
      %c0_72 = arith.constant 0 : index
      %c0_73 = arith.constant 0 : index
      %145 = vector.load %arg16[%c0_71, %c0_72, %c0_73] : memref<2x8x32xf32, #tpu.memory_space<vmem>>, vector<2x8x32xf32>
      tpu.vector_store %arg16[%c0_71, %c0_72, %c0_73], %144 {strides = array<i32>} : memref<2x8x32xf32, #tpu.memory_space<vmem>>, vector<2x8x32xf32>,
    } else {
    }
    %c0 = arith.constant 0 : index
    %c0_1 = arith.constant 0 : index
    %c0_2 = arith.constant 0 : index
    %3 = vector.load %arg16[%c0, %c0_1, %c0_2] : memref<2x8x32xf32, #tpu.memory_space<vmem>>, vector<2x8x32xf32>
    %c0_3 = arith.constant 0 : index
    %c0_4 = arith.constant 0 : index
    %c0_5 = arith.constant 0 : index
    %4 = vector.load %arg2[%c0_3, %c0_4, %c0_5] : memref<1x1x32xf32, #tpu.memory_space<vmem>>, vector<1x1x32xf32>
    %5 = vector.shape_cast %4 : vector<1x1x32xf32> to vector<1x32xf32>
    %c0_6 = arith.constant 0 : index
    %c0_7 = arith.constant 0 : index
    %c0_8 = arith.constant 0 : index
    %6 = vector.load %arg3[%c0_6, %c0_7, %c0_8] : memref<1x1x32xf32, #tpu.memory_space<vmem>>, vector<1x1x32xf32>
    %7 = vector.shape_cast %6 : vector<1x1x32xf32> to vector<1x32xf32>
    %cst = arith.constant dense<0.000000e+00> : vector<2x8xf32>
    %8 = vector.multi_reduction <add>, %3, %cst [2] : vector<2x8x32xf32> to vector<2x8xf32>
    %9 = vector.shape_cast %8 : vector<2x8xf32> to vector<2x8x1xf32>
    %cst_9 = arith.constant 3.200000e+01 : f32
    %10 = vector.broadcast %cst_9 : f32 to vector<2x8x1xf32>
    %11 = arith.divf %9, %10 : vector<2x8x1xf32>
    %12 = vector.broadcast %11 : vector<2x8x1xf32> to vector<2x8x32xf32>
    %13 = arith.subf %3, %12 : vector<2x8x32xf32>
    %14 = arith.mulf %13, %13 : vector<2x8x32xf32>
    %cst_10 = arith.constant dense<0.000000e+00> : vector<2x8xf32>
    %15 = vector.multi_reduction <add>, %14, %cst_10 [2] : vector<2x8x32xf32> to vector<2x8xf32>
    %16 = vector.shape_cast %15 : vector<2x8xf32> to vector<2x8x1xf32>
    %cst_11 = arith.constant 3.200000e+01 : f32
    %17 = vector.broadcast %cst_11 : f32 to vector<2x8x1xf32>
    %18 = arith.divf %16, %17 : vector<2x8x1xf32>
    %19 = vector.broadcast %11 : vector<2x8x1xf32> to vector<2x8x32xf32>
    %20 = arith.subf %3, %19 : vector<2x8x32xf32>
    %cst_12 = arith.constant 9.99999974E-6 : f32
    %21 = vector.broadcast %cst_12 : f32 to vector<2x8x1xf32>
    %22 = arith.addf %18, %21 : vector<2x8x1xf32>
    %23 = math.rsqrt %22 : vector<2x8x1xf32>
    %24 = vector.broadcast %23 : vector<2x8x1xf32> to vector<2x8x32xf32>
    %25 = arith.mulf %20, %24 : vector<2x8x32xf32>
    %26 = vector.shape_cast %5 : vector<1x32xf32> to vector<1x1x32xf32>
    %27 = vector.broadcast %26 : vector<1x1x32xf32> to vector<2x8x32xf32>
    %28 = arith.mulf %25, %27 : vector<2x8x32xf32>
    %29 = vector.shape_cast %7 : vector<1x32xf32> to vector<1x1x32xf32>
    %30 = vector.broadcast %29 : vector<1x1x32xf32> to vector<2x8x32xf32>
    %31 = arith.addf %28, %30 : vector<2x8x32xf32>
    %32 = vector.shape_cast %31 : vector<2x8x32xf32> to vector<16x32xf32>
    %33 = arith.truncf %32 : vector<16x32xf32> to vector<16x32xbf16>
    %c0_13 = arith.constant 0 : index
    %c0_14 = arith.constant 0 : index
    %c0_15 = arith.constant 0 : index
    %34 = vector.load %arg4[%c0_13, %c0_14, %c0_15] : memref<1x32x96xbf16, #tpu.memory_space<vmem>>, vector<1x32x96xbf16>
    %35 = vector.shape_cast %34 : vector<1x32x96xbf16> to vector<32x96xbf16>
    %cst_16 = arith.constant dense<0.000000e+00> : vector<16x96xf32>
    %36 = tpu.matmul %33, %35, %cst_16 {dimension_numbers = #tpu.dot_dimension_numbers<[1], [0], [0], [1], [0, 0, 1, 1], [], []>} : vector<16x32xbf16>, vector<32x96xbf16>, vector<16x96xf32> -> vector<16x96xf32>
    %c0_17 = arith.constant 0 : index
    %c0_18 = arith.constant 0 : index
    %c0_19 = arith.constant 0 : index
    %37 = vector.load %arg5[%c0_17, %c0_18, %c0_19] : memref<1x1x96xf32, #tpu.memory_space<vmem>>, vector<1x1x96xf32>
    %38 = vector.shape_cast %37 : vector<1x1x96xf32> to vector<1x96xf32>
    %39 = vector.broadcast %38 : vector<1x96xf32> to vector<16x96xf32>
    %40 = arith.addf %36, %39 : vector<16x96xf32>
    %41 = vector.shape_cast %40 : vector<16x96xf32> to vector<16x12x8xf32>
    %42 = tpu.transpose %41, [1, 0, 2] : vector<16x12x8xf32> -> vector<12x16x8xf32>
    %43 = vector.extract_strided_slice %42 {offsets = [0, 0, 0], sizes = [4, 16, 8], strides = [1, 1, 1]} : vector<12x16x8xf32> to vector<4x16x8xf32>
    %44 = vector.shape_cast %43 : vector<4x16x8xf32> to vector<8x8x8xf32>
    %45 = arith.truncf %44 : vector<8x8x8xf32> to vector<8x8x8xbf16>
    %46 = vector.extract_strided_slice %42 {offsets = [4, 0, 0], sizes = [4, 16, 8], strides = [1, 1, 1]} : vector<12x16x8xf32> to vector<4x16x8xf32>
    %47 = vector.shape_cast %46 : vector<4x16x8xf32> to vector<8x8x8xf32>
    %48 = arith.truncf %47 : vector<8x8x8xf32> to vector<8x8x8xbf16>
    %49 = vector.extract_strided_slice %42 {offsets = [8, 0, 0], sizes = [4, 16, 8], strides = [1, 1, 1]} : vector<12x16x8xf32> to vector<4x16x8xf32>
    %50 = vector.shape_cast %49 : vector<4x16x8xf32> to vector<8x8x8xf32>
    %51 = arith.truncf %50 : vector<8x8x8xf32> to vector<8x8x8xbf16>
    "tpu.trace_start"() <{level = 10 : i32, message = "bqd,bkd->bqk"}> : () -> ()
    %cst_20 = arith.constant dense<0.000000e+00> : vector<8x8x8xf32>
    %52 = tpu.matmul %45, %48, %cst_20 {dimension_numbers = #tpu.dot_dimension_numbers<[2], [2], [1], [1], [0, 0, 0, 1, 1, 1], [0], [0]>} : vector<8x8x8xbf16>, vector<8x8x8xbf16>, vector<8x8x8xf32> -> vector<8x8x8xf32>
    "tpu.trace_stop"() : () -> ()
    %cst_21 = arith.constant dense<0xFF800000> : vector<8x8xf32>
    %53 = vector.multi_reduction <maximumf>, %52, %cst_21 [2] : vector<8x8x8xf32> to vector<8x8xf32>
    %54 = vector.shape_cast %53 : vector<8x8xf32> to vector<8x8x1xf32>
    %55 = vector.broadcast %54 : vector<8x8x1xf32> to vector<8x8x8xf32>
    %56 = arith.subf %52, %55 : vector<8x8x8xf32>
    %57 = math.exp %56 : vector<8x8x8xf32>
    %cst_22 = arith.constant dense<0.000000e+00> : vector<8x8xf32>
    %58 = vector.multi_reduction <add>, %57, %cst_22 [2] : vector<8x8x8xf32> to vector<8x8xf32>
    %59 = vector.shape_cast %58 : vector<8x8xf32> to vector<8x8x1xf32>
    %60 = tpu.reciprocal %59 {approx = true} : vector<8x8x1xf32> -> vector<8x8x1xf32>
    %61 = vector.broadcast %60 : vector<8x8x1xf32> to vector<8x8x8xf32>
    %62 = arith.mulf %57, %61 : vector<8x8x8xf32>
    %63 = vector.shape_cast %62 : vector<8x8x8xf32> to vector<4x2x8x8xf32>
    %cst_23 = arith.constant dense<0.000000e+00> : vector<2x8x8xf32>
    %64 = vector.multi_reduction <add>, %63, %cst_23 [0] : vector<4x2x8x8xf32> to vector<2x8x8xf32>
    %cst_24 = arith.constant 2.500000e-01 : f32
    %65 = vector.broadcast %cst_24 : f32 to vector<2x8x8xf32>
    %66 = arith.mulf %64, %65 : vector<2x8x8xf32>
    %c0_25 = arith.constant 0 : index
    %c0_26 = arith.constant 0 : index
    %c0_27 = arith.constant 0 : index
    %c0_28 = arith.constant 0 : index
    %67 = vector.load %arg15[%c0_25, %c0_26, %c0_27, %c0_28] : memref<1x2x8x8xf32, #tpu.memory_space<vmem>>, vector<1x2x8x8xf32>
    %68 = vector.shape_cast %67 : vector<1x2x8x8xf32> to vector<2x8x8xf32>
    %69 = vector.shape_cast %66 : vector<2x8x8xf32> to vector<1x2x8x8xf32>
    tpu.vector_store %arg15[%c0_25, %c0_26, %c0_27, %c0_28], %69 {strides = array<i32>} : memref<1x2x8x8xf32, #tpu.memory_space<vmem>>, vector<1x2x8x8xf32>,
    %70 = arith.truncf %62 : vector<8x8x8xf32> to vector<8x8x8xbf16>
    "tpu.trace_start"() <{level = 10 : i32, message = "bqk,bkd->bqd"}> : () -> ()
    %cst_29 = arith.constant dense<0.000000e+00> : vector<8x8x8xf32>
    %71 = tpu.matmul %70, %51, %cst_29 {dimension_numbers = #tpu.dot_dimension_numbers<[2], [1], [1], [2], [0, 0, 0, 1, 1, 2], [0], [0]>} : vector<8x8x8xbf16>, vector<8x8x8xbf16>, vector<8x8x8xf32> -> vector<8x8x8xf32>
    "tpu.trace_stop"() : () -> ()
    %72 = vector.shape_cast %71 : vector<8x8x8xf32> to vector<4x16x8xf32>
    %73 = tpu.transpose %72, [1, 0, 2] : vector<4x16x8xf32> -> vector<16x4x8xf32>
    %74 = vector.shape_cast %73 : vector<16x4x8xf32> to vector<16x32xf32>
    %75 = arith.truncf %74 : vector<16x32xf32> to vector<16x32xbf16>
    %c0_30 = arith.constant 0 : index
    %c0_31 = arith.constant 0 : index
    %c0_32 = arith.constant 0 : index
    %76 = vector.load %arg6[%c0_30, %c0_31, %c0_32] : memref<1x32x32xbf16, #tpu.memory_space<vmem>>, vector<1x32x32xbf16>
    %77 = vector.shape_cast %76 : vector<1x32x32xbf16> to vector<32x32xbf16>
    %cst_33 = arith.constant dense<0.000000e+00> : vector<16x32xf32>
    %78 = tpu.matmul %75, %77, %cst_33 {dimension_numbers = #tpu.dot_dimension_numbers<[1], [0], [0], [1], [0, 0, 1, 1], [], []>} : vector<16x32xbf16>, vector<32x32xbf16>, vector<16x32xf32> -> vector<16x32xf32>
    %c0_34 = arith.constant 0 : index
    %c0_35 = arith.constant 0 : index
    %c0_36 = arith.constant 0 : index
    %79 = vector.load %arg7[%c0_34, %c0_35, %c0_36] : memref<1x1x32xf32, #tpu.memory_space<vmem>>, vector<1x1x32xf32>
    %80 = vector.shape_cast %79 : vector<1x1x32xf32> to vector<1x32xf32>
    %81 = vector.broadcast %80 : vector<1x32xf32> to vector<16x32xf32>
    %82 = arith.addf %78, %81 : vector<16x32xf32>
    %83 = vector.shape_cast %82 : vector<16x32xf32> to vector<2x8x32xf32>
    %84 = arith.addf %3, %83 : vector<2x8x32xf32>
    %c0_37 = arith.constant 0 : index
    %c0_38 = arith.constant 0 : index
    %c0_39 = arith.constant 0 : index
    %85 = vector.load %arg8[%c0_37, %c0_38, %c0_39] : memref<1x1x32xf32, #tpu.memory_space<vmem>>, vector<1x1x32xf32>
    %86 = vector.shape_cast %85 : vector<1x1x32xf32> to vector<1x32xf32>
    %c0_40 = arith.constant 0 : index
    %c0_41 = arith.constant 0 : index
    %c0_42 = arith.constant 0 : index
    %87 = vector.load %arg9[%c0_40, %c0_41, %c0_42] : memref<1x1x32xf32, #tpu.memory_space<vmem>>, vector<1x1x32xf32>
    %88 = vector.shape_cast %87 : vector<1x1x32xf32> to vector<1x32xf32>
    %cst_43 = arith.constant dense<0.000000e+00> : vector<2x8xf32>
    %89 = vector.multi_reduction <add>, %84, %cst_43 [2] : vector<2x8x32xf32> to vector<2x8xf32>
    %90 = vector.shape_cast %89 : vector<2x8xf32> to vector<2x8x1xf32>
    %cst_44 = arith.constant 3.200000e+01 : f32
    %91 = vector.broadcast %cst_44 : f32 to vector<2x8x1xf32>
    %92 = arith.divf %90, %91 : vector<2x8x1xf32>
    %93 = vector.broadcast %92 : vector<2x8x1xf32> to vector<2x8x32xf32>
    %94 = arith.subf %84, %93 : vector<2x8x32xf32>
    %95 = arith.mulf %94, %94 : vector<2x8x32xf32>
    %cst_45 = arith.constant dense<0.000000e+00> : vector<2x8xf32>
    %96 = vector.multi_reduction <add>, %95, %cst_45 [2] : vector<2x8x32xf32> to vector<2x8xf32>
    %97 = vector.shape_cast %96 : vector<2x8xf32> to vector<2x8x1xf32>
    %cst_46 = arith.constant 3.200000e+01 : f32
    %98 = vector.broadcast %cst_46 : f32 to vector<2x8x1xf32>
    %99 = arith.divf %97, %98 : vector<2x8x1xf32>
    %100 = vector.broadcast %92 : vector<2x8x1xf32> to vector<2x8x32xf32>
    %101 = arith.subf %84, %100 : vector<2x8x32xf32>
    %cst_47 = arith.constant 9.99999974E-6 : f32
    %102 = vector.broadcast %cst_47 : f32 to vector<2x8x1xf32>
    %103 = arith.addf %99, %102 : vector<2x8x1xf32>
    %104 = math.rsqrt %103 : vector<2x8x1xf32>
    %105 = vector.broadcast %104 : vector<2x8x1xf32> to vector<2x8x32xf32>
    %106 = arith.mulf %101, %105 : vector<2x8x32xf32>
    %107 = vector.shape_cast %86 : vector<1x32xf32> to vector<1x1x32xf32>
    %108 = vector.broadcast %107 : vector<1x1x32xf32> to vector<2x8x32xf32>
    %109 = arith.mulf %106, %108 : vector<2x8x32xf32>
    %110 = vector.shape_cast %88 : vector<1x32xf32> to vector<1x1x32xf32>
    %111 = vector.broadcast %110 : vector<1x1x32xf32> to vector<2x8x32xf32>
    %112 = arith.addf %109, %111 : vector<2x8x32xf32>
    %113 = vector.shape_cast %112 : vector<2x8x32xf32> to vector<16x32xf32>
    %114 = arith.truncf %113 : vector<16x32xf32> to vector<16x32xbf16>
    %c0_48 = arith.constant 0 : index
    %c0_49 = arith.constant 0 : index
    %c0_50 = arith.constant 0 : index
    %115 = vector.load %arg10[%c0_48, %c0_49, %c0_50] : memref<1x32x128xbf16, #tpu.memory_space<vmem>>, vector<1x32x128xbf16>
    %116 = vector.shape_cast %115 : vector<1x32x128xbf16> to vector<32x128xbf16>
    %cst_51 = arith.constant dense<0.000000e+00> : vector<16x128xf32>
    %117 = tpu.matmul %114, %116, %cst_51 {dimension_numbers = #tpu.dot_dimension_numbers<[1], [0], [0], [1], [0, 0, 1, 1], [], []>} : vector<16x32xbf16>, vector<32x128xbf16>, vector<16x128xf32> -> vector<16x128xf32>
    %c0_52 = arith.constant 0 : index
    %c0_53 = arith.constant 0 : index
    %c0_54 = arith.constant 0 : index
    %118 = vector.load %arg11[%c0_52, %c0_53, %c0_54] : memref<1x1x128xf32, #tpu.memory_space<vmem>>, vector<1x1x128xf32>
    %119 = vector.shape_cast %118 : vector<1x1x128xf32> to vector<1x128xf32>
    %120 = vector.broadcast %119 : vector<1x128xf32> to vector<16x128xf32>
    %121 = arith.addf %117, %120 : vector<16x128xf32>
    %cst_55 = arith.constant 1.702000e+00 : f32
    %122 = vector.broadcast %cst_55 : f32 to vector<16x128xf32>
    %123 = arith.mulf %122, %121 : vector<16x128xf32>
    %124 = arith.negf %123 : vector<16x128xf32>
    %125 = math.exp %124 : vector<16x128xf32>
    %cst_56 = arith.constant 1.000000e+00 : f32
    %126 = vector.broadcast %cst_56 : f32 to vector<16x128xf32>
    %127 = arith.addf %126, %125 : vector<16x128xf32>
    %128 = arith.divf %126, %127 : vector<16x128xf32>
    %129 = arith.mulf %121, %128 : vector<16x128xf32>
    %130 = arith.truncf %129 : vector<16x128xf32> to vector<16x128xbf16>
    %c0_57 = arith.constant 0 : index
    %c0_58 = arith.constant 0 : index
    %c0_59 = arith.constant 0 : index
    %131 = vector.load %arg12[%c0_57, %c0_58, %c0_59] : memref<1x128x32xbf16, #tpu.memory_space<vmem>>, vector<1x128x32xbf16>
    %132 = vector.shape_cast %131 : vector<1x128x32xbf16> to vector<128x32xbf16>
    %cst_60 = arith.constant dense<0.000000e+00> : vector<16x32xf32>
    %133 = tpu.matmul %130, %132, %cst_60 {dimension_numbers = #tpu.dot_dimension_numbers<[1], [0], [0], [1], [0, 0, 1, 1], [], []>} : vector<16x128xbf16>, vector<128x32xbf16>, vector<16x32xf32> -> vector<16x32xf32>
    %c0_61 = arith.constant 0 : index
    %c0_62 = arith.constant 0 : index
    %c0_63 = arith.constant 0 : index
    %134 = vector.load %arg13[%c0_61, %c0_62, %c0_63] : memref<1x1x32xf32, #tpu.memory_space<vmem>>, vector<1x1x32xf32>
    %135 = vector.shape_cast %134 : vector<1x1x32xf32> to vector<1x32xf32>
    %136 = vector.broadcast %135 : vector<1x32xf32> to vector<16x32xf32>
    %137 = arith.addf %133, %136 : vector<16x32xf32>
    %138 = vector.shape_cast %137 : vector<16x32xf32> to vector<2x8x32xf32>
    %139 = arith.addf %84, %138 : vector<2x8x32xf32>
    %c0_64 = arith.constant 0 : index
    %c0_65 = arith.constant 0 : index
    %c0_66 = arith.constant 0 : index
    %140 = vector.load %arg16[%c0_64, %c0_65, %c0_66] : memref<2x8x32xf32, #tpu.memory_space<vmem>>, vector<2x8x32xf32>
    tpu.vector_store %arg16[%c0_64, %c0_65, %c0_66], %139 {strides = array<i32>} : memref<2x8x32xf32, #tpu.memory_space<vmem>>, vector<2x8x32xf32>,
    %c1_i32 = arith.constant 1 : i32
    %141 = arith.cmpi eq, %arg0, %c1_i32 : i32
    %142 = arith.extui %141 : i1 to i32
    %c0_i32_67 = arith.constant 0 : i32
    %143 = arith.cmpi ne, %142, %c0_i32_67 : i32
    scf.if %143 {
      %c0_68 = arith.constant 0 : index
      %c0_69 = arith.constant 0 : index
      %c0_70 = arith.constant 0 : index
      %144 = vector.load %arg14[%c0_68, %c0_69, %c0_70] : memref<2x8x32xf32, #tpu.memory_space<vmem>>, vector<2x8x32xf32>
      tpu.vector_store %arg14[%c0_68, %c0_69, %c0_70], %139 {strides = array<i32>} : memref<2x8x32xf32, #tpu.memory_space<vmem>>, vector<2x8x32xf32>,
    } else {
    }
    return
  }
  func.func @transform_0(%arg0: i32) -> (i32, i32, i32) {
    %c0_i32 = arith.constant 0 : i32
    %c0_i32_0 = arith.constant 0 : i32
    %c0_i32_1 = arith.constant 0 : i32
    %c0_i32_2 = arith.constant 0 : i32
    return %c0_i32, %c0_i32_0, %c0_i32_1 : i32, i32, i32
  }
  func.func @transform_1(%arg0: i32) -> (i32, i32, i32) {
    %c0_i32 = arith.constant 0 : i32
    %c0_i32_0 = arith.constant 0 : i32
    %c0_i32_1 = arith.constant 0 : i32
    return %arg0, %c0_i32, %c0_i32_0 : i32, i32, i32
  }
  func.func @transform_2(%arg0: i32) -> (i32, i32, i32) {
    %c0_i32 = arith.constant 0 : i32
    %c0_i32_0 = arith.constant 0 : i32
    %c0_i32_1 = arith.constant 0 : i32
    return %arg0, %c0_i32, %c0_i32_0 : i32, i32, i32
  }
  func.func @transform_3(%arg0: i32) -> (i32, i32, i32) {
    %c0_i32 = arith.constant 0 : i32
    %c0_i32_0 = arith.constant 0 : i32
    %c0_i32_1 = arith.constant 0 : i32
    return %arg0, %c0_i32, %c0_i32_0 : i32, i32, i32
  }
  func.func @transform_4(%arg0: i32) -> (i32, i32, i32) {
    %c0_i32 = arith.constant 0 : i32
    %c0_i32_0 = arith.constant 0 : i32
    %c0_i32_1 = arith.constant 0 : i32
    return %arg0, %c0_i32, %c0_i32_0 : i32, i32, i32
  }
  func.func @transform_5(%arg0: i32) -> (i32, i32, i32) {
    %c0_i32 = arith.constant 0 : i32
    %c0_i32_0 = arith.constant 0 : i32
    %c0_i32_1 = arith.constant 0 : i32
    return %arg0, %c0_i32, %c0_i32_0 : i32, i32, i32
  }
  func.func @transform_6(%arg0: i32) -> (i32, i32, i32) {
    %c0_i32 = arith.constant 0 : i32
    %c0_i32_0 = arith.constant 0 : i32
    %c0_i32_1 = arith.constant 0 : i32
    return %arg0, %c0_i32, %c0_i32_0 : i32, i32, i32
  }
  func.func @transform_7(%arg0: i32) -> (i32, i32, i32) {
    %c0_i32 = arith.constant 0 : i32
    %c0_i32_0 = arith.constant 0 : i32
    %c0_i32_1 = arith.constant 0 : i32
    return %arg0, %c0_i32, %c0_i32_0 : i32, i32, i32
  }
  func.func @transform_8(%arg0: i32) -> (i32, i32, i32) {
    %c0_i32 = arith.constant 0 : i32
    %c0_i32_0 = arith.constant 0 : i32
    %c0_i32_1 = arith.constant 0 : i32
    return %arg0, %c0_i32, %c0_i32_0 : i32, i32, i32
  }
  func.func @transform_9(%arg0: i32) -> (i32, i32, i32) {
    %c0_i32 = arith.constant 0 : i32
    %c0_i32_0 = arith.constant 0 : i32
    %c0_i32_1 = arith.constant 0 : i32
    return %arg0, %c0_i32, %c0_i32_0 : i32, i32, i32
  }
  func.func @transform_10(%arg0: i32) -> (i32, i32, i32) {
    %c0_i32 = arith.constant 0 : i32
    %c0_i32_0 = arith.constant 0 : i32
    %c0_i32_1 = arith.constant 0 : i32
    return %arg0, %c0_i32, %c0_i32_0 : i32, i32, i32
  }
  func.func @transform_11(%arg0: i32) -> (i32, i32, i32) {
    %c0_i32 = arith.constant 0 : i32
    %c0_i32_0 = arith.constant 0 : i32
    %c0_i32_1 = arith.constant 0 : i32
    return %arg0, %c0_i32, %c0_i32_0 : i32, i32, i32
  }
  func.func @transform_12(%arg0: i32) -> (i32, i32, i32) {
    %c0_i32 = arith.constant 0 : i32
    %c0_i32_0 = arith.constant 0 : i32
    %c0_i32_1 = arith.constant 0 : i32
    return %arg0, %c0_i32, %c0_i32_0 : i32, i32, i32
  }
  func.func @transform_13(%arg0: i32) -> (i32, i32, i32) {
    %c0_i32 = arith.constant 0 : i32
    %c0_i32_0 = arith.constant 0 : i32
    %c0_i32_1 = arith.constant 0 : i32
    %c0_i32_2 = arith.constant 0 : i32
    return %c0_i32, %c0_i32_0, %c0_i32_1 : i32, i32, i32
  }
  func.func @transform_14(%arg0: i32) -> (i32, i32, i32, i32) {
    %c0_i32 = arith.constant 0 : i32
    %c0_i32_0 = arith.constant 0 : i32
    %c0_i32_1 = arith.constant 0 : i32
    %c0_i32_2 = arith.constant 0 : i32
    return %arg0, %c0_i32, %c0_i32_0, %c0_i32_1 : i32, i32, i32, i32
  }
}

</mosaic_0001>

<llo_original>
// kernel: tpu_custom_call.1
$region0: #{tpu_custom_call.1}
  #allocation0 [shape = 'u32[]', space=smem, size = 0x4, offset = 0x4, fixed_abs, tag = 'smem constant byte address 0x4 - core index']
  #allocation1 [shape = 'u32[144,128]{1,0:T(1,128)}', space=vmem, size = 0x12000, scoped, tag = 'internal scratch']
  #allocation2 [shape = 'f32[2,8,32]{2,1,0:T(8,128)}', space=vmem, size = 0x2000, scoped, tag = 'scratch operand']
  %s0 = inlined_call_operand.vmem [shape: f32[2,8,32], index: 0, kind: input, shape index: {}]
  %s1 = inlined_call_operand.vmem [shape: f32[2,1,32], index: 1, kind: input, shape index: {}]
  %s2 = inlined_call_operand.vmem [shape: f32[2,1,32], index: 2, kind: input, shape index: {}]
  %s3 = inlined_call_operand.vmem [shape: bf16[2,32,96], index: 3, kind: input, shape index: {}]
  %s4 = inlined_call_operand.vmem [shape: f32[2,1,96], index: 4, kind: input, shape index: {}]
  %s5 = inlined_call_operand.vmem [shape: bf16[2,32,32], index: 5, kind: input, shape index: {}]
  %s6 = inlined_call_operand.vmem [shape: f32[2,1,32], index: 6, kind: input, shape index: {}]
  %s7 = inlined_call_operand.vmem [shape: f32[2,1,32], index: 7, kind: input, shape index: {}]
  %s8 = inlined_call_operand.vmem [shape: f32[2,1,32], index: 8, kind: input, shape index: {}]
  %s9 = inlined_call_operand.vmem [shape: bf16[2,32,128], index: 9, kind: input, shape index: {}]
  %s10 = inlined_call_operand.vmem [shape: f32[2,1,128], index: 10, kind: input, shape index: {}]
  %s11 = inlined_call_operand.vmem [shape: bf16[2,128,32], index: 11, kind: input, shape index: {}]
  %s12 = inlined_call_operand.vmem [shape: f32[2,1,32], index: 12, kind: input, shape index: {}]
  %s13 = inlined_call_operand.hbm [shape: f32[2,8,32], index: 13, kind: output, shape index: {0}]
  %s14 = inlined_call_operand.hbm [shape: f32[2,2,8,8], index: 14, kind: output, shape index: {1}]
  %15 = xla_tuple %s13, %s14
  %s16 = sld [smem:[#allocation0]]
  $region101: #{tpu_custom_call.1} parent=0
    _
  %s18 = ssub.s32 1, %s16
  %s19 = scalar_select 0, %s18, %s16
  $region1: #{tpu_custom_call.1} parent=0
    #allocation3 [shape = 'u8[8192]{0}', space=vmem, size = 0x2000, scoped, tag = 'output window, operand 0, single buffered']
    #allocation4 [shape = 's32[2]{0}', space=sflag, size = 0x8, scoped, tag = 'scoped memory for tpu_custom_call.1']
    #allocation5 [shape = 'u8[16384]{0}', space=vmem, size = 0x4000, scoped, tag = 'output window, operand 1']
    #allocation6 [shape = 's32[2]{0}', space=sflag, size = 0x8, scoped, tag = 'scoped memory for tpu_custom_call.1']
    %20 = vsyncpa [#allocation4], 0
    %21 = vsyncpa [#allocation6], 0
    %s22 = scalar_lea.sflag [#allocation6], 1
    %23 = vsyncpa %s22, 0
    loop: start=0, step=1, limit=4
    $region2: #{tpu_custom_call.1} parent=1 // loop_pre_header
      _
    $region3: #{tpu_custom_call.1} parent=1 // loop_header
      %s25 = sphi 0, %s29
      %p26 = scmp.ge.s32.totalorder %s25, 4
      %s33 = sphi 0, %s33
      %s35 = sphi 0, %s33
      %s36 = sphi 0, %s35
      %s50 = sphi 0, %s36
      %s56 = sphi 0, %s58
      %s59 = sphi 0, %s56
      %s60 = sphi 0, %s59
      %s76 = sphi 0, %s60
      %s82 = sphi 0, %s84
      %s85 = sphi 0, %s82
      %s86 = sphi 0, %s85
      %s102 = sphi 0, %s86
      %s108 = sphi 0, %s110
      %s111 = sphi 0, %s108
      %s112 = sphi 0, %s111
      %s128 = sphi 0, %s112
      %s134 = sphi 0, %s136
      %s137 = sphi 0, %s134
      %s138 = sphi 0, %s137
      %s154 = sphi 0, %s138
      %s160 = sphi 0, %s162
      %s163 = sphi 0, %s160
      %s164 = sphi 0, %s163
      %s180 = sphi 0, %s164
      %s186 = sphi 0, %s188
      %s189 = sphi 0, %s186
      %s190 = sphi 0, %s189
      %s206 = sphi 0, %s190
      %s212 = sphi 0, %s214
      %s215 = sphi 0, %s212
      %s216 = sphi 0, %s215
      %s232 = sphi 0, %s216
      %s238 = sphi 0, %s240
      %s241 = sphi 0, %s238
      %s242 = sphi 0, %s241
      %s258 = sphi 0, %s242
      %s264 = sphi 0, %s266
      %s267 = sphi 0, %s264
      %s268 = sphi 0, %s267
      %s284 = sphi 0, %s268
      %s290 = sphi 0, %s292
      %s293 = sphi 0, %s290
      %s294 = sphi 0, %s293
      %s310 = sphi 0, %s294
      %s316 = sphi 0, %s318
      %s319 = sphi 0, %s316
      %s320 = sphi 0, %s319
      %s336 = sphi 0, %s320
      %s342 = sphi 0, %s344
      %s345 = sphi 0, %s342
      %s346 = sphi 0, %s345
      %s362 = sphi 0, %s346
      %s366 = sphi 0, %s366
      %s368 = sphi 0, %s366
      %s369 = sphi 0, %s368
      %s383 = sphi 0, %s369
      %s389 = sphi 0, %s391
      %s392 = sphi 0, %s389
      %s393 = sphi 0, %s392
      %s409 = sphi 0, %s393
    $region4: #{tpu_custom_call.1} parent=1 // loop_header_branch
      %28 = sbr.rel (%p26) target = $region8
    $region5: #{tpu_custom_call.1} parent=1 // loop_body
      %s30 = ssub.s32 %s25, 1
      %s31 = ssub.s32 %s25, 2
      %s32 = sadd.s32 %s25, 1
      %s34 = sadd.s32 %s33, 1
      %p37 = scmp.eq.s32.totalorder %s25, 1
      %p38 = scmp.ne.s32.totalorder %s33, %s35
      %p39 = scmp.eq.s32.totalorder %s25, 0
      %p40 = por %p38, %p39
      %p41 = scmp.ne.s32.totalorder %s33, %s35
      %p42 = scmp.eq.s32.totalorder %s30, 1
      %p43 = por %p41, %p42
      %p44 = scmp.ne.s32.totalorder %s35, %s36
      %p45 = scmp.eq.s32.totalorder %s30, 0
      %p46 = por %p44, %p45
      %p47 = scmp.ne.s32.totalorder %s35, %s36
      %p48 = scmp.eq.s32.totalorder %s31, 1
      %p49 = por %p47, %p48
      %p51 = scmp.ne.s32.totalorder %s36, %s50
      %p52 = scmp.eq.s32.totalorder %s31, 0
      %p53 = por %p51, %p52
      %s54 = ssub.s32 %s25, %s32
      %p55 = scmp.eq.s32.totalorder %s54, 0
      %s57 = sadd.s32 %s56, 1
      %s58 = scalar_select %p55, %s56, %s57
      %p61 = pneg %p55
      %p62 = scmp.eq.s32.totalorder %s25, 1
      %p63 = por %p61, %p62
      %p64 = scmp.ne.s32.totalorder %s56, %s59
      %p65 = scmp.eq.s32.totalorder %s25, 0
      %p66 = por %p64, %p65
      %p67 = scmp.ne.s32.totalorder %s56, %s59
      %p68 = scmp.eq.s32.totalorder %s30, 1
      %p69 = por %p67, %p68
      %p70 = scmp.ne.s32.totalorder %s59, %s60
      %p71 = scmp.eq.s32.totalorder %s30, 0
      %p72 = por %p70, %p71
      %p73 = scmp.ne.s32.totalorder %s59, %s60
      %p74 = scmp.eq.s32.totalorder %s31, 1
      %p75 = por %p73, %p74
      %p77 = scmp.ne.s32.totalorder %s60, %s76
      %p78 = scmp.eq.s32.totalorder %s31, 0
      %p79 = por %p77, %p78
      %s80 = ssub.s32 %s25, %s32
      %p81 = scmp.eq.s32.totalorder %s80, 0
      %s83 = sadd.s32 %s82, 1
      %s84 = scalar_select %p81, %s82, %s83
      %p87 = pneg %p81
      %p88 = scmp.eq.s32.totalorder %s25, 1
      %p89 = por %p87, %p88
      %p90 = scmp.ne.s32.totalorder %s82, %s85
      %p91 = scmp.eq.s32.totalorder %s25, 0
      %p92 = por %p90, %p91
      %p93 = scmp.ne.s32.totalorder %s82, %s85
      %p94 = scmp.eq.s32.totalorder %s30, 1
      %p95 = por %p93, %p94
      %p96 = scmp.ne.s32.totalorder %s85, %s86
      %p97 = scmp.eq.s32.totalorder %s30, 0
      %p98 = por %p96, %p97
      %p99 = scmp.ne.s32.totalorder %s85, %s86
      %p100 = scmp.eq.s32.totalorder %s31, 1
      %p101 = por %p99, %p100
      %p103 = scmp.ne.s32.totalorder %s86, %s102
      %p104 = scmp.eq.s32.totalorder %s31, 0
      %p105 = por %p103, %p104
      %s106 = ssub.s32 %s25, %s32
      %p107 = scmp.eq.s32.totalorder %s106, 0
      %s109 = sadd.s32 %s108, 1
      %s110 = scalar_select %p107, %s108, %s109
      %p113 = pneg %p107
      %p114 = scmp.eq.s32.totalorder %s25, 1
      %p115 = por %p113, %p114
      %p116 = scmp.ne.s32.totalorder %s108, %s111
      %p117 = scmp.eq.s32.totalorder %s25, 0
      %p118 = por %p116, %p117
      %p119 = scmp.ne.s32.totalorder %s108, %s111
      %p120 = scmp.eq.s32.totalorder %s30, 1
      %p121 = por %p119, %p120
      %p122 = scmp.ne.s32.totalorder %s111, %s112
      %p123 = scmp.eq.s32.totalorder %s30, 0
      %p124 = por %p122, %p123
      %p125 = scmp.ne.s32.totalorder %s111, %s112
      %p126 = scmp.eq.s32.totalorder %s31, 1
      %p127 = por %p125, %p126
      %p129 = scmp.ne.s32.totalorder %s112, %s128
      %p130 = scmp.eq.s32.totalorder %s31, 0
      %p131 = por %p129, %p130
      %s132 = ssub.s32 %s25, %s32
      %p133 = scmp.eq.s32.totalorder %s132, 0
      %s135 = sadd.s32 %s134, 1
      %s136 = scalar_select %p133, %s134, %s135
      %p139 = pneg %p133
      %p140 = scmp.eq.s32.totalorder %s25, 1
      %p141 = por %p139, %p140
      %p142 = scmp.ne.s32.totalorder %s134, %s137
      %p143 = scmp.eq.s32.totalorder %s25, 0
      %p144 = por %p142, %p143
      %p145 = scmp.ne.s32.totalorder %s134, %s137
      %p146 = scmp.eq.s32.totalorder %s30, 1
      %p147 = por %p145, %p146
      %p148 = scmp.ne.s32.totalorder %s137, %s138
      %p149 = scmp.eq.s32.totalorder %s30, 0
      %p150 = por %p148, %p149
      %p151 = scmp.ne.s32.totalorder %s137, %s138
      %p152 = scmp.eq.s32.totalorder %s31, 1
      %p153 = por %p151, %p152
      %p155 = scmp.ne.s32.totalorder %s138, %s154
      %p156 = scmp.eq.s32.totalorder %s31, 0
      %p157 = por %p155, %p156
      %s158 = ssub.s32 %s25, %s32
      %p159 = scmp.eq.s32.totalorder %s158, 0
      %s161 = sadd.s32 %s160, 1
      %s162 = scalar_select %p159, %s160, %s161
      %p165 = pneg %p159
      %p166 = scmp.eq.s32.totalorder %s25, 1
      %p167 = por %p165, %p166
      %p168 = scmp.ne.s32.totalorder %s160, %s163
      %p169 = scmp.eq.s32.totalorder %s25, 0
      %p170 = por %p168, %p169
      %p171 = scmp.ne.s32.totalorder %s160, %s163
      %p172 = scmp.eq.s32.totalorder %s30, 1
      %p173 = por %p171, %p172
      %p174 = scmp.ne.s32.totalorder %s163, %s164
      %p175 = scmp.eq.s32.totalorder %s30, 0
      %p176 = por %p174, %p175
      %p177 = scmp.ne.s32.totalorder %s163, %s164
      %p178 = scmp.eq.s32.totalorder %s31, 1
      %p179 = por %p177, %p178
      %p181 = scmp.ne.s32.totalorder %s164, %s180
      %p182 = scmp.eq.s32.totalorder %s31, 0
      %p183 = por %p181, %p182
      %s184 = ssub.s32 %s25, %s32
      %p185 = scmp.eq.s32.totalorder %s184, 0
      %s187 = sadd.s32 %s186, 1
      %s188 = scalar_select %p185, %s186, %s187
      %p191 = pneg %p185
      %p192 = scmp.eq.s32.totalorder %s25, 1
      %p193 = por %p191, %p192
      %p194 = scmp.ne.s32.totalorder %s186, %s189
      %p195 = scmp.eq.s32.totalorder %s25, 0
      %p196 = por %p194, %p195
      %p197 = scmp.ne.s32.totalorder %s186, %s189
      %p198 = scmp.eq.s32.totalorder %s30, 1
      %p199 = por %p197, %p198
      %p200 = scmp.ne.s32.totalorder %s189, %s190
      %p201 = scmp.eq.s32.totalorder %s30, 0
      %p202 = por %p200, %p201
      %p203 = scmp.ne.s32.totalorder %s189, %s190
      %p204 = scmp.eq.s32.totalorder %s31, 1
      %p205 = por %p203, %p204
      %p207 = scmp.ne.s32.totalorder %s190, %s206
      %p208 = scmp.eq.s32.totalorder %s31, 0
      %p209 = por %p207, %p208
      %s210 = ssub.s32 %s25, %s32
      %p211 = scmp.eq.s32.totalorder %s210, 0
      %s213 = sadd.s32 %s212, 1
      %s214 = scalar_select %p211, %s212, %s213
      %p217 = pneg %p211
      %p218 = scmp.eq.s32.totalorder %s25, 1
      %p219 = por %p217, %p218
      %p220 = scmp.ne.s32.totalorder %s212, %s215
      %p221 = scmp.eq.s32.totalorder %s25, 0
      %p222 = por %p220, %p221
      %p223 = scmp.ne.s32.totalorder %s212, %s215
      %p224 = scmp.eq.s32.totalorder %s30, 1
      %p225 = por %p223, %p224
      %p226 = scmp.ne.s32.totalorder %s215, %s216
      %p227 = scmp.eq.s32.totalorder %s30, 0
      %p228 = por %p226, %p227
      %p229 = scmp.ne.s32.totalorder %s215, %s216
      %p230 = scmp.eq.s32.totalorder %s31, 1
      %p231 = por %p229, %p230
      %p233 = scmp.ne.s32.totalorder %s216, %s232
      %p234 = scmp.eq.s32.totalorder %s31, 0
      %p235 = por %p233, %p234
      %s236 = ssub.s32 %s25, %s32
      %p237 = scmp.eq.s32.totalorder %s236, 0
      %s239 = sadd.s32 %s238, 1
      %s240 = scalar_select %p237, %s238, %s239
      %p243 = pneg %p237
      %p244 = scmp.eq.s32.totalorder %s25, 1
      %p245 = por %p243, %p244
      %p246 = scmp.ne.s32.totalorder %s238, %s241
      %p247 = scmp.eq.s32.totalorder %s25, 0
      %p248 = por %p246, %p247
      %p249 = scmp.ne.s32.totalorder %s238, %s241
      %p250 = scmp.eq.s32.totalorder %s30, 1
      %p251 = por %p249, %p250
      %p252 = scmp.ne.s32.totalorder %s241, %s242
      %p253 = scmp.eq.s32.totalorder %s30, 0
      %p254 = por %p252, %p253
      %p255 = scmp.ne.s32.totalorder %s241, %s242
      %p256 = scmp.eq.s32.totalorder %s31, 1
      %p257 = por %p255, %p256
      %p259 = scmp.ne.s32.totalorder %s242, %s258
      %p260 = scmp.eq.s32.totalorder %s31, 0
      %p261 = por %p259, %p260
      %s262 = ssub.s32 %s25, %s32
      %p263 = scmp.eq.s32.totalorder %s262, 0
      %s265 = sadd.s32 %s264, 1
      %s266 = scalar_select %p263, %s264, %s265
      %p269 = pneg %p263
      %p270 = scmp.eq.s32.totalorder %s25, 1
      %p271 = por %p269, %p270
      %p272 = scmp.ne.s32.totalorder %s264, %s267
      %p273 = scmp.eq.s32.totalorder %s25, 0
      %p274 = por %p272, %p273
      %p275 = scmp.ne.s32.totalorder %s264, %s267
      %p276 = scmp.eq.s32.totalorder %s30, 1
      %p277 = por %p275, %p276
      %p278 = scmp.ne.s32.totalorder %s267, %s268
      %p279 = scmp.eq.s32.totalorder %s30, 0
      %p280 = por %p278, %p279
      %p281 = scmp.ne.s32.totalorder %s267, %s268
      %p282 = scmp.eq.s32.totalorder %s31, 1
      %p283 = por %p281, %p282
      %p285 = scmp.ne.s32.totalorder %s268, %s284
      %p286 = scmp.eq.s32.totalorder %s31, 0
      %p287 = por %p285, %p286
      %s288 = ssub.s32 %s25, %s32
      %p289 = scmp.eq.s32.totalorder %s288, 0
      %s291 = sadd.s32 %s290, 1
      %s292 = scalar_select %p289, %s290, %s291
      %p295 = pneg %p289
      %p296 = scmp.eq.s32.totalorder %s25, 1
      %p297 = por %p295, %p296
      %p298 = scmp.ne.s32.totalorder %s290, %s293
      %p299 = scmp.eq.s32.totalorder %s25, 0
      %p300 = por %p298, %p299
      %p301 = scmp.ne.s32.totalorder %s290, %s293
      %p302 = scmp.eq.s32.totalorder %s30, 1
      %p303 = por %p301, %p302
      %p304 = scmp.ne.s32.totalorder %s293, %s294
      %p305 = scmp.eq.s32.totalorder %s30, 0
      %p306 = por %p304, %p305
      %p307 = scmp.ne.s32.totalorder %s293, %s294
      %p308 = scmp.eq.s32.totalorder %s31, 1
      %p309 = por %p307, %p308
      %p311 = scmp.ne.s32.totalorder %s294, %s310
      %p312 = scmp.eq.s32.totalorder %s31, 0
      %p313 = por %p311, %p312
      %s314 = ssub.s32 %s25, %s32
      %p315 = scmp.eq.s32.totalorder %s314, 0
      %s317 = sadd.s32 %s316, 1
      %s318 = scalar_select %p315, %s316, %s317
      %p321 = pneg %p315
      %p322 = scmp.eq.s32.totalorder %s25, 1
      %p323 = por %p321, %p322
      %p324 = scmp.ne.s32.totalorder %s316, %s319
      %p325 = scmp.eq.s32.totalorder %s25, 0
      %p326 = por %p324, %p325
      %p327 = scmp.ne.s32.totalorder %s316, %s319
      %p328 = scmp.eq.s32.totalorder %s30, 1
      %p329 = por %p327, %p328
      %p330 = scmp.ne.s32.totalorder %s319, %s320
      %p331 = scmp.eq.s32.totalorder %s30, 0
      %p332 = por %p330, %p331
      %p333 = scmp.ne.s32.totalorder %s319, %s320
      %p334 = scmp.eq.s32.totalorder %s31, 1
      %p335 = por %p333, %p334
      %p337 = scmp.ne.s32.totalorder %s320, %s336
      %p338 = scmp.eq.s32.totalorder %s31, 0
      %p339 = por %p337, %p338
      %s340 = ssub.s32 %s25, %s32
      %p341 = scmp.eq.s32.totalorder %s340, 0
      %s343 = sadd.s32 %s342, 1
      %s344 = scalar_select %p341, %s342, %s343
      %p347 = pneg %p341
      %p348 = scmp.eq.s32.totalorder %s25, 1
      %p349 = por %p347, %p348
      %p350 = scmp.ne.s32.totalorder %s342, %s345
      %p351 = scmp.eq.s32.totalorder %s25, 0
      %p352 = por %p350, %p351
      %p353 = scmp.ne.s32.totalorder %s342, %s345
      %p354 = scmp.eq.s32.totalorder %s30, 1
      %p355 = por %p353, %p354
      %p356 = scmp.ne.s32.totalorder %s345, %s346
      %p357 = scmp.eq.s32.totalorder %s30, 0
      %p358 = por %p356, %p357
      %p359 = scmp.ne.s32.totalorder %s345, %s346
      %p360 = scmp.eq.s32.totalorder %s31, 1
      %p361 = por %p359, %p360
      %p363 = scmp.ne.s32.totalorder %s346, %s362
      %p364 = scmp.eq.s32.totalorder %s31, 0
      %p365 = por %p363, %p364
      %s367 = sadd.s32 %s366, 1
      %p370 = scmp.eq.s32.totalorder %s25, 1
      %p371 = scmp.ne.s32.totalorder %s366, %s368
      %p372 = scmp.eq.s32.totalorder %s25, 0
      %p373 = por %p371, %p372
      %p374 = scmp.ne.s32.totalorder %s366, %s368
      %p375 = scmp.eq.s32.totalorder %s30, 1
      %p376 = por %p374, %p375
      %p377 = scmp.ne.s32.totalorder %s368, %s369
      %p378 = scmp.eq.s32.totalorder %s30, 0
      %p379 = por %p377, %p378
      %p380 = scmp.ne.s32.totalorder %s368, %s369
      %p381 = scmp.eq.s32.totalorder %s31, 1
      %p382 = por %p380, %p381
      %p384 = scmp.ne.s32.totalorder %s369, %s383
      %p385 = scmp.eq.s32.totalorder %s31, 0
      %p386 = por %p384, %p385
      %s387 = ssub.s32 %s25, %s32
      %p388 = scmp.eq.s32.totalorder %s387, 0
      %s390 = sadd.s32 %s389, 1
      %s391 = scalar_select %p388, %s389, %s390
      %p394 = pneg %p388
      %p395 = scmp.eq.s32.totalorder %s25, 1
      %p396 = por %p394, %p395
      %p397 = scmp.ne.s32.totalorder %s389, %s392
      %p398 = scmp.eq.s32.totalorder %s25, 0
      %p399 = por %p397, %p398
      %p400 = scmp.ne.s32.totalorder %s389, %s392
      %p401 = scmp.eq.s32.totalorder %s30, 1
      %p402 = por %p400, %p401
      %p403 = scmp.ne.s32.totalorder %s392, %s393
      %p404 = scmp.eq.s32.totalorder %s30, 0
      %p405 = por %p403, %p404
      %p406 = scmp.ne.s32.totalorder %s392, %s393
      %p407 = scmp.eq.s32.totalorder %s31, 1
      %p408 = por %p406, %p407
      %p410 = scmp.ne.s32.totalorder %s393, %s409
      %p411 = scmp.eq.s32.totalorder %s31, 0
      %p412 = por %p410, %p411
      %p413 = scmp.le.s32.totalorder 1, %s25
      %p414 = scmp.lt.s32.totalorder %s25, 3
      %p415 = pnand %p413, %p414
      %p416 = pneg %p415
      // Predicated region
      $region9: #{tpu_custom_call.1} parent=5 // pred_check
        _
      $region10: #{tpu_custom_call.1} parent=5 // pred_check_branch
        %418 = sbr.rel (%p415) target = $region12
      $region11: #{tpu_custom_call.1} parent=5 // pred_region
        %s419 = ssub.s32 %s25, 1
        // Predicated region
        $region13: #{tpu_custom_call.1} parent=11 // pred_check
          %p420 = pneg %p46
        $region14: #{tpu_custom_call.1} parent=11 // pred_check_branch
          %422 = sbr.rel (%p420) target = $region16
        $region15: #{tpu_custom_call.1} parent=11 // pred_region
          _
        $region16: #{tpu_custom_call.1} parent=11 // pred_fallthru
          _
      $region12: #{tpu_custom_call.1} parent=5 // pred_fallthru
        _
      %p423 = scmp.lt.s32.totalorder %s25, 2
      // Predicated region
      $region17: #{tpu_custom_call.1} parent=5 // pred_check
        %p424 = pneg %p423
      $region18: #{tpu_custom_call.1} parent=5 // pred_check_branch
        %426 = sbr.rel (%p424) target = $region20
      $region19: #{tpu_custom_call.1} parent=5 // pred_region
        // Predicated region
        $region21: #{tpu_custom_call.1} parent=19 // pred_check
          %p427 = pneg %p66
        $region22: #{tpu_custom_call.1} parent=19 // pred_check_branch
          %429 = sbr.rel (%p427) target = $region24
        $region23: #{tpu_custom_call.1} parent=19 // pred_region
          %p430 = scmp.lt.s32.totalorder %s25, 1
          %s431 = scalar_select %p430, %s25, 1
          %s432 = scalar_lea.vmem %s1, %s431
        $region24: #{tpu_custom_call.1} parent=19 // pred_fallthru
          _
        // Predicated region
        $region25: #{tpu_custom_call.1} parent=19 // pred_check
          %p433 = pneg %p92
        $region26: #{tpu_custom_call.1} parent=19 // pred_check_branch
          %435 = sbr.rel (%p433) target = $region28
        $region27: #{tpu_custom_call.1} parent=19 // pred_region
          %p436 = scmp.lt.s32.totalorder %s25, 1
          %s437 = scalar_select %p436, %s25, 1
          %s438 = scalar_lea.vmem %s2, %s437
        $region28: #{tpu_custom_call.1} parent=19 // pred_fallthru
          _
        // Predicated region
        $region29: #{tpu_custom_call.1} parent=19 // pred_check
          %p439 = pneg %p118
        $region30: #{tpu_custom_call.1} parent=19 // pred_check_branch
          %441 = sbr.rel (%p439) target = $region32
        $region31: #{tpu_custom_call.1} parent=19 // pred_region
          %p442 = scmp.lt.s32.totalorder %s25, 1
          %s443 = scalar_select %p442, %s25, 1
          %s444 = smul.addr %s443, 4
          %s445 = smul.addr %s444, 4
          %s446 = scalar_lea.vmem %s3, %s445
        $region32: #{tpu_custom_call.1} parent=19 // pred_fallthru
          _
        // Predicated region
        $region33: #{tpu_custom_call.1} parent=19 // pred_check
          %p447 = pneg %p144
        $region34: #{tpu_custom_call.1} parent=19 // pred_check_branch
          %449 = sbr.rel (%p447) target = $region36
        $region35: #{tpu_custom_call.1} parent=19 // pred_region
          %p450 = scmp.lt.s32.totalorder %s25, 1
          %s451 = scalar_select %p450, %s25, 1
          %s452 = scalar_lea.vmem %s4, %s451
        $region36: #{tpu_custom_call.1} parent=19 // pred_fallthru
          _
        // Predicated region
        $region37: #{tpu_custom_call.1} parent=19 // pred_check
          %p453 = pneg %p170
        $region38: #{tpu_custom_call.1} parent=19 // pred_check_branch
          %455 = sbr.rel (%p453) target = $region40
        $region39: #{tpu_custom_call.1} parent=19 // pred_region
          %p456 = scmp.lt.s32.totalorder %s25, 1
          %s457 = scalar_select %p456, %s25, 1
          %s458 = smul.addr %s457, 4
          %s459 = smul.addr %s458, 4
          %s460 = scalar_lea.vmem %s5, %s459
        $region40: #{tpu_custom_call.1} parent=19 // pred_fallthru
          _
        // Predicated region
        $region41: #{tpu_custom_call.1} parent=19 // pred_check
          %p461 = pneg %p196
        $region42: #{tpu_custom_call.1} parent=19 // pred_check_branch
          %463 = sbr.rel (%p461) target = $region44
        $region43: #{tpu_custom_call.1} parent=19 // pred_region
          %p464 = scmp.lt.s32.totalorder %s25, 1
          %s465 = scalar_select %p464, %s25, 1
          %s466 = scalar_lea.vmem %s6, %s465
        $region44: #{tpu_custom_call.1} parent=19 // pred_fallthru
          _
        // Predicated region
        $region45: #{tpu_custom_call.1} parent=19 // pred_check
          %p467 = pneg %p222
        $region46: #{tpu_custom_call.1} parent=19 // pred_check_branch
          %469 = sbr.rel (%p467) target = $region48
        $region47: #{tpu_custom_call.1} parent=19 // pred_region
          %p470 = scmp.lt.s32.totalorder %s25, 1
          %s471 = scalar_select %p470, %s25, 1
          %s472 = scalar_lea.vmem %s7, %s471
        $region48: #{tpu_custom_call.1} parent=19 // pred_fallthru
          _
        // Predicated region
        $region49: #{tpu_custom_call.1} parent=19 // pred_check
          %p473 = pneg %p248
        $region50: #{tpu_custom_call.1} parent=19 // pred_check_branch
          %475 = sbr.rel (%p473) target = $region52
        $region51: #{tpu_custom_call.1} parent=19 // pred_region
          %p476 = scmp.lt.s32.totalorder %s25, 1
          %s477 = scalar_select %p476, %s25, 1
          %s478 = scalar_lea.vmem %s8, %s477
        $region52: #{tpu_custom_call.1} parent=19 // pred_fallthru
          _
        // Predicated region
        $region53: #{tpu_custom_call.1} parent=19 // pred_check
          %p479 = pneg %p274
        $region54: #{tpu_custom_call.1} parent=19 // pred_check_branch
          %481 = sbr.rel (%p479) target = $region56
        $region55: #{tpu_custom_call.1} parent=19 // pred_region
          %p482 = scmp.lt.s32.totalorder %s25, 1
          %s483 = scalar_select %p482, %s25, 1
          %s484 = smul.addr %s483, 4
          %s485 = smul.addr %s484, 4
          %s486 = scalar_lea.vmem %s9, %s485
        $region56: #{tpu_custom_call.1} parent=19 // pred_fallthru
          _
        // Predicated region
        $region57: #{tpu_custom_call.1} parent=19 // pred_check
          %p487 = pneg %p300
        $region58: #{tpu_custom_call.1} parent=19 // pred_check_branch
          %489 = sbr.rel (%p487) target = $region60
        $region59: #{tpu_custom_call.1} parent=19 // pred_region
          %p490 = scmp.lt.s32.totalorder %s25, 1
          %s491 = scalar_select %p490, %s25, 1
          %s492 = scalar_lea.vmem %s10, %s491
        $region60: #{tpu_custom_call.1} parent=19 // pred_fallthru
          _
        // Predicated region
        $region61: #{tpu_custom_call.1} parent=19 // pred_check
          %p493 = pneg %p326
        $region62: #{tpu_custom_call.1} parent=19 // pred_check_branch
          %495 = sbr.rel (%p493) target = $region64
        $region63: #{tpu_custom_call.1} parent=19 // pred_region
          %p496 = scmp.lt.s32.totalorder %s25, 1
          %s497 = scalar_select %p496, %s25, 1
          %s498 = smul.addr %s497, 16
          %s499 = smul.addr %s498, 4
          %s500 = scalar_lea.vmem %s11, %s499
        $region64: #{tpu_custom_call.1} parent=19 // pred_fallthru
          _
        // Predicated region
        $region65: #{tpu_custom_call.1} parent=19 // pred_check
          %p501 = pneg %p352
        $region66: #{tpu_custom_call.1} parent=19 // pred_check_branch
          %503 = sbr.rel (%p501) target = $region68
        $region67: #{tpu_custom_call.1} parent=19 // pred_region
          %p504 = scmp.lt.s32.totalorder %s25, 1
          %s505 = scalar_select %p504, %s25, 1
          %s506 = scalar_lea.vmem %s12, %s505
        $region68: #{tpu_custom_call.1} parent=19 // pred_fallthru
          _
      $region20: #{tpu_custom_call.1} parent=5 // pred_fallthru
        _
      %p507 = scmp.le.s32.totalorder 1, %s25
      %p508 = scmp.lt.s32.totalorder %s25, 3
      %p509 = pnand %p507, %p508
      %p510 = pneg %p509
      // Predicated region
      $region69: #{tpu_custom_call.1} parent=5 // pred_check
        _
      $region70: #{tpu_custom_call.1} parent=5 // pred_check_branch
        %512 = sbr.rel (%p509) target = $region72
      $region71: #{tpu_custom_call.1} parent=5 // pred_region
        %s513 = ssub.s32 %s25, 1
        %p514 = pneg %p46
        %p515 = pneg %p43
        %p516 = scmp.lt.s32.totalorder %s30, 1
        %s517 = scalar_select %p516, %s30, 1
        %s518 = scalar_lea.vmem %s1, %s517
        %p519 = pneg %p72
        %p520 = pneg %p69
        %p521 = scmp.lt.s32.totalorder %s30, 1
        %s522 = scalar_select %p521, %s30, 1
        %s523 = scalar_lea.vmem %s2, %s522
        %p524 = pneg %p98
        %p525 = pneg %p95
        %p526 = scmp.lt.s32.totalorder %s30, 1
        %s527 = scalar_select %p526, %s30, 1
        %s528 = smul.addr %s527, 4
        %s529 = smul.addr %s528, 4
        %s530 = scalar_lea.vmem %s3, %s529
        %p531 = pneg %p124
        %p532 = pneg %p121
        %p533 = scmp.lt.s32.totalorder %s30, 1
        %s534 = scalar_select %p533, %s30, 1
        %s535 = scalar_lea.vmem %s4, %s534
        %p536 = pneg %p150
        %p537 = pneg %p147
        %p538 = scmp.lt.s32.totalorder %s30, 1
        %s539 = scalar_select %p538, %s30, 1
        %s540 = smul.addr %s539, 4
        %s541 = smul.addr %s540, 4
        %s542 = scalar_lea.vmem %s5, %s541
        %p543 = pneg %p176
        %p544 = pneg %p173
        %p545 = scmp.lt.s32.totalorder %s30, 1
        %s546 = scalar_select %p545, %s30, 1
        %s547 = scalar_lea.vmem %s6, %s546
        %p548 = pneg %p202
        %p549 = pneg %p199
        %p550 = scmp.lt.s32.totalorder %s30, 1
        %s551 = scalar_select %p550, %s30, 1
        %s552 = scalar_lea.vmem %s7, %s551
        %p553 = pneg %p228
        %p554 = pneg %p225
        %p555 = scmp.lt.s32.totalorder %s30, 1
        %s556 = scalar_select %p555, %s30, 1
        %s557 = scalar_lea.vmem %s8, %s556
        %p558 = pneg %p254
        %p559 = pneg %p251
        %p560 = scmp.lt.s32.totalorder %s30, 1
        %s561 = scalar_select %p560, %s30, 1
        %s562 = smul.addr %s561, 4
        %s563 = smul.addr %s562, 4
        %s564 = scalar_lea.vmem %s9, %s563
        %p565 = pneg %p280
        %p566 = pneg %p277
        %p567 = scmp.lt.s32.totalorder %s30, 1
        %s568 = scalar_select %p567, %s30, 1
        %s569 = scalar_lea.vmem %s10, %s568
        %p570 = pneg %p306
        %p571 = pneg %p303
        %p572 = scmp.lt.s32.totalorder %s30, 1
        %s573 = scalar_select %p572, %s30, 1
        %s574 = smul.addr %s573, 16
        %s575 = smul.addr %s574, 4
        %s576 = scalar_lea.vmem %s11, %s575
        %p577 = pneg %p332
        %p578 = pneg %p329
        %p579 = scmp.lt.s32.totalorder %s30, 1
        %s580 = scalar_select %p579, %s30, 1
        %s581 = scalar_lea.vmem %s12, %s580
        %p582 = pneg %p358
        %p583 = pneg %p355
        %p584 = pneg %p379
        %p585 = pneg %p376
        %p586 = pneg %p405
        %p587 = pneg %p402
        %s588 = sand.u32 %s392, 1
        %s589 = scalar_lea.sflag [#allocation6], %s588
        %s590 = sand.u32 %s392, 1
        %s591 = smul.addr %s590, 16
        %s592 = scalar_lea.vmem [#allocation5], %s591
        %p593 = scmp.lt.s32.totalorder %s30, 1
        %s594 = scalar_select %p593, %s30, 1
        %s595 = scalar_lea.vmem %s1, %s594
        %p596 = scmp.lt.s32.totalorder %s30, 1
        %s597 = scalar_select %p596, %s30, 1
        %s598 = scalar_lea.vmem %s2, %s597
        %p599 = scmp.lt.s32.totalorder %s30, 1
        %s600 = scalar_select %p599, %s30, 1
        %s601 = smul.addr %s600, 4
        %s602 = smul.addr %s601, 4
        %s603 = scalar_lea.vmem %s3, %s602
        %p604 = scmp.lt.s32.totalorder %s30, 1
        %s605 = scalar_select %p604, %s30, 1
        %s606 = scalar_lea.vmem %s4, %s605
        %p607 = scmp.lt.s32.totalorder %s30, 1
        %s608 = scalar_select %p607, %s30, 1
        %s609 = smul.addr %s608, 4
        %s610 = smul.addr %s609, 4
        %s611 = scalar_lea.vmem %s5, %s610
        %p612 = scmp.lt.s32.totalorder %s30, 1
        %s613 = scalar_select %p612, %s30, 1
        %s614 = scalar_lea.vmem %s6, %s613
        %p615 = scmp.lt.s32.totalorder %s30, 1
        %s616 = scalar_select %p615, %s30, 1
        %s617 = scalar_lea.vmem %s7, %s616
        %p618 = scmp.lt.s32.totalorder %s30, 1
        %s619 = scalar_select %p618, %s30, 1
        %s620 = scalar_lea.vmem %s8, %s619
        %p621 = scmp.lt.s32.totalorder %s30, 1
        %s622 = scalar_select %p621, %s30, 1
        %s623 = smul.addr %s622, 4
        %s624 = smul.addr %s623, 4
        %s625 = scalar_lea.vmem %s9, %s624
        %p626 = scmp.lt.s32.totalorder %s30, 1
        %s627 = scalar_select %p626, %s30, 1
        %s628 = scalar_lea.vmem %s10, %s627
        %p629 = scmp.lt.s32.totalorder %s30, 1
        %s630 = scalar_select %p629, %s30, 1
        %s631 = smul.addr %s630, 16
        %s632 = smul.addr %s631, 4
        %s633 = scalar_lea.vmem %s11, %s632
        %p634 = scmp.lt.s32.totalorder %s30, 1
        %s635 = scalar_select %p634, %s30, 1
        %s636 = scalar_lea.vmem %s12, %s635
        %p638 = scmp.eq.s32.totalorder %s30, 0
        // Predicated region
        $region73: #{tpu_custom_call.1} parent=71 // pred_check
          %p639 = pneg %p638
        $region74: #{tpu_custom_call.1} parent=71 // pred_check_branch
          %641 = sbr.rel (%p639) target = $region76
        $region75: #{tpu_custom_call.1} parent=71 // pred_region
          %v642 = vld [vmem:[%s0] sm:$0xff]
          %v643 = vld [vmem:[%s0 + $0x8] sm:$0xff]
          %vm644 = vcmask 261120
          %645 = vst.msk [vmem:[#allocation2] sm:$0xff] %vm644, %v642
          %646 = vst.msk [vmem:[#allocation2 + $0x8] sm:$0xff] %vm644, %v643
        $region76: #{tpu_custom_call.1} parent=71 // pred_fallthru
          _
        %v647 = vld [vmem:[#allocation2] sm:$0xff]
        %v648 = vld [vmem:[#allocation2 + $0x8] sm:$0xff]
        %v649 = vld [vmem:[%s595] sm:$0x1]
        %v650 = vld [vmem:[%s598] sm:$0x1]
        %vm651 = vcmask 261120
        %v652 = vsel %vm651, %v647, 0.0
        %653 = vadd.xlane.f32.xlu0 %v652
        %v654 = vpop.xlane.xlu0 %653
        %v655 = vsel %vm651, %v648, 0.0
        %656 = vadd.xlane.f32.xlu0 %v655
        %v657 = vpop.xlane.xlu0 %656
        %v658 = vrcp.pop 32.0
        %v659 = vmul.f32 %v654, %v658
        %v660 = vmul.f32 %v657, %v658
        %v661 = vsub.f32 %v647, %v659
        %v662 = vsub.f32 %v648, %v660
        %v663 = vmul.f32 %v661, %v661
        %v664 = vmul.f32 %v662, %v662
        %v665 = vsel %vm651, %v663, 0.0
        %666 = vadd.xlane.f32.xlu0 %v665
        %v667 = vpop.xlane.xlu0 %666
        %v668 = vsel %vm651, %v664, 0.0
        %669 = vadd.xlane.f32.xlu0 %v668
        %v670 = vpop.xlane.xlu0 %669
        %v671 = vmul.f32 %v667, %v658
        %v672 = vmul.f32 %v670, %v658
        %v673 = vadd.f32 %v671, 1e-05
        %v674 = vadd.f32 %v672, 1e-05
        %v675 = vrsqrt.pop %v673
        %v676 = vrsqrt.pop %v674
        %v677 = vmul.f32 %v661, %v675
        %v678 = vmul.f32 %v662, %v676
        %v680 = vlaneseq
        %v681 = vshrl.u32 %v680, 7
        %v682 = vsub.s32 0, %v681
        %v683 = vrot.slane %v649, %v682
        %v685 = vmul.f32 %v677, %v683
        %v686 = vmul.f32 %v678, %v683
        %v688 = vlaneseq
        %v689 = vshrl.u32 %v688, 7
        %v690 = vsub.s32 0, %v689
        %v691 = vrot.slane %v650, %v690
        %v693 = vadd.f32 %v685, %v691
        %v694 = vadd.f32 %v686, %v691
        %v695 = vpack.c.bf16 %v694, %v693
        %v696 = vld [vmem:[%s603] sm:$0xf]
        %v697 = vld [vmem:[%s603 + $0x4] sm:$0xf]
        %v698 = vld [vmem:[%s603 + $0x8] sm:$0xf]
        %v699 = vld [vmem:[%s603 + $0xc] sm:$0xf]
        %v700 = vld [vmem:[%s606] sm:$0x1]
        %v702 = vlaneseq
        %v703 = vshrl.u32 %v702, 7
        %v704 = vsub.s32 0, %v703
        %v705 = vrot.slane %v700, %v704
        %v711 = vunpack.c.l.b16 %v696
        %v712 = vunpack.c.l.b16 %v697
        %v713 = vunpack.c.l.b16 %v698
        %v714 = vunpack.c.l.b16 %v699
        %v715 = vpack.c.b16 %v712, %v711
        %v716 = vpack.c.b16 %v714, %v713
        %v720 = vsel %vm651, %v695, 0
        %722 = vmatprep.subr.bf16.mxu0 0
        %723 = vmatpush1.bf16.msra.mxu0 0
        %724 = vmatprep.subr.bf16.mxu0 0
        %725 = vmatpush1.bf16.msra.mxu0 0
        %726 = vmatprep.subr.bf16.mxu0 0
        %727 = vmatpush1.bf16.msra.mxu0 0
        %728 = vmatprep.subr.bf16.mxu0 0
        %729 = vmatpush1.bf16.msra.mxu0 0
        %730 = vmatprep.subr.bf16.mxu0 0
        %731 = vmatpush1.bf16.msra.mxu0 0
        %732 = vmatprep.subr.bf16.mxu0 0
        %733 = vmatpush1.bf16.msra.mxu0 0
        %734 = vmatprep.subr.bf16.mxu0 0
        %735 = vmatpush1.bf16.msra.mxu0 %v716
        %736 = vmatprep.subr.bf16.mxu0 0
        %737 = vmatpush1.bf16.msra.mxu0 %v715
        %738 = vmatprep.subr.bf16.mxu0 0
        %739 = vmatpush2.bf16.msra.mxu0 0
        %740 = vmatprep.subr.bf16.mxu0 0
        %741 = vmatpush2.bf16.msra.mxu0 0
        %742 = vmatprep.subr.bf16.mxu0 0
        %743 = vmatpush2.bf16.msra.mxu0 0
        %744 = vmatprep.subr.bf16.mxu0 0
        %745 = vmatpush2.bf16.msra.mxu0 0
        %746 = vmatprep.subr.bf16.mxu0 0
        %747 = vmatpush2.bf16.msra.mxu0 0
        %748 = vmatprep.subr.bf16.mxu0 0
        %749 = vmatpush2.bf16.msra.mxu0 0
        %750 = vmatprep.subr.bf16.mxu0 0
        %751 = vmatpush2.bf16.msra.mxu0 0
        %752 = vmatprep.subr.bf16.mxu0 0
        %753 = vmatpush2.bf16.msra.mxu0 0
        %754 = vmatprep.mubr.bf16.mxu0 0
        %755 = vmatmul.mubr.bf16.gmra.mxu0 %v720
        %v756 = vpop.f32.mrf.mxu0
        %v757 = vadd.f32 %v705, %v756
        %v758 = vpop.f32.mrf.mxu0
        %v759 = vpop.f32.mrf.mxu0
        %v760 = vadd.f32 %v705, %v759
        %v761 = vpop.f32.mrf.mxu0
        %762 = vdwg.mxu0
        %765 = vrot.lane.b32.xlu0 %v757, 120
        %v766 = vpop.permute.xlu0 %765
        %767 = vrot.lane.b32.xlu0 %v760, 120
        %v768 = vpop.permute.xlu0 %767
        %771 = vrot.lane.b32.xlu0 %v757, 112
        %v772 = vpop.permute.xlu0 %771
        %773 = vrot.lane.b32.xlu0 %v760, 112
        %v774 = vpop.permute.xlu0 %773
        %777 = vrot.lane.b32.xlu0 %v757, 104
        %v778 = vpop.permute.xlu0 %777
        %779 = vrot.lane.b32.xlu0 %v760, 104
        %v780 = vpop.permute.xlu0 %779
        %783 = vrot.lane.b32.xlu0 %v757, 96
        %v784 = vpop.permute.xlu0 %783
        %785 = vrot.lane.b32.xlu0 %v760, 96
        %v786 = vpop.permute.xlu0 %785
        %789 = vrot.lane.b32.xlu0 %v757, 88
        %v790 = vpop.permute.xlu0 %789
        %791 = vrot.lane.b32.xlu0 %v760, 88
        %v792 = vpop.permute.xlu0 %791
        %795 = vrot.lane.b32.xlu0 %v757, 80
        %v796 = vpop.permute.xlu0 %795
        %797 = vrot.lane.b32.xlu0 %v760, 80
        %v798 = vpop.permute.xlu0 %797
        %801 = vrot.lane.b32.xlu0 %v757, 72
        %v802 = vpop.permute.xlu0 %801
        %803 = vrot.lane.b32.xlu0 %v760, 72
        %v804 = vpop.permute.xlu0 %803
        %807 = vrot.lane.b32.xlu0 %v757, 64
        %v808 = vpop.permute.xlu0 %807
        %809 = vrot.lane.b32.xlu0 %v760, 64
        %v810 = vpop.permute.xlu0 %809
        %813 = vrot.lane.b32.xlu0 %v757, 56
        %v814 = vpop.permute.xlu0 %813
        %815 = vrot.lane.b32.xlu0 %v760, 56
        %v816 = vpop.permute.xlu0 %815
        %819 = vrot.lane.b32.xlu0 %v757, 48
        %v820 = vpop.permute.xlu0 %819
        %821 = vrot.lane.b32.xlu0 %v760, 48
        %v822 = vpop.permute.xlu0 %821
        %825 = vrot.lane.b32.xlu0 %v757, 40
        %v826 = vpop.permute.xlu0 %825
        %827 = vrot.lane.b32.xlu0 %v760, 40
        %v828 = vpop.permute.xlu0 %827
        %v831 = vcombine.low %v757, %v772
        %v832 = vcombine.high %v757, %v772
        %v834 = vunpack.c.l.s4 1983009808
        %v835 = vunpack.c.0.s8 %v834
        %v836 = vlaneseq
        %v837 = vshrl.u32 %v836, 7
        %v838 = vsub.s32 %v835, %v837
        %v839 = vrot.slane %v831, %v838
        %v841 = vunpack.c.l.s4 1983009808
        %v842 = vunpack.c.0.s8 %v841
        %v843 = vlaneseq
        %v844 = vshrl.u32 %v843, 7
        %v845 = vsub.s32 %v842, %v844
        %v846 = vrot.slane %v832, %v845
        %v847 = vcombine.low %v766, %v778
        %v848 = vcombine.high %v766, %v778
        %v850 = vunpack.c.l.s4 1983009808
        %v851 = vunpack.c.0.s8 %v850
        %v852 = vlaneseq
        %v853 = vshrl.u32 %v852, 7
        %v854 = vsub.s32 %v851, %v853
        %v855 = vrot.slane %v847, %v854
        %v857 = vunpack.c.l.s4 1983009808
        %v858 = vunpack.c.0.s8 %v857
        %v859 = vlaneseq
        %v860 = vshrl.u32 %v859, 7
        %v861 = vsub.s32 %v858, %v860
        %v862 = vrot.slane %v848, %v861
        %v863 = vcombine.low %v784, %v796
        %v864 = vcombine.high %v784, %v796
        %v866 = vunpack.c.l.s4 1983009808
        %v867 = vunpack.c.0.s8 %v866
        %v868 = vlaneseq
        %v869 = vshrl.u32 %v868, 7
        %v870 = vsub.s32 %v867, %v869
        %v871 = vrot.slane %v863, %v870
        %v873 = vunpack.c.l.s4 1983009808
        %v874 = vunpack.c.0.s8 %v873
        %v875 = vlaneseq
        %v876 = vshrl.u32 %v875, 7
        %v877 = vsub.s32 %v874, %v876
        %v878 = vrot.slane %v864, %v877
        %v879 = vcombine.low %v790, %v802
        %v880 = vcombine.high %v790, %v802
        %v882 = vunpack.c.l.s4 1983009808
        %v883 = vunpack.c.0.s8 %v882
        %v884 = vlaneseq
        %v885 = vshrl.u32 %v884, 7
        %v886 = vsub.s32 %v883, %v885
        %v887 = vrot.slane %v879, %v886
        %v889 = vunpack.c.l.s4 1983009808
        %v890 = vunpack.c.0.s8 %v889
        %v891 = vlaneseq
        %v892 = vshrl.u32 %v891, 7
        %v893 = vsub.s32 %v890, %v892
        %v894 = vrot.slane %v880, %v893
        %v895 = vcombine.low %v839, %v855
        %v896 = vcombine.high %v839, %v855
        %v898 = vunpack.c.l.s4 1934713408
        %v899 = vunpack.c.0.s8 %v898
        %v900 = vlaneseq
        %v901 = vshrl.u32 %v900, 7
        %v902 = vsub.s32 %v899, %v901
        %v903 = vrot.slane %v895, %v902
        %v905 = vunpack.c.l.s4 1934713408
        %v906 = vunpack.c.0.s8 %v905
        %v907 = vlaneseq
        %v908 = vshrl.u32 %v907, 7
        %v909 = vsub.s32 %v906, %v908
        %v910 = vrot.slane %v896, %v909
        %v911 = vcombine.low %v846, %v862
        %v912 = vcombine.high %v846, %v862
        %v914 = vunpack.c.l.s4 1934713408
        %v915 = vunpack.c.0.s8 %v914
        %v916 = vlaneseq
        %v917 = vshrl.u32 %v916, 7
        %v918 = vsub.s32 %v915, %v917
        %v919 = vrot.slane %v911, %v918
        %v921 = vunpack.c.l.s4 1934713408
        %v922 = vunpack.c.0.s8 %v921
        %v923 = vlaneseq
        %v924 = vshrl.u32 %v923, 7
        %v925 = vsub.s32 %v922, %v924
        %v926 = vrot.slane %v912, %v925
        %v927 = vcombine.low %v871, %v887
        %v928 = vcombine.high %v871, %v887
        %v930 = vunpack.c.l.s4 1934713408
        %v931 = vunpack.c.0.s8 %v930
        %v932 = vlaneseq
        %v933 = vshrl.u32 %v932, 7
        %v934 = vsub.s32 %v931, %v933
        %v935 = vrot.slane %v927, %v934
        %v937 = vunpack.c.l.s4 1934713408
        %v938 = vunpack.c.0.s8 %v937
        %v939 = vlaneseq
        %v940 = vshrl.u32 %v939, 7
        %v941 = vsub.s32 %v938, %v940
        %v942 = vrot.slane %v928, %v941
        %v943 = vcombine.low %v878, %v894
        %v944 = vcombine.high %v878, %v894
        %v946 = vunpack.c.l.s4 1934713408
        %v947 = vunpack.c.0.s8 %v946
        %v948 = vlaneseq
        %v949 = vshrl.u32 %v948, 7
        %v950 = vsub.s32 %v947, %v949
        %v951 = vrot.slane %v943, %v950
        %v953 = vunpack.c.l.s4 1934713408
        %v954 = vunpack.c.0.s8 %v953
        %v955 = vlaneseq
        %v956 = vshrl.u32 %v955, 7
        %v957 = vsub.s32 %v954, %v956
        %v958 = vrot.slane %v944, %v957
        %v959 = vcombine.low %v903, %v935
        %v960 = vcombine.high %v903, %v935
        %v961 = vcombine.low %v910, %v942
        %v962 = vcombine.high %v910, %v942
        %v963 = vcombine.low %v919, %v951
        %v964 = vcombine.high %v919, %v951
        %v965 = vcombine.low %v926, %v958
        %v966 = vcombine.high %v926, %v958
        %v967 = vcombine.low %v808, %v820
        %v968 = vcombine.high %v808, %v820
        %v970 = vunpack.c.l.s4 1983009808
        %v971 = vunpack.c.0.s8 %v970
        %v972 = vlaneseq
        %v973 = vshrl.u32 %v972, 7
        %v974 = vsub.s32 %v971, %v973
        %v975 = vrot.slane %v967, %v974
        %v977 = vunpack.c.l.s4 1983009808
        %v978 = vunpack.c.0.s8 %v977
        %v979 = vlaneseq
        %v980 = vshrl.u32 %v979, 7
        %v981 = vsub.s32 %v978, %v980
        %v982 = vrot.slane %v968, %v981
        %v983 = vcombine.low %v814, %v826
        %v984 = vcombine.high %v814, %v826
        %v986 = vunpack.c.l.s4 1983009808
        %v987 = vunpack.c.0.s8 %v986
        %v988 = vlaneseq
        %v989 = vshrl.u32 %v988, 7
        %v990 = vsub.s32 %v987, %v989
        %v991 = vrot.slane %v983, %v990
        %v993 = vunpack.c.l.s4 1983009808
        %v994 = vunpack.c.0.s8 %v993
        %v995 = vlaneseq
        %v996 = vshrl.u32 %v995, 7
        %v997 = vsub.s32 %v994, %v996
        %v998 = vrot.slane %v984, %v997
        %v999 = vcombine.low %v975, %v991
        %v1000 = vcombine.high %v975, %v991
        %v1002 = vunpack.c.l.s4 1934713408
        %v1003 = vunpack.c.0.s8 %v1002
        %v1004 = vlaneseq
        %v1005 = vshrl.u32 %v1004, 7
        %v1006 = vsub.s32 %v1003, %v1005
        %v1007 = vrot.slane %v999, %v1006
        %v1009 = vunpack.c.l.s4 1934713408
        %v1010 = vunpack.c.0.s8 %v1009
        %v1011 = vlaneseq
        %v1012 = vshrl.u32 %v1011, 7
        %v1013 = vsub.s32 %v1010, %v1012
        %v1014 = vrot.slane %v1000, %v1013
        %v1015 = vcombine.low %v982, %v998
        %v1016 = vcombine.high %v982, %v998
        %v1018 = vunpack.c.l.s4 1934713408
        %v1019 = vunpack.c.0.s8 %v1018
        %v1020 = vlaneseq
        %v1021 = vshrl.u32 %v1020, 7
        %v1022 = vsub.s32 %v1019, %v1021
        %v1023 = vrot.slane %v1015, %v1022
        %v1025 = vunpack.c.l.s4 1934713408
        %v1026 = vunpack.c.0.s8 %v1025
        %v1027 = vlaneseq
        %v1028 = vshrl.u32 %v1027, 7
        %v1029 = vsub.s32 %v1026, %v1028
        %v1030 = vrot.slane %v1016, %v1029
        %v1031 = vcombine.high %v1007, 0.0
        %v1032 = vcombine.high %v1014, 0.0
        %v1033 = vcombine.high %v1023, 0.0
        %v1034 = vcombine.high %v1030, 0.0
        %v1035 = vcombine.low %v760, %v774
        %v1036 = vcombine.high %v760, %v774
        %v1038 = vunpack.c.l.s4 1983009808
        %v1039 = vunpack.c.0.s8 %v1038
        %v1040 = vlaneseq
        %v1041 = vshrl.u32 %v1040, 7
        %v1042 = vsub.s32 %v1039, %v1041
        %v1043 = vrot.slane %v1035, %v1042
        %v1045 = vunpack.c.l.s4 1983009808
        %v1046 = vunpack.c.0.s8 %v1045
        %v1047 = vlaneseq
        %v1048 = vshrl.u32 %v1047, 7
        %v1049 = vsub.s32 %v1046, %v1048
        %v1050 = vrot.slane %v1036, %v1049
        %v1051 = vcombine.low %v768, %v780
        %v1052 = vcombine.high %v768, %v780
        %v1054 = vunpack.c.l.s4 1983009808
        %v1055 = vunpack.c.0.s8 %v1054
        %v1056 = vlaneseq
        %v1057 = vshrl.u32 %v1056, 7
        %v1058 = vsub.s32 %v1055, %v1057
        %v1059 = vrot.slane %v1051, %v1058
        %v1061 = vunpack.c.l.s4 1983009808
        %v1062 = vunpack.c.0.s8 %v1061
        %v1063 = vlaneseq
        %v1064 = vshrl.u32 %v1063, 7
        %v1065 = vsub.s32 %v1062, %v1064
        %v1066 = vrot.slane %v1052, %v1065
        %v1067 = vcombine.low %v786, %v798
        %v1068 = vcombine.high %v786, %v798
        %v1070 = vunpack.c.l.s4 1983009808
        %v1071 = vunpack.c.0.s8 %v1070
        %v1072 = vlaneseq
        %v1073 = vshrl.u32 %v1072, 7
        %v1074 = vsub.s32 %v1071, %v1073
        %v1075 = vrot.slane %v1067, %v1074
        %v1077 = vunpack.c.l.s4 1983009808
        %v1078 = vunpack.c.0.s8 %v1077
        %v1079 = vlaneseq
        %v1080 = vshrl.u32 %v1079, 7
        %v1081 = vsub.s32 %v1078, %v1080
        %v1082 = vrot.slane %v1068, %v1081
        %v1083 = vcombine.low %v792, %v804
        %v1084 = vcombine.high %v792, %v804
        %v1086 = vunpack.c.l.s4 1983009808
        %v1087 = vunpack.c.0.s8 %v1086
        %v1088 = vlaneseq
        %v1089 = vshrl.u32 %v1088, 7
        %v1090 = vsub.s32 %v1087, %v1089
        %v1091 = vrot.slane %v1083, %v1090
        %v1093 = vunpack.c.l.s4 1983009808
        %v1094 = vunpack.c.0.s8 %v1093
        %v1095 = vlaneseq
        %v1096 = vshrl.u32 %v1095, 7
        %v1097 = vsub.s32 %v1094, %v1096
        %v1098 = vrot.slane %v1084, %v1097
        %v1099 = vcombine.low %v1043, %v1059
        %v1100 = vcombine.high %v1043, %v1059
        %v1102 = vunpack.c.l.s4 1934713408
        %v1103 = vunpack.c.0.s8 %v1102
        %v1104 = vlaneseq
        %v1105 = vshrl.u32 %v1104, 7
        %v1106 = vsub.s32 %v1103, %v1105
        %v1107 = vrot.slane %v1099, %v1106
        %v1109 = vunpack.c.l.s4 1934713408
        %v1110 = vunpack.c.0.s8 %v1109
        %v1111 = vlaneseq
        %v1112 = vshrl.u32 %v1111, 7
        %v1113 = vsub.s32 %v1110, %v1112
        %v1114 = vrot.slane %v1100, %v1113
        %v1115 = vcombine.low %v1050, %v1066
        %v1116 = vcombine.high %v1050, %v1066
        %v1118 = vunpack.c.l.s4 1934713408
        %v1119 = vunpack.c.0.s8 %v1118
        %v1120 = vlaneseq
        %v1121 = vshrl.u32 %v1120, 7
        %v1122 = vsub.s32 %v1119, %v1121
        %v1123 = vrot.slane %v1115, %v1122
        %v1125 = vunpack.c.l.s4 1934713408
        %v1126 = vunpack.c.0.s8 %v1125
        %v1127 = vlaneseq
        %v1128 = vshrl.u32 %v1127, 7
        %v1129 = vsub.s32 %v1126, %v1128
        %v1130 = vrot.slane %v1116, %v1129
        %v1131 = vcombine.low %v1075, %v1091
        %v1132 = vcombine.high %v1075, %v1091
        %v1134 = vunpack.c.l.s4 1934713408
        %v1135 = vunpack.c.0.s8 %v1134
        %v1136 = vlaneseq
        %v1137 = vshrl.u32 %v1136, 7
        %v1138 = vsub.s32 %v1135, %v1137
        %v1139 = vrot.slane %v1131, %v1138
        %v1141 = vunpack.c.l.s4 1934713408
        %v1142 = vunpack.c.0.s8 %v1141
        %v1143 = vlaneseq
        %v1144 = vshrl.u32 %v1143, 7
        %v1145 = vsub.s32 %v1142, %v1144
        %v1146 = vrot.slane %v1132, %v1145
        %v1147 = vcombine.low %v1082, %v1098
        %v1148 = vcombine.high %v1082, %v1098
        %v1150 = vunpack.c.l.s4 1934713408
        %v1151 = vunpack.c.0.s8 %v1150
        %v1152 = vlaneseq
        %v1153 = vshrl.u32 %v1152, 7
        %v1154 = vsub.s32 %v1151, %v1153
        %v1155 = vrot.slane %v1147, %v1154
        %v1157 = vunpack.c.l.s4 1934713408
        %v1158 = vunpack.c.0.s8 %v1157
        %v1159 = vlaneseq
        %v1160 = vshrl.u32 %v1159, 7
        %v1161 = vsub.s32 %v1158, %v1160
        %v1162 = vrot.slane %v1148, %v1161
        %v1163 = vcombine.low %v1107, %v1139
        %v1164 = vcombine.high %v1107, %v1139
        %v1165 = vcombine.low %v1114, %v1146
        %v1166 = vcombine.high %v1114, %v1146
        %v1167 = vcombine.low %v1123, %v1155
        %v1168 = vcombine.high %v1123, %v1155
        %v1169 = vcombine.low %v1130, %v1162
        %v1170 = vcombine.high %v1130, %v1162
        %v1171 = vcombine.low %v810, %v822
        %v1172 = vcombine.high %v810, %v822
        %v1174 = vunpack.c.l.s4 1983009808
        %v1175 = vunpack.c.0.s8 %v1174
        %v1176 = vlaneseq
        %v1177 = vshrl.u32 %v1176, 7
        %v1178 = vsub.s32 %v1175, %v1177
        %v1179 = vrot.slane %v1171, %v1178
        %v1181 = vunpack.c.l.s4 1983009808
        %v1182 = vunpack.c.0.s8 %v1181
        %v1183 = vlaneseq
        %v1184 = vshrl.u32 %v1183, 7
        %v1185 = vsub.s32 %v1182, %v1184
        %v1186 = vrot.slane %v1172, %v1185
        %v1187 = vcombine.low %v816, %v828
        %v1188 = vcombine.high %v816, %v828
        %v1190 = vunpack.c.l.s4 1983009808
        %v1191 = vunpack.c.0.s8 %v1190
        %v1192 = vlaneseq
        %v1193 = vshrl.u32 %v1192, 7
        %v1194 = vsub.s32 %v1191, %v1193
        %v1195 = vrot.slane %v1187, %v1194
        %v1197 = vunpack.c.l.s4 1983009808
        %v1198 = vunpack.c.0.s8 %v1197
        %v1199 = vlaneseq
        %v1200 = vshrl.u32 %v1199, 7
        %v1201 = vsub.s32 %v1198, %v1200
        %v1202 = vrot.slane %v1188, %v1201
        %v1203 = vcombine.low %v1179, %v1195
        %v1204 = vcombine.high %v1179, %v1195
        %v1206 = vunpack.c.l.s4 1934713408
        %v1207 = vunpack.c.0.s8 %v1206
        %v1208 = vlaneseq
        %v1209 = vshrl.u32 %v1208, 7
        %v1210 = vsub.s32 %v1207, %v1209
        %v1211 = vrot.slane %v1203, %v1210
        %v1213 = vunpack.c.l.s4 1934713408
        %v1214 = vunpack.c.0.s8 %v1213
        %v1215 = vlaneseq
        %v1216 = vshrl.u32 %v1215, 7
        %v1217 = vsub.s32 %v1214, %v1216
        %v1218 = vrot.slane %v1204, %v1217
        %v1219 = vcombine.low %v1186, %v1202
        %v1220 = vcombine.high %v1186, %v1202
        %v1222 = vunpack.c.l.s4 1934713408
        %v1223 = vunpack.c.0.s8 %v1222
        %v1224 = vlaneseq
        %v1225 = vshrl.u32 %v1224, 7
        %v1226 = vsub.s32 %v1223, %v1225
        %v1227 = vrot.slane %v1219, %v1226
        %v1229 = vunpack.c.l.s4 1934713408
        %v1230 = vunpack.c.0.s8 %v1229
        %v1231 = vlaneseq
        %v1232 = vshrl.u32 %v1231, 7
        %v1233 = vsub.s32 %v1230, %v1232
        %v1234 = vrot.slane %v1220, %v1233
        %v1235 = vcombine.high %v1211, 0.0
        %v1236 = vcombine.high %v1218, 0.0
        %v1237 = vcombine.high %v1227, 0.0
        %v1238 = vcombine.high %v1234, 0.0
        %v1239 = vcombine.low %v959, %v961
        %v1240 = vcombine.high %v959, %v961
        %v1242 = vunpack.c.l.s4 1983009808
        %v1243 = vunpack.c.0.s8 %v1242
        %v1244 = vlaneseq
        %v1245 = vshrl.u32 %v1244, 7
        %v1246 = vsub.s32 %v1243, %v1245
        %v1247 = vrot.slane %v1239, %v1246
        %v1249 = vunpack.c.l.s4 1983009808
        %v1250 = vunpack.c.0.s8 %v1249
        %v1251 = vlaneseq
        %v1252 = vshrl.u32 %v1251, 7
        %v1253 = vsub.s32 %v1250, %v1252
        %v1254 = vrot.slane %v1240, %v1253
        %v1255 = vcombine.low %v960, %v962
        %v1256 = vcombine.high %v960, %v962
        %v1258 = vunpack.c.l.s4 1983009808
        %v1259 = vunpack.c.0.s8 %v1258
        %v1260 = vlaneseq
        %v1261 = vshrl.u32 %v1260, 7
        %v1262 = vsub.s32 %v1259, %v1261
        %v1263 = vrot.slane %v1255, %v1262
        %v1265 = vunpack.c.l.s4 1983009808
        %v1266 = vunpack.c.0.s8 %v1265
        %v1267 = vlaneseq
        %v1268 = vshrl.u32 %v1267, 7
        %v1269 = vsub.s32 %v1266, %v1268
        %v1270 = vrot.slane %v1256, %v1269
        %v1271 = vcombine.low %v963, %v965
        %v1272 = vcombine.high %v963, %v965
        %v1274 = vunpack.c.l.s4 1983009808
        %v1275 = vunpack.c.0.s8 %v1274
        %v1276 = vlaneseq
        %v1277 = vshrl.u32 %v1276, 7
        %v1278 = vsub.s32 %v1275, %v1277
        %v1279 = vrot.slane %v1271, %v1278
        %v1281 = vunpack.c.l.s4 1983009808
        %v1282 = vunpack.c.0.s8 %v1281
        %v1283 = vlaneseq
        %v1284 = vshrl.u32 %v1283, 7
        %v1285 = vsub.s32 %v1282, %v1284
        %v1286 = vrot.slane %v1272, %v1285
        %v1287 = vcombine.low %v964, %v966
        %v1288 = vcombine.high %v964, %v966
        %v1290 = vunpack.c.l.s4 1983009808
        %v1291 = vunpack.c.0.s8 %v1290
        %v1292 = vlaneseq
        %v1293 = vshrl.u32 %v1292, 7
        %v1294 = vsub.s32 %v1291, %v1293
        %v1295 = vrot.slane %v1287, %v1294
        %v1297 = vunpack.c.l.s4 1983009808
        %v1298 = vunpack.c.0.s8 %v1297
        %v1299 = vlaneseq
        %v1300 = vshrl.u32 %v1299, 7
        %v1301 = vsub.s32 %v1298, %v1300
        %v1302 = vrot.slane %v1288, %v1301
        %v1303 = vcombine.low %v1247, %v1263
        %v1304 = vcombine.high %v1247, %v1263
        %v1306 = vunpack.c.l.s4 1934713408
        %v1307 = vunpack.c.0.s8 %v1306
        %v1308 = vlaneseq
        %v1309 = vshrl.u32 %v1308, 7
        %v1310 = vsub.s32 %v1307, %v1309
        %v1311 = vrot.slane %v1303, %v1310
        %v1313 = vunpack.c.l.s4 1934713408
        %v1314 = vunpack.c.0.s8 %v1313
        %v1315 = vlaneseq
        %v1316 = vshrl.u32 %v1315, 7
        %v1317 = vsub.s32 %v1314, %v1316
        %v1318 = vrot.slane %v1304, %v1317
        %v1319 = vcombine.low %v1254, %v1270
        %v1320 = vcombine.high %v1254, %v1270
        %v1322 = vunpack.c.l.s4 1934713408
        %v1323 = vunpack.c.0.s8 %v1322
        %v1324 = vlaneseq
        %v1325 = vshrl.u32 %v1324, 7
        %v1326 = vsub.s32 %v1323, %v1325
        %v1327 = vrot.slane %v1319, %v1326
        %v1329 = vunpack.c.l.s4 1934713408
        %v1330 = vunpack.c.0.s8 %v1329
        %v1331 = vlaneseq
        %v1332 = vshrl.u32 %v1331, 7
        %v1333 = vsub.s32 %v1330, %v1332
        %v1334 = vrot.slane %v1320, %v1333
        %v1335 = vcombine.low %v1279, %v1295
        %v1336 = vcombine.high %v1279, %v1295
        %v1338 = vunpack.c.l.s4 1934713408
        %v1339 = vunpack.c.0.s8 %v1338
        %v1340 = vlaneseq
        %v1341 = vshrl.u32 %v1340, 7
        %v1342 = vsub.s32 %v1339, %v1341
        %v1343 = vrot.slane %v1335, %v1342
        %v1345 = vunpack.c.l.s4 1934713408
        %v1346 = vunpack.c.0.s8 %v1345
        %v1347 = vlaneseq
        %v1348 = vshrl.u32 %v1347, 7
        %v1349 = vsub.s32 %v1346, %v1348
        %v1350 = vrot.slane %v1336, %v1349
        %v1351 = vcombine.low %v1286, %v1302
        %v1352 = vcombine.high %v1286, %v1302
        %v1354 = vunpack.c.l.s4 1934713408
        %v1355 = vunpack.c.0.s8 %v1354
        %v1356 = vlaneseq
        %v1357 = vshrl.u32 %v1356, 7
        %v1358 = vsub.s32 %v1355, %v1357
        %v1359 = vrot.slane %v1351, %v1358
        %v1361 = vunpack.c.l.s4 1934713408
        %v1362 = vunpack.c.0.s8 %v1361
        %v1363 = vlaneseq
        %v1364 = vshrl.u32 %v1363, 7
        %v1365 = vsub.s32 %v1362, %v1364
        %v1366 = vrot.slane %v1352, %v1365
        %v1367 = vcombine.low %v1311, %v1343
        %v1368 = vcombine.high %v1311, %v1343
        %v1369 = vcombine.low %v1318, %v1350
        %v1370 = vcombine.high %v1318, %v1350
        %v1371 = vcombine.low %v1327, %v1359
        %v1372 = vcombine.high %v1327, %v1359
        %v1373 = vcombine.low %v1334, %v1366
        %v1374 = vcombine.high %v1334, %v1366
        %v1375 = vcombine.low %v1163, %v1165
        %v1376 = vcombine.high %v1163, %v1165
        %v1378 = vunpack.c.l.s4 1983009808
        %v1379 = vunpack.c.0.s8 %v1378
        %v1380 = vlaneseq
        %v1381 = vshrl.u32 %v1380, 7
        %v1382 = vsub.s32 %v1379, %v1381
        %v1383 = vrot.slane %v1375, %v1382
        %v1385 = vunpack.c.l.s4 1983009808
        %v1386 = vunpack.c.0.s8 %v1385
        %v1387 = vlaneseq
        %v1388 = vshrl.u32 %v1387, 7
        %v1389 = vsub.s32 %v1386, %v1388
        %v1390 = vrot.slane %v1376, %v1389
        %v1391 = vcombine.low %v1164, %v1166
        %v1392 = vcombine.high %v1164, %v1166
        %v1394 = vunpack.c.l.s4 1983009808
        %v1395 = vunpack.c.0.s8 %v1394
        %v1396 = vlaneseq
        %v1397 = vshrl.u32 %v1396, 7
        %v1398 = vsub.s32 %v1395, %v1397
        %v1399 = vrot.slane %v1391, %v1398
        %v1401 = vunpack.c.l.s4 1983009808
        %v1402 = vunpack.c.0.s8 %v1401
        %v1403 = vlaneseq
        %v1404 = vshrl.u32 %v1403, 7
        %v1405 = vsub.s32 %v1402, %v1404
        %v1406 = vrot.slane %v1392, %v1405
        %v1407 = vcombine.low %v1167, %v1169
        %v1408 = vcombine.high %v1167, %v1169
        %v1410 = vunpack.c.l.s4 1983009808
        %v1411 = vunpack.c.0.s8 %v1410
        %v1412 = vlaneseq
        %v1413 = vshrl.u32 %v1412, 7
        %v1414 = vsub.s32 %v1411, %v1413
        %v1415 = vrot.slane %v1407, %v1414
        %v1417 = vunpack.c.l.s4 1983009808
        %v1418 = vunpack.c.0.s8 %v1417
        %v1419 = vlaneseq
        %v1420 = vshrl.u32 %v1419, 7
        %v1421 = vsub.s32 %v1418, %v1420
        %v1422 = vrot.slane %v1408, %v1421
        %v1423 = vcombine.low %v1168, %v1170
        %v1424 = vcombine.high %v1168, %v1170
        %v1426 = vunpack.c.l.s4 1983009808
        %v1427 = vunpack.c.0.s8 %v1426
        %v1428 = vlaneseq
        %v1429 = vshrl.u32 %v1428, 7
        %v1430 = vsub.s32 %v1427, %v1429
        %v1431 = vrot.slane %v1423, %v1430
        %v1433 = vunpack.c.l.s4 1983009808
        %v1434 = vunpack.c.0.s8 %v1433
        %v1435 = vlaneseq
        %v1436 = vshrl.u32 %v1435, 7
        %v1437 = vsub.s32 %v1434, %v1436
        %v1438 = vrot.slane %v1424, %v1437
        %v1439 = vcombine.low %v1383, %v1399
        %v1440 = vcombine.high %v1383, %v1399
        %v1442 = vunpack.c.l.s4 1934713408
        %v1443 = vunpack.c.0.s8 %v1442
        %v1444 = vlaneseq
        %v1445 = vshrl.u32 %v1444, 7
        %v1446 = vsub.s32 %v1443, %v1445
        %v1447 = vrot.slane %v1439, %v1446
        %v1449 = vunpack.c.l.s4 1934713408
        %v1450 = vunpack.c.0.s8 %v1449
        %v1451 = vlaneseq
        %v1452 = vshrl.u32 %v1451, 7
        %v1453 = vsub.s32 %v1450, %v1452
        %v1454 = vrot.slane %v1440, %v1453
        %v1455 = vcombine.low %v1390, %v1406
        %v1456 = vcombine.high %v1390, %v1406
        %v1458 = vunpack.c.l.s4 1934713408
        %v1459 = vunpack.c.0.s8 %v1458
        %v1460 = vlaneseq
        %v1461 = vshrl.u32 %v1460, 7
        %v1462 = vsub.s32 %v1459, %v1461
        %v1463 = vrot.slane %v1455, %v1462
        %v1465 = vunpack.c.l.s4 1934713408
        %v1466 = vunpack.c.0.s8 %v1465
        %v1467 = vlaneseq
        %v1468 = vshrl.u32 %v1467, 7
        %v1469 = vsub.s32 %v1466, %v1468
        %v1470 = vrot.slane %v1456, %v1469
        %v1471 = vcombine.low %v1415, %v1431
        %v1472 = vcombine.high %v1415, %v1431
        %v1474 = vunpack.c.l.s4 1934713408
        %v1475 = vunpack.c.0.s8 %v1474
        %v1476 = vlaneseq
        %v1477 = vshrl.u32 %v1476, 7
        %v1478 = vsub.s32 %v1475, %v1477
        %v1479 = vrot.slane %v1471, %v1478
        %v1481 = vunpack.c.l.s4 1934713408
        %v1482 = vunpack.c.0.s8 %v1481
        %v1483 = vlaneseq
        %v1484 = vshrl.u32 %v1483, 7
        %v1485 = vsub.s32 %v1482, %v1484
        %v1486 = vrot.slane %v1472, %v1485
        %v1487 = vcombine.low %v1422, %v1438
        %v1488 = vcombine.high %v1422, %v1438
        %v1490 = vunpack.c.l.s4 1934713408
        %v1491 = vunpack.c.0.s8 %v1490
        %v1492 = vlaneseq
        %v1493 = vshrl.u32 %v1492, 7
        %v1494 = vsub.s32 %v1491, %v1493
        %v1495 = vrot.slane %v1487, %v1494
        %v1497 = vunpack.c.l.s4 1934713408
        %v1498 = vunpack.c.0.s8 %v1497
        %v1499 = vlaneseq
        %v1500 = vshrl.u32 %v1499, 7
        %v1501 = vsub.s32 %v1498, %v1500
        %v1502 = vrot.slane %v1488, %v1501
        %v1503 = vcombine.low %v1447, %v1479
        %v1504 = vcombine.high %v1447, %v1479
        %v1505 = vcombine.low %v1454, %v1486
        %v1506 = vcombine.high %v1454, %v1486
        %v1507 = vcombine.low %v1463, %v1495
        %v1508 = vcombine.high %v1463, %v1495
        %v1509 = vcombine.low %v1470, %v1502
        %v1510 = vcombine.high %v1470, %v1502
        %v1511 = vcombine.low %v1007, %v1014
        %v1513 = vunpack.c.l.s4 1983009808
        %v1514 = vunpack.c.0.s8 %v1513
        %v1515 = vlaneseq
        %v1516 = vshrl.u32 %v1515, 7
        %v1517 = vsub.s32 %v1514, %v1516
        %v1518 = vrot.slane %v1511, %v1517
        %v1519 = vcombine.low %v1031, %v1032
        %v1521 = vunpack.c.l.s4 1983009808
        %v1522 = vunpack.c.0.s8 %v1521
        %v1523 = vlaneseq
        %v1524 = vshrl.u32 %v1523, 7
        %v1525 = vsub.s32 %v1522, %v1524
        %v1526 = vrot.slane %v1519, %v1525
        %v1527 = vcombine.low %v1023, %v1030
        %v1529 = vunpack.c.l.s4 1983009808
        %v1530 = vunpack.c.0.s8 %v1529
        %v1531 = vlaneseq
        %v1532 = vshrl.u32 %v1531, 7
        %v1533 = vsub.s32 %v1530, %v1532
        %v1534 = vrot.slane %v1527, %v1533
        %v1535 = vcombine.low %v1033, %v1034
        %v1537 = vunpack.c.l.s4 1983009808
        %v1538 = vunpack.c.0.s8 %v1537
        %v1539 = vlaneseq
        %v1540 = vshrl.u32 %v1539, 7
        %v1541 = vsub.s32 %v1538, %v1540
        %v1542 = vrot.slane %v1535, %v1541
        %v1543 = vcombine.low %v1518, %v1526
        %v1544 = vcombine.high %v1518, %v1526
        %v1546 = vunpack.c.l.s4 1934713408
        %v1547 = vunpack.c.0.s8 %v1546
        %v1548 = vlaneseq
        %v1549 = vshrl.u32 %v1548, 7
        %v1550 = vsub.s32 %v1547, %v1549
        %v1551 = vrot.slane %v1543, %v1550
        %v1553 = vunpack.c.l.s4 1934713408
        %v1554 = vunpack.c.0.s8 %v1553
        %v1555 = vlaneseq
        %v1556 = vshrl.u32 %v1555, 7
        %v1557 = vsub.s32 %v1554, %v1556
        %v1558 = vrot.slane %v1544, %v1557
        %v1559 = vcombine.low %v1534, %v1542
        %v1560 = vcombine.high %v1534, %v1542
        %v1562 = vunpack.c.l.s4 1934713408
        %v1563 = vunpack.c.0.s8 %v1562
        %v1564 = vlaneseq
        %v1565 = vshrl.u32 %v1564, 7
        %v1566 = vsub.s32 %v1563, %v1565
        %v1567 = vrot.slane %v1559, %v1566
        %v1569 = vunpack.c.l.s4 1934713408
        %v1570 = vunpack.c.0.s8 %v1569
        %v1571 = vlaneseq
        %v1572 = vshrl.u32 %v1571, 7
        %v1573 = vsub.s32 %v1570, %v1572
        %v1574 = vrot.slane %v1560, %v1573
        %v1575 = vcombine.low %v1551, %v1567
        %v1576 = vcombine.high %v1551, %v1567
        %v1577 = vcombine.low %v1558, %v1574
        %v1578 = vcombine.high %v1558, %v1574
        %v1579 = vcombine.low %v1211, %v1218
        %v1581 = vunpack.c.l.s4 1983009808
        %v1582 = vunpack.c.0.s8 %v1581
        %v1583 = vlaneseq
        %v1584 = vshrl.u32 %v1583, 7
        %v1585 = vsub.s32 %v1582, %v1584
        %v1586 = vrot.slane %v1579, %v1585
        %v1587 = vcombine.low %v1235, %v1236
        %v1589 = vunpack.c.l.s4 1983009808
        %v1590 = vunpack.c.0.s8 %v1589
        %v1591 = vlaneseq
        %v1592 = vshrl.u32 %v1591, 7
        %v1593 = vsub.s32 %v1590, %v1592
        %v1594 = vrot.slane %v1587, %v1593
        %v1595 = vcombine.low %v1227, %v1234
        %v1597 = vunpack.c.l.s4 1983009808
        %v1598 = vunpack.c.0.s8 %v1597
        %v1599 = vlaneseq
        %v1600 = vshrl.u32 %v1599, 7
        %v1601 = vsub.s32 %v1598, %v1600
        %v1602 = vrot.slane %v1595, %v1601
        %v1603 = vcombine.low %v1237, %v1238
        %v1605 = vunpack.c.l.s4 1983009808
        %v1606 = vunpack.c.0.s8 %v1605
        %v1607 = vlaneseq
        %v1608 = vshrl.u32 %v1607, 7
        %v1609 = vsub.s32 %v1606, %v1608
        %v1610 = vrot.slane %v1603, %v1609
        %v1611 = vcombine.low %v1586, %v1594
        %v1612 = vcombine.high %v1586, %v1594
        %v1614 = vunpack.c.l.s4 1934713408
        %v1615 = vunpack.c.0.s8 %v1614
        %v1616 = vlaneseq
        %v1617 = vshrl.u32 %v1616, 7
        %v1618 = vsub.s32 %v1615, %v1617
        %v1619 = vrot.slane %v1611, %v1618
        %v1621 = vunpack.c.l.s4 1934713408
        %v1622 = vunpack.c.0.s8 %v1621
        %v1623 = vlaneseq
        %v1624 = vshrl.u32 %v1623, 7
        %v1625 = vsub.s32 %v1622, %v1624
        %v1626 = vrot.slane %v1612, %v1625
        %v1627 = vcombine.low %v1602, %v1610
        %v1628 = vcombine.high %v1602, %v1610
        %v1630 = vunpack.c.l.s4 1934713408
        %v1631 = vunpack.c.0.s8 %v1630
        %v1632 = vlaneseq
        %v1633 = vshrl.u32 %v1632, 7
        %v1634 = vsub.s32 %v1631, %v1633
        %v1635 = vrot.slane %v1627, %v1634
        %v1637 = vunpack.c.l.s4 1934713408
        %v1638 = vunpack.c.0.s8 %v1637
        %v1639 = vlaneseq
        %v1640 = vshrl.u32 %v1639, 7
        %v1641 = vsub.s32 %v1638, %v1640
        %v1642 = vrot.slane %v1628, %v1641
        %v1643 = vcombine.low %v1619, %v1635
        %v1644 = vcombine.high %v1619, %v1635
        %v1645 = vcombine.low %v1626, %v1642
        %v1646 = vcombine.high %v1626, %v1642
        %v1647 = vpack.c.bf16 %v1367, %v1367
        %v1648 = vpack.c.bf16 %v1503, %v1503
        %v1649 = vpack.c.bf16 %v1368, %v1368
        %v1650 = vpack.c.bf16 %v1504, %v1504
        %v1651 = vpack.c.bf16 %v1369, %v1369
        %v1652 = vpack.c.bf16 %v1505, %v1505
        %v1653 = vpack.c.bf16 %v1370, %v1370
        %v1654 = vpack.c.bf16 %v1506, %v1506
        %v1655 = vpack.c.bf16 %v1371, %v1371
        %v1656 = vpack.c.bf16 %v1507, %v1507
        %v1657 = vpack.c.bf16 %v1372, %v1372
        %v1658 = vpack.c.bf16 %v1508, %v1508
        %v1659 = vpack.c.bf16 %v1373, %v1373
        %v1660 = vpack.c.bf16 %v1509, %v1509
        %v1661 = vpack.c.bf16 %v1374, %v1374
        %v1662 = vpack.c.bf16 %v1510, %v1510
        %v1663 = vpack.c.bf16 %v1575, %v1575
        %v1664 = vpack.c.bf16 %v1643, %v1643
        %v1665 = vpack.c.bf16 %v1576, %v1576
        %v1666 = vpack.c.bf16 %v1644, %v1644
        %v1667 = vpack.c.bf16 %v1577, %v1577
        %v1668 = vpack.c.bf16 %v1645, %v1645
        %v1669 = vpack.c.bf16 %v1578, %v1578
        %v1670 = vpack.c.bf16 %v1646, %v1646
        %vm1671 = vcmask 64512
        %v1673 = vsel %vm1671, %v1647, 0
        %v1676 = vsel %vm1671, %v1655, 0
        %1678 = vmatprep.subr.bf16.mxu0 0
        %1679 = vmatpush1.bf16.xpose.msra.mxu0 0
        %1680 = vmatprep.subr.bf16.mxu0 0
        %1681 = vmatpush1.bf16.xpose.msra.mxu0 0
        %1682 = vmatprep.subr.bf16.mxu0 0
        %1683 = vmatpush1.bf16.xpose.msra.mxu0 0
        %1684 = vmatprep.subr.bf16.mxu0 0
        %1685 = vmatpush1.bf16.xpose.msra.mxu0 0
        %1686 = vmatprep.subr.bf16.mxu0 0
        %1687 = vmatpush1.bf16.xpose.msra.mxu0 0
        %1688 = vmatprep.subr.bf16.mxu0 0
        %1689 = vmatpush1.bf16.xpose.msra.mxu0 0
        %1690 = vmatprep.subr.bf16.mxu0 0
        %1691 = vmatpush1.bf16.xpose.msra.mxu0 0
        %1692 = vmatprep.subr.bf16.mxu0 0
        %1693 = vmatpush1.bf16.xpose.msra.mxu0 %v1676
        %1694 = vmatprep.subr.bf16.mxu0 0
        %1695 = vmatpush2.bf16.xpose.msra.mxu0 0
        %1696 = vmatprep.subr.bf16.mxu0 0
        %1697 = vmatpush2.bf16.xpose.msra.mxu0 0
        %1698 = vmatprep.subr.bf16.mxu0 0
        %1699 = vmatpush2.bf16.xpose.msra.mxu0 0
        %1700 = vmatprep.subr.bf16.mxu0 0
        %1701 = vmatpush2.bf16.xpose.msra.mxu0 0
        %1702 = vmatprep.subr.bf16.mxu0 0
        %1703 = vmatpush2.bf16.xpose.msra.mxu0 0
        %1704 = vmatprep.subr.bf16.mxu0 0
        %1705 = vmatpush2.bf16.xpose.msra.mxu0 0
        %1706 = vmatprep.subr.bf16.mxu0 0
        %1707 = vmatpush2.bf16.xpose.msra.mxu0 0
        %1708 = vmatprep.subr.bf16.mxu0 0
        %1709 = vmatpush2.bf16.xpose.msra.mxu0 0
        %1710 = vmatprep.mubr.bf16.mxu0 0
        %1711 = vmatmul.mubr.bf16.gmra.mxu0 %v1673
        %v1712 = vpop.f32.mrf.mxu0
        %v1713 = vadd.f32 0.0, %v1712
        %v1714 = vpop.f32.mrf.mxu0
        %v1715 = vpop.f32.mrf.mxu0
        %v1716 = vpop.f32.mrf.mxu0
        %1717 = vdwg.mxu0
        %v1719 = vsel %vm1671, %v1648, 0
        %v1722 = vsel %vm1671, %v1656, 0
        %1724 = vmatprep.subr.bf16.mxu0 0
        %1725 = vmatpush1.bf16.xpose.msra.mxu0 0
        %1726 = vmatprep.subr.bf16.mxu0 0
        %1727 = vmatpush1.bf16.xpose.msra.mxu0 0
        %1728 = vmatprep.subr.bf16.mxu0 0
        %1729 = vmatpush1.bf16.xpose.msra.mxu0 0
        %1730 = vmatprep.subr.bf16.mxu0 0
        %1731 = vmatpush1.bf16.xpose.msra.mxu0 0
        %1732 = vmatprep.subr.bf16.mxu0 0
        %1733 = vmatpush1.bf16.xpose.msra.mxu0 0
        %1734 = vmatprep.subr.bf16.mxu0 0
        %1735 = vmatpush1.bf16.xpose.msra.mxu0 0
        %1736 = vmatprep.subr.bf16.mxu0 0
        %1737 = vmatpush1.bf16.xpose.msra.mxu0 0
        %1738 = vmatprep.subr.bf16.mxu0 0
        %1739 = vmatpush1.bf16.xpose.msra.mxu0 %v1722
        %1740 = vmatprep.subr.bf16.mxu0 0
        %1741 = vmatpush2.bf16.xpose.msra.mxu0 0
        %1742 = vmatprep.subr.bf16.mxu0 0
        %1743 = vmatpush2.bf16.xpose.msra.mxu0 0
        %1744 = vmatprep.subr.bf16.mxu0 0
        %1745 = vmatpush2.bf16.xpose.msra.mxu0 0
        %1746 = vmatprep.subr.bf16.mxu0 0
        %1747 = vmatpush2.bf16.xpose.msra.mxu0 0
        %1748 = vmatprep.subr.bf16.mxu0 0
        %1749 = vmatpush2.bf16.xpose.msra.mxu0 0
        %1750 = vmatprep.subr.bf16.mxu0 0
        %1751 = vmatpush2.bf16.xpose.msra.mxu0 0
        %1752 = vmatprep.subr.bf16.mxu0 0
        %1753 = vmatpush2.bf16.xpose.msra.mxu0 0
        %1754 = vmatprep.subr.bf16.mxu0 0
        %1755 = vmatpush2.bf16.xpose.msra.mxu0 0
        %1756 = vmatprep.mubr.bf16.mxu0 0
        %1757 = vmatmul.mubr.bf16.gmra.mxu0 %v1719
        %v1758 = vpop.f32.mrf.mxu0
        %v1759 = vadd.f32 0.0, %v1758
        %v1760 = vpop.f32.mrf.mxu0
        %v1761 = vpop.f32.mrf.mxu0
        %v1762 = vpop.f32.mrf.mxu0
        %1763 = vdwg.mxu0
        %v1765 = vsel %vm1671, %v1649, 0
        %v1768 = vsel %vm1671, %v1657, 0
        %1770 = vmatprep.subr.bf16.mxu0 0
        %1771 = vmatpush1.bf16.xpose.msra.mxu0 0
        %1772 = vmatprep.subr.bf16.mxu0 0
        %1773 = vmatpush1.bf16.xpose.msra.mxu0 0
        %1774 = vmatprep.subr.bf16.mxu0 0
        %1775 = vmatpush1.bf16.xpose.msra.mxu0 0
        %1776 = vmatprep.subr.bf16.mxu0 0
        %1777 = vmatpush1.bf16.xpose.msra.mxu0 0
        %1778 = vmatprep.subr.bf16.mxu0 0
        %1779 = vmatpush1.bf16.xpose.msra.mxu0 0
        %1780 = vmatprep.subr.bf16.mxu0 0
        %1781 = vmatpush1.bf16.xpose.msra.mxu0 0
        %1782 = vmatprep.subr.bf16.mxu0 0
        %1783 = vmatpush1.bf16.xpose.msra.mxu0 0
        %1784 = vmatprep.subr.bf16.mxu0 0
        %1785 = vmatpush1.bf16.xpose.msra.mxu0 %v1768
        %1786 = vmatprep.subr.bf16.mxu0 0
        %1787 = vmatpush2.bf16.xpose.msra.mxu0 0
        %1788 = vmatprep.subr.bf16.mxu0 0
        %1789 = vmatpush2.bf16.xpose.msra.mxu0 0
        %1790 = vmatprep.subr.bf16.mxu0 0
        %1791 = vmatpush2.bf16.xpose.msra.mxu0 0
        %1792 = vmatprep.subr.bf16.mxu0 0
        %1793 = vmatpush2.bf16.xpose.msra.mxu0 0
        %1794 = vmatprep.subr.bf16.mxu0 0
        %1795 = vmatpush2.bf16.xpose.msra.mxu0 0
        %1796 = vmatprep.subr.bf16.mxu0 0
        %1797 = vmatpush2.bf16.xpose.msra.mxu0 0
        %1798 = vmatprep.subr.bf16.mxu0 0
        %1799 = vmatpush2.bf16.xpose.msra.mxu0 0
        %1800 = vmatprep.subr.bf16.mxu0 0
        %1801 = vmatpush2.bf16.xpose.msra.mxu0 0
        %1802 = vmatprep.mubr.bf16.mxu0 0
        %1803 = vmatmul.mubr.bf16.gmra.mxu0 %v1765
        %v1804 = vpop.f32.mrf.mxu0
        %v1805 = vadd.f32 0.0, %v1804
        %v1806 = vpop.f32.mrf.mxu0
        %v1807 = vpop.f32.mrf.mxu0
        %v1808 = vpop.f32.mrf.mxu0
        %1809 = vdwg.mxu0
        %v1811 = vsel %vm1671, %v1650, 0
        %v1814 = vsel %vm1671, %v1658, 0
        %1816 = vmatprep.subr.bf16.mxu0 0
        %1817 = vmatpush1.bf16.xpose.msra.mxu0 0
        %1818 = vmatprep.subr.bf16.mxu0 0
        %1819 = vmatpush1.bf16.xpose.msra.mxu0 0
        %1820 = vmatprep.subr.bf16.mxu0 0
        %1821 = vmatpush1.bf16.xpose.msra.mxu0 0
        %1822 = vmatprep.subr.bf16.mxu0 0
        %1823 = vmatpush1.bf16.xpose.msra.mxu0 0
        %1824 = vmatprep.subr.bf16.mxu0 0
        %1825 = vmatpush1.bf16.xpose.msra.mxu0 0
        %1826 = vmatprep.subr.bf16.mxu0 0
        %1827 = vmatpush1.bf16.xpose.msra.mxu0 0
        %1828 = vmatprep.subr.bf16.mxu0 0
        %1829 = vmatpush1.bf16.xpose.msra.mxu0 0
        %1830 = vmatprep.subr.bf16.mxu0 0
        %1831 = vmatpush1.bf16.xpose.msra.mxu0 %v1814
        %1832 = vmatprep.subr.bf16.mxu0 0
        %1833 = vmatpush2.bf16.xpose.msra.mxu0 0
        %1834 = vmatprep.subr.bf16.mxu0 0
        %1835 = vmatpush2.bf16.xpose.msra.mxu0 0
        %1836 = vmatprep.subr.bf16.mxu0 0
        %1837 = vmatpush2.bf16.xpose.msra.mxu0 0
        %1838 = vmatprep.subr.bf16.mxu0 0
        %1839 = vmatpush2.bf16.xpose.msra.mxu0 0
        %1840 = vmatprep.subr.bf16.mxu0 0
        %1841 = vmatpush2.bf16.xpose.msra.mxu0 0
        %1842 = vmatprep.subr.bf16.mxu0 0
        %1843 = vmatpush2.bf16.xpose.msra.mxu0 0
        %1844 = vmatprep.subr.bf16.mxu0 0
        %1845 = vmatpush2.bf16.xpose.msra.mxu0 0
        %1846 = vmatprep.subr.bf16.mxu0 0
        %1847 = vmatpush2.bf16.xpose.msra.mxu0 0
        %1848 = vmatprep.mubr.bf16.mxu0 0
        %1849 = vmatmul.mubr.bf16.gmra.mxu0 %v1811
        %v1850 = vpop.f32.mrf.mxu0
        %v1851 = vadd.f32 0.0, %v1850
        %v1852 = vpop.f32.mrf.mxu0
        %v1853 = vpop.f32.mrf.mxu0
        %v1854 = vpop.f32.mrf.mxu0
        %1855 = vdwg.mxu0
        %v1857 = vsel %vm1671, %v1651, 0
        %v1860 = vsel %vm1671, %v1659, 0
        %1862 = vmatprep.subr.bf16.mxu0 0
        %1863 = vmatpush1.bf16.xpose.msra.mxu0 0
        %1864 = vmatprep.subr.bf16.mxu0 0
        %1865 = vmatpush1.bf16.xpose.msra.mxu0 0
        %1866 = vmatprep.subr.bf16.mxu0 0
        %1867 = vmatpush1.bf16.xpose.msra.mxu0 0
        %1868 = vmatprep.subr.bf16.mxu0 0
        %1869 = vmatpush1.bf16.xpose.msra.mxu0 0
        %1870 = vmatprep.subr.bf16.mxu0 0
        %1871 = vmatpush1.bf16.xpose.msra.mxu0 0
        %1872 = vmatprep.subr.bf16.mxu0 0
        %1873 = vmatpush1.bf16.xpose.msra.mxu0 0
        %1874 = vmatprep.subr.bf16.mxu0 0
        %1875 = vmatpush1.bf16.xpose.msra.mxu0 0
        %1876 = vmatprep.subr.bf16.mxu0 0
        %1877 = vmatpush1.bf16.xpose.msra.mxu0 %v1860
        %1878 = vmatprep.subr.bf16.mxu0 0
        %1879 = vmatpush2.bf16.xpose.msra.mxu0 0
        %1880 = vmatprep.subr.bf16.mxu0 0
        %1881 = vmatpush2.bf16.xpose.msra.mxu0 0
        %1882 = vmatprep.subr.bf16.mxu0 0
        %1883 = vmatpush2.bf16.xpose.msra.mxu0 0
        %1884 = vmatprep.subr.bf16.mxu0 0
        %1885 = vmatpush2.bf16.xpose.msra.mxu0 0
        %1886 = vmatprep.subr.bf16.mxu0 0
        %1887 = vmatpush2.bf16.xpose.msra.mxu0 0
        %1888 = vmatprep.subr.bf16.mxu0 0
        %1889 = vmatpush2.bf16.xpose.msra.mxu0 0
        %1890 = vmatprep.subr.bf16.mxu0 0
        %1891 = vmatpush2.bf16.xpose.msra.mxu0 0
        %1892 = vmatprep.subr.bf16.mxu0 0
        %1893 = vmatpush2.bf16.xpose.msra.mxu0 0
        %1894 = vmatprep.mubr.bf16.mxu0 0
        %1895 = vmatmul.mubr.bf16.gmra.mxu0 %v1857
        %v1896 = vpop.f32.mrf.mxu0
        %v1897 = vadd.f32 0.0, %v1896
        %v1898 = vpop.f32.mrf.mxu0
        %v1899 = vpop.f32.mrf.mxu0
        %v1900 = vpop.f32.mrf.mxu0
        %1901 = vdwg.mxu0
        %v1903 = vsel %vm1671, %v1652, 0
        %v1906 = vsel %vm1671, %v1660, 0
        %1908 = vmatprep.subr.bf16.mxu0 0
        %1909 = vmatpush1.bf16.xpose.msra.mxu0 0
        %1910 = vmatprep.subr.bf16.mxu0 0
        %1911 = vmatpush1.bf16.xpose.msra.mxu0 0
        %1912 = vmatprep.subr.bf16.mxu0 0
        %1913 = vmatpush1.bf16.xpose.msra.mxu0 0
        %1914 = vmatprep.subr.bf16.mxu0 0
        %1915 = vmatpush1.bf16.xpose.msra.mxu0 0
        %1916 = vmatprep.subr.bf16.mxu0 0
        %1917 = vmatpush1.bf16.xpose.msra.mxu0 0
        %1918 = vmatprep.subr.bf16.mxu0 0
        %1919 = vmatpush1.bf16.xpose.msra.mxu0 0
        %1920 = vmatprep.subr.bf16.mxu0 0
        %1921 = vmatpush1.bf16.xpose.msra.mxu0 0
        %1922 = vmatprep.subr.bf16.mxu0 0
        %1923 = vmatpush1.bf16.xpose.msra.mxu0 %v1906
        %1924 = vmatprep.subr.bf16.mxu0 0
        %1925 = vmatpush2.bf16.xpose.msra.mxu0 0
        %1926 = vmatprep.subr.bf16.mxu0 0
        %1927 = vmatpush2.bf16.xpose.msra.mxu0 0
        %1928 = vmatprep.subr.bf16.mxu0 0
        %1929 = vmatpush2.bf16.xpose.msra.mxu0 0
        %1930 = vmatprep.subr.bf16.mxu0 0
        %1931 = vmatpush2.bf16.xpose.msra.mxu0 0
        %1932 = vmatprep.subr.bf16.mxu0 0
        %1933 = vmatpush2.bf16.xpose.msra.mxu0 0
        %1934 = vmatprep.subr.bf16.mxu0 0
        %1935 = vmatpush2.bf16.xpose.msra.mxu0 0
        %1936 = vmatprep.subr.bf16.mxu0 0
        %1937 = vmatpush2.bf16.xpose.msra.mxu0 0
        %1938 = vmatprep.subr.bf16.mxu0 0
        %1939 = vmatpush2.bf16.xpose.msra.mxu0 0
        %1940 = vmatprep.mubr.bf16.mxu0 0
        %1941 = vmatmul.mubr.bf16.gmra.mxu0 %v1903
        %v1942 = vpop.f32.mrf.mxu0
        %v1943 = vadd.f32 0.0, %v1942
        %v1944 = vpop.f32.mrf.mxu0
        %v1945 = vpop.f32.mrf.mxu0
        %v1946 = vpop.f32.mrf.mxu0
        %1947 = vdwg.mxu0
        %v1949 = vsel %vm1671, %v1653, 0
        %v1952 = vsel %vm1671, %v1661, 0
        %1954 = vmatprep.subr.bf16.mxu0 0
        %1955 = vmatpush1.bf16.xpose.msra.mxu0 0
        %1956 = vmatprep.subr.bf16.mxu0 0
        %1957 = vmatpush1.bf16.xpose.msra.mxu0 0
        %1958 = vmatprep.subr.bf16.mxu0 0
        %1959 = vmatpush1.bf16.xpose.msra.mxu0 0
        %1960 = vmatprep.subr.bf16.mxu0 0
        %1961 = vmatpush1.bf16.xpose.msra.mxu0 0
        %1962 = vmatprep.subr.bf16.mxu0 0
        %1963 = vmatpush1.bf16.xpose.msra.mxu0 0
        %1964 = vmatprep.subr.bf16.mxu0 0
        %1965 = vmatpush1.bf16.xpose.msra.mxu0 0
        %1966 = vmatprep.subr.bf16.mxu0 0
        %1967 = vmatpush1.bf16.xpose.msra.mxu0 0
        %1968 = vmatprep.subr.bf16.mxu0 0
        %1969 = vmatpush1.bf16.xpose.msra.mxu0 %v1952
        %1970 = vmatprep.subr.bf16.mxu0 0
        %1971 = vmatpush2.bf16.xpose.msra.mxu0 0
        %1972 = vmatprep.subr.bf16.mxu0 0
        %1973 = vmatpush2.bf16.xpose.msra.mxu0 0
        %1974 = vmatprep.subr.bf16.mxu0 0
        %1975 = vmatpush2.bf16.xpose.msra.mxu0 0
        %1976 = vmatprep.subr.bf16.mxu0 0
        %1977 = vmatpush2.bf16.xpose.msra.mxu0 0
        %1978 = vmatprep.subr.bf16.mxu0 0
        %1979 = vmatpush2.bf16.xpose.msra.mxu0 0
        %1980 = vmatprep.subr.bf16.mxu0 0
        %1981 = vmatpush2.bf16.xpose.msra.mxu0 0
        %1982 = vmatprep.subr.bf16.mxu0 0
        %1983 = vmatpush2.bf16.xpose.msra.mxu0 0
        %1984 = vmatprep.subr.bf16.mxu0 0
        %1985 = vmatpush2.bf16.xpose.msra.mxu0 0
        %1986 = vmatprep.mubr.bf16.mxu0 0
        %1987 = vmatmul.mubr.bf16.gmra.mxu0 %v1949
        %v1988 = vpop.f32.mrf.mxu0
        %v1989 = vadd.f32 0.0, %v1988
        %v1990 = vpop.f32.mrf.mxu0
        %v1991 = vpop.f32.mrf.mxu0
        %v1992 = vpop.f32.mrf.mxu0
        %1993 = vdwg.mxu0
        %v1995 = vsel %vm1671, %v1654, 0
        %v1998 = vsel %vm1671, %v1662, 0
        %2000 = vmatprep.subr.bf16.mxu0 0
        %2001 = vmatpush1.bf16.xpose.msra.mxu0 0
        %2002 = vmatprep.subr.bf16.mxu0 0
        %2003 = vmatpush1.bf16.xpose.msra.mxu0 0
        %2004 = vmatprep.subr.bf16.mxu0 0
        %2005 = vmatpush1.bf16.xpose.msra.mxu0 0
        %2006 = vmatprep.subr.bf16.mxu0 0
        %2007 = vmatpush1.bf16.xpose.msra.mxu0 0
        %2008 = vmatprep.subr.bf16.mxu0 0
        %2009 = vmatpush1.bf16.xpose.msra.mxu0 0
        %2010 = vmatprep.subr.bf16.mxu0 0
        %2011 = vmatpush1.bf16.xpose.msra.mxu0 0
        %2012 = vmatprep.subr.bf16.mxu0 0
        %2013 = vmatpush1.bf16.xpose.msra.mxu0 0
        %2014 = vmatprep.subr.bf16.mxu0 0
        %2015 = vmatpush1.bf16.xpose.msra.mxu0 %v1998
        %2016 = vmatprep.subr.bf16.mxu0 0
        %2017 = vmatpush2.bf16.xpose.msra.mxu0 0
        %2018 = vmatprep.subr.bf16.mxu0 0
        %2019 = vmatpush2.bf16.xpose.msra.mxu0 0
        %2020 = vmatprep.subr.bf16.mxu0 0
        %2021 = vmatpush2.bf16.xpose.msra.mxu0 0
        %2022 = vmatprep.subr.bf16.mxu0 0
        %2023 = vmatpush2.bf16.xpose.msra.mxu0 0
        %2024 = vmatprep.subr.bf16.mxu0 0
        %2025 = vmatpush2.bf16.xpose.msra.mxu0 0
        %2026 = vmatprep.subr.bf16.mxu0 0
        %2027 = vmatpush2.bf16.xpose.msra.mxu0 0
        %2028 = vmatprep.subr.bf16.mxu0 0
        %2029 = vmatpush2.bf16.xpose.msra.mxu0 0
        %2030 = vmatprep.subr.bf16.mxu0 0
        %2031 = vmatpush2.bf16.xpose.msra.mxu0 0
        %2032 = vmatprep.mubr.bf16.mxu0 0
        %2033 = vmatmul.mubr.bf16.gmra.mxu0 %v1995
        %v2034 = vpop.f32.mrf.mxu0
        %v2035 = vadd.f32 0.0, %v2034
        %v2036 = vpop.f32.mrf.mxu0
        %v2037 = vpop.f32.mrf.mxu0
        %v2038 = vpop.f32.mrf.mxu0
        %2039 = vdwg.mxu0
        %v2040 = vsel %vm1671, %v1713, -inf
        %2041 = vmax.xlane.f32.xlu0 %v2040
        %v2042 = vpop.xlane.xlu0 %2041
        %v2043 = vsel %vm1671, %v1759, -inf
        %2044 = vmax.xlane.f32.xlu0 %v2043
        %v2045 = vpop.xlane.xlu0 %2044
        %v2046 = vsel %vm1671, %v1805, -inf
        %2047 = vmax.xlane.f32.xlu0 %v2046
        %v2048 = vpop.xlane.xlu0 %2047
        %v2049 = vsel %vm1671, %v1851, -inf
        %2050 = vmax.xlane.f32.xlu0 %v2049
        %v2051 = vpop.xlane.xlu0 %2050
        %v2052 = vsel %vm1671, %v1897, -inf
        %2053 = vmax.xlane.f32.xlu0 %v2052
        %v2054 = vpop.xlane.xlu0 %2053
        %v2055 = vsel %vm1671, %v1943, -inf
        %2056 = vmax.xlane.f32.xlu0 %v2055
        %v2057 = vpop.xlane.xlu0 %2056
        %v2058 = vsel %vm1671, %v1989, -inf
        %2059 = vmax.xlane.f32.xlu0 %v2058
        %v2060 = vpop.xlane.xlu0 %2059
        %v2061 = vsel %vm1671, %v2035, -inf
        %2062 = vmax.xlane.f32.xlu0 %v2061
        %v2063 = vpop.xlane.xlu0 %2062
        %v2064 = vsub.f32 %v1713, %v2042
        %v2065 = vsub.f32 %v1759, %v2045
        %v2066 = vsub.f32 %v1805, %v2048
        %v2067 = vsub.f32 %v1851, %v2051
        %v2068 = vsub.f32 %v1897, %v2054
        %v2069 = vsub.f32 %v1943, %v2057
        %v2070 = vsub.f32 %v1989, %v2060
        %v2071 = vsub.f32 %v2035, %v2063
        %v2072 = vmul.f32 %v2064, 1.442695
        %v2073 = vpow.pop %v2072
        %v2074 = vmul.f32 %v2065, 1.442695
        %v2075 = vpow.pop %v2074
        %v2076 = vmul.f32 %v2066, 1.442695
        %v2077 = vpow.pop %v2076
        %v2078 = vmul.f32 %v2067, 1.442695
        %v2079 = vpow.pop %v2078
        %v2080 = vmul.f32 %v2068, 1.442695
        %v2081 = vpow.pop %v2080
        %v2082 = vmul.f32 %v2069, 1.442695
        %v2083 = vpow.pop %v2082
        %v2084 = vmul.f32 %v2070, 1.442695
        %v2085 = vpow.pop %v2084
        %v2086 = vmul.f32 %v2071, 1.442695
        %v2087 = vpow.pop %v2086
        %v2088 = vsel %vm1671, %v2073, 0.0
        %2089 = vadd.xlane.f32.xlu0 %v2088
        %v2090 = vpop.xlane.xlu0 %2089
        %v2091 = vsel %vm1671, %v2075, 0.0
        %2092 = vadd.xlane.f32.xlu0 %v2091
        %v2093 = vpop.xlane.xlu0 %2092
        %v2094 = vsel %vm1671, %v2077, 0.0
        %2095 = vadd.xlane.f32.xlu0 %v2094
        %v2096 = vpop.xlane.xlu0 %2095
        %v2097 = vsel %vm1671, %v2079, 0.0
        %2098 = vadd.xlane.f32.xlu0 %v2097
        %v2099 = vpop.xlane.xlu0 %2098
        %v2100 = vsel %vm1671, %v2081, 0.0
        %2101 = vadd.xlane.f32.xlu0 %v2100
        %v2102 = vpop.xlane.xlu0 %2101
        %v2103 = vsel %vm1671, %v2083, 0.0
        %2104 = vadd.xlane.f32.xlu0 %v2103
        %v2105 = vpop.xlane.xlu0 %2104
        %v2106 = vsel %vm1671, %v2085, 0.0
        %2107 = vadd.xlane.f32.xlu0 %v2106
        %v2108 = vpop.xlane.xlu0 %2107
        %v2109 = vsel %vm1671, %v2087, 0.0
        %2110 = vadd.xlane.f32.xlu0 %v2109
        %v2111 = vpop.xlane.xlu0 %2110
        %v2112 = vrcp.pop %v2090
        %v2113 = vrcp.pop %v2093
        %v2114 = vrcp.pop %v2096
        %v2115 = vrcp.pop %v2099
        %v2116 = vrcp.pop %v2102
        %v2117 = vrcp.pop %v2105
        %v2118 = vrcp.pop %v2108
        %v2119 = vrcp.pop %v2111
        %v2120 = vmul.f32 %v2073, %v2112
        %v2121 = vmul.f32 %v2075, %v2113
        %v2122 = vmul.f32 %v2077, %v2114
        %v2123 = vmul.f32 %v2079, %v2115
        %v2124 = vmul.f32 %v2081, %v2116
        %v2125 = vmul.f32 %v2083, %v2117
        %v2126 = vmul.f32 %v2085, %v2118
        %v2127 = vmul.f32 %v2087, %v2119
        %v2128 = vsel %vm1671, %v2120, 0.0
        %v2129 = vsel %vm1671, %v2122, 0.0
        %v2130 = vadd.f32 %v2128, %v2129
        %v2131 = vsel %vm1671, %v2124, 0.0
        %v2132 = vadd.f32 %v2130, %v2131
        %v2133 = vsel %vm1671, %v2126, 0.0
        %v2134 = vadd.f32 %v2132, %v2133
        %v2135 = vsel %vm1671, %v2121, 0.0
        %v2136 = vsel %vm1671, %v2123, 0.0
        %v2137 = vadd.f32 %v2135, %v2136
        %v2138 = vsel %vm1671, %v2125, 0.0
        %v2139 = vadd.f32 %v2137, %v2138
        %v2140 = vsel %vm1671, %v2127, 0.0
        %v2141 = vadd.f32 %v2139, %v2140
        %v2142 = vmul.f32 %v2134, 0.25
        %v2143 = vmul.f32 %v2141, 0.25
        %2144 = vst.msk [vmem:[%s592] sm:$0xff] %vm1671, %v2142
        %2145 = vst.msk [vmem:[%s592 + $0x8] sm:$0xff] %vm1671, %v2143
        %v2146 = vpack.c.bf16 %v2120, %v2120
        %v2147 = vpack.c.bf16 %v2121, %v2121
        %v2148 = vpack.c.bf16 %v2122, %v2122
        %v2149 = vpack.c.bf16 %v2123, %v2123
        %v2150 = vpack.c.bf16 %v2124, %v2124
        %v2151 = vpack.c.bf16 %v2125, %v2125
        %v2152 = vpack.c.bf16 %v2126, %v2126
        %v2153 = vpack.c.bf16 %v2127, %v2127
        %v2155 = vsel %vm1671, %v2146, 0
        %vm2157 = vcmask 1043456
        %v2159 = vsel %vm2157, %v1663, 0
        %2161 = vmatprep.subr.bf16.mxu0 0
        %2162 = vmatpush1.bf16.msra.mxu0 0
        %2163 = vmatprep.subr.bf16.mxu0 0
        %2164 = vmatpush1.bf16.msra.mxu0 0
        %2165 = vmatprep.subr.bf16.mxu0 0
        %2166 = vmatpush1.bf16.msra.mxu0 0
        %2167 = vmatprep.subr.bf16.mxu0 0
        %2168 = vmatpush1.bf16.msra.mxu0 0
        %2169 = vmatprep.subr.bf16.mxu0 0
        %2170 = vmatpush1.bf16.msra.mxu0 0
        %2171 = vmatprep.subr.bf16.mxu0 0
        %2172 = vmatpush1.bf16.msra.mxu0 0
        %2173 = vmatprep.subr.bf16.mxu0 0
        %2174 = vmatpush1.bf16.msra.mxu0 0
        %2175 = vmatprep.subr.bf16.mxu0 0
        %2176 = vmatpush1.bf16.msra.mxu0 %v2159
        %2177 = vmatprep.subr.bf16.mxu0 0
        %2178 = vmatpush2.bf16.msra.mxu0 0
        %2179 = vmatprep.subr.bf16.mxu0 0
        %2180 = vmatpush2.bf16.msra.mxu0 0
        %2181 = vmatprep.subr.bf16.mxu0 0
        %2182 = vmatpush2.bf16.msra.mxu0 0
        %2183 = vmatprep.subr.bf16.mxu0 0
        %2184 = vmatpush2.bf16.msra.mxu0 0
        %2185 = vmatprep.subr.bf16.mxu0 0
        %2186 = vmatpush2.bf16.msra.mxu0 0
        %2187 = vmatprep.subr.bf16.mxu0 0
        %2188 = vmatpush2.bf16.msra.mxu0 0
        %2189 = vmatprep.subr.bf16.mxu0 0
        %2190 = vmatpush2.bf16.msra.mxu0 0
        %2191 = vmatprep.subr.bf16.mxu0 0
        %2192 = vmatpush2.bf16.msra.mxu0 0
        %2193 = vmatprep.mubr.bf16.mxu0 0
        %2194 = vmatmul.mubr.bf16.gmra.mxu0 %v2155
        %v2195 = vpop.f32.mrf.mxu0
        %v2196 = vadd.f32 0.0, %v2195
        %v2197 = vpop.f32.mrf.mxu0
        %v2198 = vpop.f32.mrf.mxu0
        %v2199 = vpop.f32.mrf.mxu0
        %2200 = vdwg.mxu0
        %v2202 = vsel %vm1671, %v2147, 0
        %v2205 = vsel %vm2157, %v1664, 0
        %2207 = vmatprep.subr.bf16.mxu0 0
        %2208 = vmatpush1.bf16.msra.mxu0 0
        %2209 = vmatprep.subr.bf16.mxu0 0
        %2210 = vmatpush1.bf16.msra.mxu0 0
        %2211 = vmatprep.subr.bf16.mxu0 0
        %2212 = vmatpush1.bf16.msra.mxu0 0
        %2213 = vmatprep.subr.bf16.mxu0 0
        %2214 = vmatpush1.bf16.msra.mxu0 0
        %2215 = vmatprep.subr.bf16.mxu0 0
        %2216 = vmatpush1.bf16.msra.mxu0 0
        %2217 = vmatprep.subr.bf16.mxu0 0
        %2218 = vmatpush1.bf16.msra.mxu0 0
        %2219 = vmatprep.subr.bf16.mxu0 0
        %2220 = vmatpush1.bf16.msra.mxu0 0
        %2221 = vmatprep.subr.bf16.mxu0 0
        %2222 = vmatpush1.bf16.msra.mxu0 %v2205
        %2223 = vmatprep.subr.bf16.mxu0 0
        %2224 = vmatpush2.bf16.msra.mxu0 0
        %2225 = vmatprep.subr.bf16.mxu0 0
        %2226 = vmatpush2.bf16.msra.mxu0 0
        %2227 = vmatprep.subr.bf16.mxu0 0
        %2228 = vmatpush2.bf16.msra.mxu0 0
        %2229 = vmatprep.subr.bf16.mxu0 0
        %2230 = vmatpush2.bf16.msra.mxu0 0
        %2231 = vmatprep.subr.bf16.mxu0 0
        %2232 = vmatpush2.bf16.msra.mxu0 0
        %2233 = vmatprep.subr.bf16.mxu0 0
        %2234 = vmatpush2.bf16.msra.mxu0 0
        %2235 = vmatprep.subr.bf16.mxu0 0
        %2236 = vmatpush2.bf16.msra.mxu0 0
        %2237 = vmatprep.subr.bf16.mxu0 0
        %2238 = vmatpush2.bf16.msra.mxu0 0
        %2239 = vmatprep.mubr.bf16.mxu0 0
        %2240 = vmatmul.mubr.bf16.gmra.mxu0 %v2202
        %v2241 = vpop.f32.mrf.mxu0
        %v2242 = vadd.f32 0.0, %v2241
        %v2243 = vpop.f32.mrf.mxu0
        %v2244 = vpop.f32.mrf.mxu0
        %v2245 = vpop.f32.mrf.mxu0
        %2246 = vdwg.mxu0
        %v2248 = vsel %vm1671, %v2148, 0
        %v2251 = vsel %vm2157, %v1665, 0
        %2253 = vmatprep.subr.bf16.mxu0 0
        %2254 = vmatpush1.bf16.msra.mxu0 0
        %2255 = vmatprep.subr.bf16.mxu0 0
        %2256 = vmatpush1.bf16.msra.mxu0 0
        %2257 = vmatprep.subr.bf16.mxu0 0
        %2258 = vmatpush1.bf16.msra.mxu0 0
        %2259 = vmatprep.subr.bf16.mxu0 0
        %2260 = vmatpush1.bf16.msra.mxu0 0
        %2261 = vmatprep.subr.bf16.mxu0 0
        %2262 = vmatpush1.bf16.msra.mxu0 0
        %2263 = vmatprep.subr.bf16.mxu0 0
        %2264 = vmatpush1.bf16.msra.mxu0 0
        %2265 = vmatprep.subr.bf16.mxu0 0
        %2266 = vmatpush1.bf16.msra.mxu0 0
        %2267 = vmatprep.subr.bf16.mxu0 0
        %2268 = vmatpush1.bf16.msra.mxu0 %v2251
        %2269 = vmatprep.subr.bf16.mxu0 0
        %2270 = vmatpush2.bf16.msra.mxu0 0
        %2271 = vmatprep.subr.bf16.mxu0 0
        %2272 = vmatpush2.bf16.msra.mxu0 0
        %2273 = vmatprep.subr.bf16.mxu0 0
        %2274 = vmatpush2.bf16.msra.mxu0 0
        %2275 = vmatprep.subr.bf16.mxu0 0
        %2276 = vmatpush2.bf16.msra.mxu0 0
        %2277 = vmatprep.subr.bf16.mxu0 0
        %2278 = vmatpush2.bf16.msra.mxu0 0
        %2279 = vmatprep.subr.bf16.mxu0 0
        %2280 = vmatpush2.bf16.msra.mxu0 0
        %2281 = vmatprep.subr.bf16.mxu0 0
        %2282 = vmatpush2.bf16.msra.mxu0 0
        %2283 = vmatprep.subr.bf16.mxu0 0
        %2284 = vmatpush2.bf16.msra.mxu0 0
        %2285 = vmatprep.mubr.bf16.mxu0 0
        %2286 = vmatmul.mubr.bf16.gmra.mxu0 %v2248
        %v2287 = vpop.f32.mrf.mxu0
        %v2288 = vadd.f32 0.0, %v2287
        %v2289 = vpop.f32.mrf.mxu0
        %v2290 = vpop.f32.mrf.mxu0
        %v2291 = vpop.f32.mrf.mxu0
        %2292 = vdwg.mxu0
        %v2294 = vsel %vm1671, %v2149, 0
        %v2297 = vsel %vm2157, %v1666, 0
        %2299 = vmatprep.subr.bf16.mxu0 0
        %2300 = vmatpush1.bf16.msra.mxu0 0
        %2301 = vmatprep.subr.bf16.mxu0 0
        %2302 = vmatpush1.bf16.msra.mxu0 0
        %2303 = vmatprep.subr.bf16.mxu0 0
        %2304 = vmatpush1.bf16.msra.mxu0 0
        %2305 = vmatprep.subr.bf16.mxu0 0
        %2306 = vmatpush1.bf16.msra.mxu0 0
        %2307 = vmatprep.subr.bf16.mxu0 0
        %2308 = vmatpush1.bf16.msra.mxu0 0
        %2309 = vmatprep.subr.bf16.mxu0 0
        %2310 = vmatpush1.bf16.msra.mxu0 0
        %2311 = vmatprep.subr.bf16.mxu0 0
        %2312 = vmatpush1.bf16.msra.mxu0 0
        %2313 = vmatprep.subr.bf16.mxu0 0
        %2314 = vmatpush1.bf16.msra.mxu0 %v2297
        %2315 = vmatprep.subr.bf16.mxu0 0
        %2316 = vmatpush2.bf16.msra.mxu0 0
        %2317 = vmatprep.subr.bf16.mxu0 0
        %2318 = vmatpush2.bf16.msra.mxu0 0
        %2319 = vmatprep.subr.bf16.mxu0 0
        %2320 = vmatpush2.bf16.msra.mxu0 0
        %2321 = vmatprep.subr.bf16.mxu0 0
        %2322 = vmatpush2.bf16.msra.mxu0 0
        %2323 = vmatprep.subr.bf16.mxu0 0
        %2324 = vmatpush2.bf16.msra.mxu0 0
        %2325 = vmatprep.subr.bf16.mxu0 0
        %2326 = vmatpush2.bf16.msra.mxu0 0
        %2327 = vmatprep.subr.bf16.mxu0 0
        %2328 = vmatpush2.bf16.msra.mxu0 0
        %2329 = vmatprep.subr.bf16.mxu0 0
        %2330 = vmatpush2.bf16.msra.mxu0 0
        %2331 = vmatprep.mubr.bf16.mxu0 0
        %2332 = vmatmul.mubr.bf16.gmra.mxu0 %v2294
        %v2333 = vpop.f32.mrf.mxu0
        %v2334 = vadd.f32 0.0, %v2333
        %v2335 = vpop.f32.mrf.mxu0
        %v2336 = vpop.f32.mrf.mxu0
        %v2337 = vpop.f32.mrf.mxu0
        %2338 = vdwg.mxu0
        %v2340 = vsel %vm1671, %v2150, 0
        %v2343 = vsel %vm2157, %v1667, 0
        %2345 = vmatprep.subr.bf16.mxu0 0
        %2346 = vmatpush1.bf16.msra.mxu0 0
        %2347 = vmatprep.subr.bf16.mxu0 0
        %2348 = vmatpush1.bf16.msra.mxu0 0
        %2349 = vmatprep.subr.bf16.mxu0 0
        %2350 = vmatpush1.bf16.msra.mxu0 0
        %2351 = vmatprep.subr.bf16.mxu0 0
        %2352 = vmatpush1.bf16.msra.mxu0 0
        %2353 = vmatprep.subr.bf16.mxu0 0
        %2354 = vmatpush1.bf16.msra.mxu0 0
        %2355 = vmatprep.subr.bf16.mxu0 0
        %2356 = vmatpush1.bf16.msra.mxu0 0
        %2357 = vmatprep.subr.bf16.mxu0 0
        %2358 = vmatpush1.bf16.msra.mxu0 0
        %2359 = vmatprep.subr.bf16.mxu0 0
        %2360 = vmatpush1.bf16.msra.mxu0 %v2343
        %2361 = vmatprep.subr.bf16.mxu0 0
        %2362 = vmatpush2.bf16.msra.mxu0 0
        %2363 = vmatprep.subr.bf16.mxu0 0
        %2364 = vmatpush2.bf16.msra.mxu0 0
        %2365 = vmatprep.subr.bf16.mxu0 0
        %2366 = vmatpush2.bf16.msra.mxu0 0
        %2367 = vmatprep.subr.bf16.mxu0 0
        %2368 = vmatpush2.bf16.msra.mxu0 0
        %2369 = vmatprep.subr.bf16.mxu0 0
        %2370 = vmatpush2.bf16.msra.mxu0 0
        %2371 = vmatprep.subr.bf16.mxu0 0
        %2372 = vmatpush2.bf16.msra.mxu0 0
        %2373 = vmatprep.subr.bf16.mxu0 0
        %2374 = vmatpush2.bf16.msra.mxu0 0
        %2375 = vmatprep.subr.bf16.mxu0 0
        %2376 = vmatpush2.bf16.msra.mxu0 0
        %2377 = vmatprep.mubr.bf16.mxu0 0
        %2378 = vmatmul.mubr.bf16.gmra.mxu0 %v2340
        %v2379 = vpop.f32.mrf.mxu0
        %v2380 = vadd.f32 0.0, %v2379
        %v2381 = vpop.f32.mrf.mxu0
        %v2382 = vpop.f32.mrf.mxu0
        %v2383 = vpop.f32.mrf.mxu0
        %2384 = vdwg.mxu0
        %v2386 = vsel %vm1671, %v2151, 0
        %v2389 = vsel %vm2157, %v1668, 0
        %2391 = vmatprep.subr.bf16.mxu0 0
        %2392 = vmatpush1.bf16.msra.mxu0 0
        %2393 = vmatprep.subr.bf16.mxu0 0
        %2394 = vmatpush1.bf16.msra.mxu0 0
        %2395 = vmatprep.subr.bf16.mxu0 0
        %2396 = vmatpush1.bf16.msra.mxu0 0
        %2397 = vmatprep.subr.bf16.mxu0 0
        %2398 = vmatpush1.bf16.msra.mxu0 0
        %2399 = vmatprep.subr.bf16.mxu0 0
        %2400 = vmatpush1.bf16.msra.mxu0 0
        %2401 = vmatprep.subr.bf16.mxu0 0
        %2402 = vmatpush1.bf16.msra.mxu0 0
        %2403 = vmatprep.subr.bf16.mxu0 0
        %2404 = vmatpush1.bf16.msra.mxu0 0
        %2405 = vmatprep.subr.bf16.mxu0 0
        %2406 = vmatpush1.bf16.msra.mxu0 %v2389
        %2407 = vmatprep.subr.bf16.mxu0 0
        %2408 = vmatpush2.bf16.msra.mxu0 0
        %2409 = vmatprep.subr.bf16.mxu0 0
        %2410 = vmatpush2.bf16.msra.mxu0 0
        %2411 = vmatprep.subr.bf16.mxu0 0
        %2412 = vmatpush2.bf16.msra.mxu0 0
        %2413 = vmatprep.subr.bf16.mxu0 0
        %2414 = vmatpush2.bf16.msra.mxu0 0
        %2415 = vmatprep.subr.bf16.mxu0 0
        %2416 = vmatpush2.bf16.msra.mxu0 0
        %2417 = vmatprep.subr.bf16.mxu0 0
        %2418 = vmatpush2.bf16.msra.mxu0 0
        %2419 = vmatprep.subr.bf16.mxu0 0
        %2420 = vmatpush2.bf16.msra.mxu0 0
        %2421 = vmatprep.subr.bf16.mxu0 0
        %2422 = vmatpush2.bf16.msra.mxu0 0
        %2423 = vmatprep.mubr.bf16.mxu0 0
        %2424 = vmatmul.mubr.bf16.gmra.mxu0 %v2386
        %v2425 = vpop.f32.mrf.mxu0
        %v2426 = vadd.f32 0.0, %v2425
        %v2427 = vpop.f32.mrf.mxu0
        %v2428 = vpop.f32.mrf.mxu0
        %v2429 = vpop.f32.mrf.mxu0
        %2430 = vdwg.mxu0
        %v2432 = vsel %vm1671, %v2152, 0
        %v2435 = vsel %vm2157, %v1669, 0
        %2437 = vmatprep.subr.bf16.mxu0 0
        %2438 = vmatpush1.bf16.msra.mxu0 0
        %2439 = vmatprep.subr.bf16.mxu0 0
        %2440 = vmatpush1.bf16.msra.mxu0 0
        %2441 = vmatprep.subr.bf16.mxu0 0
        %2442 = vmatpush1.bf16.msra.mxu0 0
        %2443 = vmatprep.subr.bf16.mxu0 0
        %2444 = vmatpush1.bf16.msra.mxu0 0
        %2445 = vmatprep.subr.bf16.mxu0 0
        %2446 = vmatpush1.bf16.msra.mxu0 0
        %2447 = vmatprep.subr.bf16.mxu0 0
        %2448 = vmatpush1.bf16.msra.mxu0 0
        %2449 = vmatprep.subr.bf16.mxu0 0
        %2450 = vmatpush1.bf16.msra.mxu0 0
        %2451 = vmatprep.subr.bf16.mxu0 0
        %2452 = vmatpush1.bf16.msra.mxu0 %v2435
        %2453 = vmatprep.subr.bf16.mxu0 0
        %2454 = vmatpush2.bf16.msra.mxu0 0
        %2455 = vmatprep.subr.bf16.mxu0 0
        %2456 = vmatpush2.bf16.msra.mxu0 0
        %2457 = vmatprep.subr.bf16.mxu0 0
        %2458 = vmatpush2.bf16.msra.mxu0 0
        %2459 = vmatprep.subr.bf16.mxu0 0
        %2460 = vmatpush2.bf16.msra.mxu0 0
        %2461 = vmatprep.subr.bf16.mxu0 0
        %2462 = vmatpush2.bf16.msra.mxu0 0
        %2463 = vmatprep.subr.bf16.mxu0 0
        %2464 = vmatpush2.bf16.msra.mxu0 0
        %2465 = vmatprep.subr.bf16.mxu0 0
        %2466 = vmatpush2.bf16.msra.mxu0 0
        %2467 = vmatprep.subr.bf16.mxu0 0
        %2468 = vmatpush2.bf16.msra.mxu0 0
        %2469 = vmatprep.mubr.bf16.mxu0 0
        %2470 = vmatmul.mubr.bf16.gmra.mxu0 %v2432
        %v2471 = vpop.f32.mrf.mxu0
        %v2472 = vadd.f32 0.0, %v2471
        %v2473 = vpop.f32.mrf.mxu0
        %v2474 = vpop.f32.mrf.mxu0
        %v2475 = vpop.f32.mrf.mxu0
        %2476 = vdwg.mxu0
        %v2478 = vsel %vm1671, %v2153, 0
        %v2481 = vsel %vm2157, %v1670, 0
        %2483 = vmatprep.subr.bf16.mxu0 0
        %2484 = vmatpush1.bf16.msra.mxu0 0
        %2485 = vmatprep.subr.bf16.mxu0 0
        %2486 = vmatpush1.bf16.msra.mxu0 0
        %2487 = vmatprep.subr.bf16.mxu0 0
        %2488 = vmatpush1.bf16.msra.mxu0 0
        %2489 = vmatprep.subr.bf16.mxu0 0
        %2490 = vmatpush1.bf16.msra.mxu0 0
        %2491 = vmatprep.subr.bf16.mxu0 0
        %2492 = vmatpush1.bf16.msra.mxu0 0
        %2493 = vmatprep.subr.bf16.mxu0 0
        %2494 = vmatpush1.bf16.msra.mxu0 0
        %2495 = vmatprep.subr.bf16.mxu0 0
        %2496 = vmatpush1.bf16.msra.mxu0 0
        %2497 = vmatprep.subr.bf16.mxu0 0
        %2498 = vmatpush1.bf16.msra.mxu0 %v2481
        %2499 = vmatprep.subr.bf16.mxu0 0
        %2500 = vmatpush2.bf16.msra.mxu0 0
        %2501 = vmatprep.subr.bf16.mxu0 0
        %2502 = vmatpush2.bf16.msra.mxu0 0
        %2503 = vmatprep.subr.bf16.mxu0 0
        %2504 = vmatpush2.bf16.msra.mxu0 0
        %2505 = vmatprep.subr.bf16.mxu0 0
        %2506 = vmatpush2.bf16.msra.mxu0 0
        %2507 = vmatprep.subr.bf16.mxu0 0
        %2508 = vmatpush2.bf16.msra.mxu0 0
        %2509 = vmatprep.subr.bf16.mxu0 0
        %2510 = vmatpush2.bf16.msra.mxu0 0
        %2511 = vmatprep.subr.bf16.mxu0 0
        %2512 = vmatpush2.bf16.msra.mxu0 0
        %2513 = vmatprep.subr.bf16.mxu0 0
        %2514 = vmatpush2.bf16.msra.mxu0 0
        %2515 = vmatprep.mubr.bf16.mxu0 0
        %2516 = vmatmul.mubr.bf16.gmra.mxu0 %v2478
        %v2517 = vpop.f32.mrf.mxu0
        %v2518 = vadd.f32 0.0, %v2517
        %v2519 = vpop.f32.mrf.mxu0
        %v2520 = vpop.f32.mrf.mxu0
        %v2521 = vpop.f32.mrf.mxu0
        %2522 = vdwg.mxu0
        %v2523 = vcombine.low %v2196, %v2380
        %v2524 = vcombine.high %v2196, %v2380
        %v2526 = vunpack.c.l.s4 1983009808
        %v2527 = vunpack.c.0.s8 %v2526
        %v2528 = vlaneseq
        %v2529 = vshrl.u32 %v2528, 7
        %v2530 = vsub.s32 %v2527, %v2529
        %v2531 = vrot.slane %v2523, %v2530
        %v2533 = vunpack.c.l.s4 1983009808
        %v2534 = vunpack.c.0.s8 %v2533
        %v2535 = vlaneseq
        %v2536 = vshrl.u32 %v2535, 7
        %v2537 = vsub.s32 %v2534, %v2536
        %v2538 = vrot.slane %v2524, %v2537
        %v2539 = vcombine.low %v2288, %v2472
        %v2540 = vcombine.high %v2288, %v2472
        %v2542 = vunpack.c.l.s4 1983009808
        %v2543 = vunpack.c.0.s8 %v2542
        %v2544 = vlaneseq
        %v2545 = vshrl.u32 %v2544, 7
        %v2546 = vsub.s32 %v2543, %v2545
        %v2547 = vrot.slane %v2539, %v2546
        %v2549 = vunpack.c.l.s4 1983009808
        %v2550 = vunpack.c.0.s8 %v2549
        %v2551 = vlaneseq
        %v2552 = vshrl.u32 %v2551, 7
        %v2553 = vsub.s32 %v2550, %v2552
        %v2554 = vrot.slane %v2540, %v2553
        %v2555 = vcombine.low %v2531, %v2547
        %v2556 = vcombine.high %v2531, %v2547
        %v2558 = vunpack.c.l.s4 1934713408
        %v2559 = vunpack.c.0.s8 %v2558
        %v2560 = vlaneseq
        %v2561 = vshrl.u32 %v2560, 7
        %v2562 = vsub.s32 %v2559, %v2561
        %v2563 = vrot.slane %v2555, %v2562
        %v2565 = vunpack.c.l.s4 1934713408
        %v2566 = vunpack.c.0.s8 %v2565
        %v2567 = vlaneseq
        %v2568 = vshrl.u32 %v2567, 7
        %v2569 = vsub.s32 %v2566, %v2568
        %v2570 = vrot.slane %v2556, %v2569
        %v2571 = vcombine.low %v2538, %v2554
        %v2572 = vcombine.high %v2538, %v2554
        %v2574 = vunpack.c.l.s4 1934713408
        %v2575 = vunpack.c.0.s8 %v2574
        %v2576 = vlaneseq
        %v2577 = vshrl.u32 %v2576, 7
        %v2578 = vsub.s32 %v2575, %v2577
        %v2579 = vrot.slane %v2571, %v2578
        %v2581 = vunpack.c.l.s4 1934713408
        %v2582 = vunpack.c.0.s8 %v2581
        %v2583 = vlaneseq
        %v2584 = vshrl.u32 %v2583, 7
        %v2585 = vsub.s32 %v2582, %v2584
        %v2586 = vrot.slane %v2572, %v2585
        %v2587 = vcombine.high %v2563, 0.0
        %v2588 = vcombine.high %v2570, 0.0
        %v2589 = vcombine.high %v2579, 0.0
        %v2590 = vcombine.high %v2586, 0.0
        %v2591 = vcombine.low %v2242, %v2426
        %v2592 = vcombine.high %v2242, %v2426
        %v2594 = vunpack.c.l.s4 1983009808
        %v2595 = vunpack.c.0.s8 %v2594
        %v2596 = vlaneseq
        %v2597 = vshrl.u32 %v2596, 7
        %v2598 = vsub.s32 %v2595, %v2597
        %v2599 = vrot.slane %v2591, %v2598
        %v2601 = vunpack.c.l.s4 1983009808
        %v2602 = vunpack.c.0.s8 %v2601
        %v2603 = vlaneseq
        %v2604 = vshrl.u32 %v2603, 7
        %v2605 = vsub.s32 %v2602, %v2604
        %v2606 = vrot.slane %v2592, %v2605
        %v2607 = vcombine.low %v2334, %v2518
        %v2608 = vcombine.high %v2334, %v2518
        %v2610 = vunpack.c.l.s4 1983009808
        %v2611 = vunpack.c.0.s8 %v2610
        %v2612 = vlaneseq
        %v2613 = vshrl.u32 %v2612, 7
        %v2614 = vsub.s32 %v2611, %v2613
        %v2615 = vrot.slane %v2607, %v2614
        %v2617 = vunpack.c.l.s4 1983009808
        %v2618 = vunpack.c.0.s8 %v2617
        %v2619 = vlaneseq
        %v2620 = vshrl.u32 %v2619, 7
        %v2621 = vsub.s32 %v2618, %v2620
        %v2622 = vrot.slane %v2608, %v2621
        %v2623 = vcombine.low %v2599, %v2615
        %v2624 = vcombine.high %v2599, %v2615
        %v2626 = vunpack.c.l.s4 1934713408
        %v2627 = vunpack.c.0.s8 %v2626
        %v2628 = vlaneseq
        %v2629 = vshrl.u32 %v2628, 7
        %v2630 = vsub.s32 %v2627, %v2629
        %v2631 = vrot.slane %v2623, %v2630
        %v2633 = vunpack.c.l.s4 1934713408
        %v2634 = vunpack.c.0.s8 %v2633
        %v2635 = vlaneseq
        %v2636 = vshrl.u32 %v2635, 7
        %v2637 = vsub.s32 %v2634, %v2636
        %v2638 = vrot.slane %v2624, %v2637
        %v2639 = vcombine.low %v2606, %v2622
        %v2640 = vcombine.high %v2606, %v2622
        %v2642 = vunpack.c.l.s4 1934713408
        %v2643 = vunpack.c.0.s8 %v2642
        %v2644 = vlaneseq
        %v2645 = vshrl.u32 %v2644, 7
        %v2646 = vsub.s32 %v2643, %v2645
        %v2647 = vrot.slane %v2639, %v2646
        %v2649 = vunpack.c.l.s4 1934713408
        %v2650 = vunpack.c.0.s8 %v2649
        %v2651 = vlaneseq
        %v2652 = vshrl.u32 %v2651, 7
        %v2653 = vsub.s32 %v2650, %v2652
        %v2654 = vrot.slane %v2640, %v2653
        %v2655 = vcombine.high %v2631, 0.0
        %v2656 = vcombine.high %v2638, 0.0
        %v2657 = vcombine.high %v2647, 0.0
        %v2658 = vcombine.high %v2654, 0.0
        %v2659 = vcombine.low %v2563, %v2570
        %v2661 = vunpack.c.l.s4 1983009808
        %v2662 = vunpack.c.0.s8 %v2661
        %v2663 = vlaneseq
        %v2664 = vshrl.u32 %v2663, 7
        %v2665 = vsub.s32 %v2662, %v2664
        %v2666 = vrot.slane %v2659, %v2665
        %v2667 = vcombine.low %v2587, %v2588
        %v2669 = vunpack.c.l.s4 1983009808
        %v2670 = vunpack.c.0.s8 %v2669
        %v2671 = vlaneseq
        %v2672 = vshrl.u32 %v2671, 7
        %v2673 = vsub.s32 %v2670, %v2672
        %v2674 = vrot.slane %v2667, %v2673
        %v2675 = vcombine.low %v2579, %v2586
        %v2677 = vunpack.c.l.s4 1983009808
        %v2678 = vunpack.c.0.s8 %v2677
        %v2679 = vlaneseq
        %v2680 = vshrl.u32 %v2679, 7
        %v2681 = vsub.s32 %v2678, %v2680
        %v2682 = vrot.slane %v2675, %v2681
        %v2683 = vcombine.low %v2589, %v2590
        %v2685 = vunpack.c.l.s4 1983009808
        %v2686 = vunpack.c.0.s8 %v2685
        %v2687 = vlaneseq
        %v2688 = vshrl.u32 %v2687, 7
        %v2689 = vsub.s32 %v2686, %v2688
        %v2690 = vrot.slane %v2683, %v2689
        %v2691 = vcombine.low %v2666, %v2674
        %v2692 = vcombine.high %v2666, %v2674
        %v2694 = vunpack.c.l.s4 1934713408
        %v2695 = vunpack.c.0.s8 %v2694
        %v2696 = vlaneseq
        %v2697 = vshrl.u32 %v2696, 7
        %v2698 = vsub.s32 %v2695, %v2697
        %v2699 = vrot.slane %v2691, %v2698
        %v2701 = vunpack.c.l.s4 1934713408
        %v2702 = vunpack.c.0.s8 %v2701
        %v2703 = vlaneseq
        %v2704 = vshrl.u32 %v2703, 7
        %v2705 = vsub.s32 %v2702, %v2704
        %v2706 = vrot.slane %v2692, %v2705
        %v2707 = vcombine.low %v2682, %v2690
        %v2708 = vcombine.high %v2682, %v2690
        %v2710 = vunpack.c.l.s4 1934713408
        %v2711 = vunpack.c.0.s8 %v2710
        %v2712 = vlaneseq
        %v2713 = vshrl.u32 %v2712, 7
        %v2714 = vsub.s32 %v2711, %v2713
        %v2715 = vrot.slane %v2707, %v2714
        %v2717 = vunpack.c.l.s4 1934713408
        %v2718 = vunpack.c.0.s8 %v2717
        %v2719 = vlaneseq
        %v2720 = vshrl.u32 %v2719, 7
        %v2721 = vsub.s32 %v2718, %v2720
        %v2722 = vrot.slane %v2708, %v2721
        %v2723 = vcombine.low %v2699, %v2715
        %v2724 = vcombine.high %v2699, %v2715
        %v2725 = vcombine.low %v2706, %v2722
        %v2726 = vcombine.high %v2706, %v2722
        %v2727 = vcombine.low %v2631, %v2638
        %v2729 = vunpack.c.l.s4 1983009808
        %v2730 = vunpack.c.0.s8 %v2729
        %v2731 = vlaneseq
        %v2732 = vshrl.u32 %v2731, 7
        %v2733 = vsub.s32 %v2730, %v2732
        %v2734 = vrot.slane %v2727, %v2733
        %v2735 = vcombine.low %v2655, %v2656
        %v2737 = vunpack.c.l.s4 1983009808
        %v2738 = vunpack.c.0.s8 %v2737
        %v2739 = vlaneseq
        %v2740 = vshrl.u32 %v2739, 7
        %v2741 = vsub.s32 %v2738, %v2740
        %v2742 = vrot.slane %v2735, %v2741
        %v2743 = vcombine.low %v2647, %v2654
        %v2745 = vunpack.c.l.s4 1983009808
        %v2746 = vunpack.c.0.s8 %v2745
        %v2747 = vlaneseq
        %v2748 = vshrl.u32 %v2747, 7
        %v2749 = vsub.s32 %v2746, %v2748
        %v2750 = vrot.slane %v2743, %v2749
        %v2751 = vcombine.low %v2657, %v2658
        %v2753 = vunpack.c.l.s4 1983009808
        %v2754 = vunpack.c.0.s8 %v2753
        %v2755 = vlaneseq
        %v2756 = vshrl.u32 %v2755, 7
        %v2757 = vsub.s32 %v2754, %v2756
        %v2758 = vrot.slane %v2751, %v2757
        %v2759 = vcombine.low %v2734, %v2742
        %v2760 = vcombine.high %v2734, %v2742
        %v2762 = vunpack.c.l.s4 1934713408
        %v2763 = vunpack.c.0.s8 %v2762
        %v2764 = vlaneseq
        %v2765 = vshrl.u32 %v2764, 7
        %v2766 = vsub.s32 %v2763, %v2765
        %v2767 = vrot.slane %v2759, %v2766
        %v2769 = vunpack.c.l.s4 1934713408
        %v2770 = vunpack.c.0.s8 %v2769
        %v2771 = vlaneseq
        %v2772 = vshrl.u32 %v2771, 7
        %v2773 = vsub.s32 %v2770, %v2772
        %v2774 = vrot.slane %v2760, %v2773
        %v2775 = vcombine.low %v2750, %v2758
        %v2776 = vcombine.high %v2750, %v2758
        %v2778 = vunpack.c.l.s4 1934713408
        %v2779 = vunpack.c.0.s8 %v2778
        %v2780 = vlaneseq
        %v2781 = vshrl.u32 %v2780, 7
        %v2782 = vsub.s32 %v2779, %v2781
        %v2783 = vrot.slane %v2775, %v2782
        %v2785 = vunpack.c.l.s4 1934713408
        %v2786 = vunpack.c.0.s8 %v2785
        %v2787 = vlaneseq
        %v2788 = vshrl.u32 %v2787, 7
        %v2789 = vsub.s32 %v2786, %v2788
        %v2790 = vrot.slane %v2776, %v2789
        %v2791 = vcombine.low %v2767, %v2783
        %v2792 = vcombine.high %v2767, %v2783
        %v2793 = vcombine.low %v2774, %v2790
        %v2794 = vcombine.high %v2774, %v2790
        %2797 = vrot.lane.b32.xlu0 %v2724, 8
        %v2798 = vpop.permute.xlu0 %2797
        %2799 = vrot.lane.b32.xlu0 %v2792, 8
        %v2800 = vpop.permute.xlu0 %2799
        %2805 = vrot.lane.b32.xlu0 %v2725, 16
        %v2806 = vpop.permute.xlu0 %2805
        %2807 = vrot.lane.b32.xlu0 %v2793, 16
        %v2808 = vpop.permute.xlu0 %2807
        %2813 = vrot.lane.b32.xlu0 %v2726, 24
        %v2814 = vpop.permute.xlu0 %2813
        %2815 = vrot.lane.b32.xlu0 %v2794, 24
        %v2816 = vpop.permute.xlu0 %2815
        %v2819 = vsel %vm1671, %v2723, %v2798
        %v2820 = vsel %vm1671, %v2791, %v2800
        %vm2821 = vcmask 130048
        %v2822 = vsel %vm2821, %v2819, %v2806
        %v2823 = vsel %vm2821, %v2820, %v2808
        %vm2824 = vcmask 195584
        %v2825 = vsel %vm2824, %v2822, %v2814
        %v2826 = vsel %vm2824, %v2823, %v2816
        %v2827 = vpack.c.bf16 %v2826, %v2825
        %v2828 = vld [vmem:[%s611] sm:$0xf]
        %v2829 = vld [vmem:[%s611 + $0x4] sm:$0xf]
        %v2830 = vld [vmem:[%s611 + $0x8] sm:$0xf]
        %v2831 = vld [vmem:[%s611 + $0xc] sm:$0xf]
        %v2832 = vld [vmem:[%s614] sm:$0x1]
        %v2834 = vlaneseq
        %v2835 = vshrl.u32 %v2834, 7
        %v2836 = vsub.s32 0, %v2835
        %v2837 = vrot.slane %v2832, %v2836
        %v2843 = vunpack.c.l.b16 %v2828
        %v2844 = vunpack.c.l.b16 %v2829
        %v2845 = vunpack.c.l.b16 %v2830
        %v2846 = vunpack.c.l.b16 %v2831
        %v2847 = vpack.c.b16 %v2844, %v2843
        %v2848 = vpack.c.b16 %v2846, %v2845
        %v2852 = vsel %vm651, %v2827, 0
        %2854 = vmatprep.subr.bf16.mxu0 0
        %2855 = vmatpush1.bf16.msra.mxu0 0
        %2856 = vmatprep.subr.bf16.mxu0 0
        %2857 = vmatpush1.bf16.msra.mxu0 0
        %2858 = vmatprep.subr.bf16.mxu0 0
        %2859 = vmatpush1.bf16.msra.mxu0 0
        %2860 = vmatprep.subr.bf16.mxu0 0
        %2861 = vmatpush1.bf16.msra.mxu0 0
        %2862 = vmatprep.subr.bf16.mxu0 0
        %2863 = vmatpush1.bf16.msra.mxu0 0
        %2864 = vmatprep.subr.bf16.mxu0 0
        %2865 = vmatpush1.bf16.msra.mxu0 0
        %2866 = vmatprep.subr.bf16.mxu0 0
        %2867 = vmatpush1.bf16.msra.mxu0 %v2848
        %2868 = vmatprep.subr.bf16.mxu0 0
        %2869 = vmatpush1.bf16.msra.mxu0 %v2847
        %2870 = vmatprep.subr.bf16.mxu0 0
        %2871 = vmatpush2.bf16.msra.mxu0 0
        %2872 = vmatprep.subr.bf16.mxu0 0
        %2873 = vmatpush2.bf16.msra.mxu0 0
        %2874 = vmatprep.subr.bf16.mxu0 0
        %2875 = vmatpush2.bf16.msra.mxu0 0
        %2876 = vmatprep.subr.bf16.mxu0 0
        %2877 = vmatpush2.bf16.msra.mxu0 0
        %2878 = vmatprep.subr.bf16.mxu0 0
        %2879 = vmatpush2.bf16.msra.mxu0 0
        %2880 = vmatprep.subr.bf16.mxu0 0
        %2881 = vmatpush2.bf16.msra.mxu0 0
        %2882 = vmatprep.subr.bf16.mxu0 0
        %2883 = vmatpush2.bf16.msra.mxu0 0
        %2884 = vmatprep.subr.bf16.mxu0 0
        %2885 = vmatpush2.bf16.msra.mxu0 0
        %2886 = vmatprep.mubr.bf16.mxu0 0
        %2887 = vmatmul.mubr.bf16.gmra.mxu0 %v2852
        %v2888 = vpop.f32.mrf.mxu0
        %v2889 = vadd.f32 %v2837, %v2888
        %v2890 = vpop.f32.mrf.mxu0
        %v2891 = vpop.f32.mrf.mxu0
        %v2892 = vadd.f32 %v2837, %v2891
        %v2893 = vpop.f32.mrf.mxu0
        %2894 = vdwg.mxu0
        %v2895 = vadd.f32 %v647, %v2889
        %v2896 = vadd.f32 %v648, %v2892
        %v2897 = vld [vmem:[%s617] sm:$0x1]
        %v2898 = vld [vmem:[%s620] sm:$0x1]
        %v2899 = vsel %vm651, %v2895, 0.0
        %2900 = vadd.xlane.f32.xlu0 %v2899
        %v2901 = vpop.xlane.xlu0 %2900
        %v2902 = vsel %vm651, %v2896, 0.0
        %2903 = vadd.xlane.f32.xlu0 %v2902
        %v2904 = vpop.xlane.xlu0 %2903
        %v2905 = vmul.f32 %v2901, %v658
        %v2906 = vmul.f32 %v2904, %v658
        %v2907 = vsub.f32 %v2895, %v2905
        %v2908 = vsub.f32 %v2896, %v2906
        %v2909 = vmul.f32 %v2907, %v2907
        %v2910 = vmul.f32 %v2908, %v2908
        %v2911 = vsel %vm651, %v2909, 0.0
        %2912 = vadd.xlane.f32.xlu0 %v2911
        %v2913 = vpop.xlane.xlu0 %2912
        %v2914 = vsel %vm651, %v2910, 0.0
        %2915 = vadd.xlane.f32.xlu0 %v2914
        %v2916 = vpop.xlane.xlu0 %2915
        %v2917 = vmul.f32 %v2913, %v658
        %v2918 = vmul.f32 %v2916, %v658
        %v2919 = vadd.f32 %v2917, 1e-05
        %v2920 = vadd.f32 %v2918, 1e-05
        %v2921 = vrsqrt.pop %v2919
        %v2922 = vrsqrt.pop %v2920
        %v2923 = vmul.f32 %v2907, %v2921
        %v2924 = vmul.f32 %v2908, %v2922
        %v2926 = vlaneseq
        %v2927 = vshrl.u32 %v2926, 7
        %v2928 = vsub.s32 0, %v2927
        %v2929 = vrot.slane %v2897, %v2928
        %v2931 = vmul.f32 %v2923, %v2929
        %v2932 = vmul.f32 %v2924, %v2929
        %v2934 = vlaneseq
        %v2935 = vshrl.u32 %v2934, 7
        %v2936 = vsub.s32 0, %v2935
        %v2937 = vrot.slane %v2898, %v2936
        %v2939 = vadd.f32 %v2931, %v2937
        %v2940 = vadd.f32 %v2932, %v2937
        %v2941 = vpack.c.bf16 %v2940, %v2939
        %v2942 = vld [vmem:[%s625] sm:$0xf]
        %v2943 = vld [vmem:[%s625 + $0x4] sm:$0xf]
        %v2944 = vld [vmem:[%s625 + $0x8] sm:$0xf]
        %v2945 = vld [vmem:[%s625 + $0xc] sm:$0xf]
        %v2946 = vld [vmem:[%s628] sm:$0x1]
        %v2948 = vlaneseq
        %v2949 = vshrl.u32 %v2948, 7
        %v2950 = vsub.s32 0, %v2949
        %v2951 = vrot.slane %v2946, %v2950
        %v2957 = vunpack.c.l.b16 %v2942
        %v2958 = vunpack.c.l.b16 %v2943
        %v2959 = vunpack.c.l.b16 %v2944
        %v2960 = vunpack.c.l.b16 %v2945
        %v2961 = vpack.c.b16 %v2958, %v2957
        %v2962 = vpack.c.b16 %v2960, %v2959
        %v2966 = vsel %vm651, %v2941, 0
        %2968 = vmatprep.subr.bf16.mxu0 0
        %2969 = vmatpush1.bf16.msra.mxu0 0
        %2970 = vmatprep.subr.bf16.mxu0 0
        %2971 = vmatpush1.bf16.msra.mxu0 0
        %2972 = vmatprep.subr.bf16.mxu0 0
        %2973 = vmatpush1.bf16.msra.mxu0 0
        %2974 = vmatprep.subr.bf16.mxu0 0
        %2975 = vmatpush1.bf16.msra.mxu0 0
        %2976 = vmatprep.subr.bf16.mxu0 0
        %2977 = vmatpush1.bf16.msra.mxu0 0
        %2978 = vmatprep.subr.bf16.mxu0 0
        %2979 = vmatpush1.bf16.msra.mxu0 0
        %2980 = vmatprep.subr.bf16.mxu0 0
        %2981 = vmatpush1.bf16.msra.mxu0 %v2962
        %2982 = vmatprep.subr.bf16.mxu0 0
        %2983 = vmatpush1.bf16.msra.mxu0 %v2961
        %2984 = vmatprep.subr.bf16.mxu0 0
        %2985 = vmatpush2.bf16.msra.mxu0 0
        %2986 = vmatprep.subr.bf16.mxu0 0
        %2987 = vmatpush2.bf16.msra.mxu0 0
        %2988 = vmatprep.subr.bf16.mxu0 0
        %2989 = vmatpush2.bf16.msra.mxu0 0
        %2990 = vmatprep.subr.bf16.mxu0 0
        %2991 = vmatpush2.bf16.msra.mxu0 0
        %2992 = vmatprep.subr.bf16.mxu0 0
        %2993 = vmatpush2.bf16.msra.mxu0 0
        %2994 = vmatprep.subr.bf16.mxu0 0
        %2995 = vmatpush2.bf16.msra.mxu0 0
        %2996 = vmatprep.subr.bf16.mxu0 0
        %2997 = vmatpush2.bf16.msra.mxu0 0
        %2998 = vmatprep.subr.bf16.mxu0 0
        %2999 = vmatpush2.bf16.msra.mxu0 0
        %3000 = vmatprep.mubr.bf16.mxu0 0
        %3001 = vmatmul.mubr.bf16.gmra.mxu0 %v2966
        %v3002 = vpop.f32.mrf.mxu0
        %v3003 = vadd.f32 %v2951, %v3002
        %v3004 = vpop.f32.mrf.mxu0
        %v3005 = vpop.f32.mrf.mxu0
        %v3006 = vadd.f32 %v2951, %v3005
        %v3007 = vpop.f32.mrf.mxu0
        %3008 = vdwg.mxu0
        %v3009 = vmul.f32 %v3003, 1.702
        %v3010 = vmul.f32 %v3006, 1.702
        %v3011 = vxor.u32 %v3009, 2147483648
        %v3012 = vxor.u32 %v3010, 2147483648
        %v3013 = vmul.f32 %v3011, 1.442695
        %v3014 = vpow.pop %v3013
        %v3015 = vmul.f32 %v3012, 1.442695
        %v3016 = vpow.pop %v3015
        %v3017 = vadd.f32 %v3014, 1.0
        %v3018 = vadd.f32 %v3016, 1.0
        %v3019 = vrcp.pop %v3017
        %v3020 = vmul.f32 1.0, %v3019
        %v3021 = vrcp.pop %v3018
        %v3022 = vmul.f32 1.0, %v3021
        %v3023 = vmul.f32 %v3003, %v3020
        %v3024 = vmul.f32 %v3006, %v3022
        %v3025 = vpack.c.bf16 %v3024, %v3023
        %v3026 = vld [vmem:[%s633] sm:$0xf]
        %v3027 = vld [vmem:[%s633 + $0x4] sm:$0xf]
        %v3028 = vld [vmem:[%s633 + $0x8] sm:$0xf]
        %v3029 = vld [vmem:[%s633 + $0xc] sm:$0xf]
        %v3030 = vld [vmem:[%s633 + $0x10] sm:$0xf]
        %v3031 = vld [vmem:[%s633 + $0x14] sm:$0xf]
        %v3032 = vld [vmem:[%s633 + $0x18] sm:$0xf]
        %v3033 = vld [vmem:[%s633 + $0x1c] sm:$0xf]
        %v3034 = vld [vmem:[%s633 + $0x20] sm:$0xf]
        %v3035 = vld [vmem:[%s633 + $0x24] sm:$0xf]
        %v3036 = vld [vmem:[%s633 + $0x28] sm:$0xf]
        %v3037 = vld [vmem:[%s633 + $0x2c] sm:$0xf]
        %v3038 = vld [vmem:[%s633 + $0x30] sm:$0xf]
        %v3039 = vld [vmem:[%s633 + $0x34] sm:$0xf]
        %v3040 = vld [vmem:[%s633 + $0x38] sm:$0xf]
        %v3041 = vld [vmem:[%s633 + $0x3c] sm:$0xf]
        %v3042 = vld [vmem:[%s636] sm:$0x1]
        %v3044 = vlaneseq
        %v3045 = vshrl.u32 %v3044, 7
        %v3046 = vsub.s32 0, %v3045
        %v3047 = vrot.slane %v3042, %v3046
        %v3065 = vunpack.c.l.b16 %v3026
        %v3066 = vunpack.c.l.b16 %v3027
        %v3067 = vunpack.c.l.b16 %v3028
        %v3068 = vunpack.c.l.b16 %v3029
        %v3069 = vunpack.c.l.b16 %v3030
        %v3070 = vunpack.c.l.b16 %v3031
        %v3071 = vunpack.c.l.b16 %v3032
        %v3072 = vunpack.c.l.b16 %v3033
        %v3073 = vunpack.c.l.b16 %v3034
        %v3074 = vunpack.c.l.b16 %v3035
        %v3075 = vunpack.c.l.b16 %v3036
        %v3076 = vunpack.c.l.b16 %v3037
        %v3077 = vunpack.c.l.b16 %v3038
        %v3078 = vunpack.c.l.b16 %v3039
        %v3079 = vunpack.c.l.b16 %v3040
        %v3080 = vunpack.c.l.b16 %v3041
        %v3081 = vpack.c.b16 %v3066, %v3065
        %v3082 = vpack.c.b16 %v3068, %v3067
        %v3083 = vpack.c.b16 %v3070, %v3069
        %v3084 = vpack.c.b16 %v3072, %v3071
        %v3085 = vpack.c.b16 %v3074, %v3073
        %v3086 = vpack.c.b16 %v3076, %v3075
        %v3087 = vpack.c.b16 %v3078, %v3077
        %v3088 = vpack.c.b16 %v3080, %v3079
        %3097 = vmatprep.subr.bf16.mxu0 0
        %3098 = vmatpush1.bf16.msra.mxu0 %v3088
        %3099 = vmatprep.subr.bf16.mxu0 0
        %3100 = vmatpush1.bf16.msra.mxu0 %v3087
        %3101 = vmatprep.subr.bf16.mxu0 0
        %3102 = vmatpush1.bf16.msra.mxu0 %v3086
        %3103 = vmatprep.subr.bf16.mxu0 0
        %3104 = vmatpush1.bf16.msra.mxu0 %v3085
        %3105 = vmatprep.subr.bf16.mxu0 0
        %3106 = vmatpush1.bf16.msra.mxu0 %v3084
        %3107 = vmatprep.subr.bf16.mxu0 0
        %3108 = vmatpush1.bf16.msra.mxu0 %v3083
        %3109 = vmatprep.subr.bf16.mxu0 0
        %3110 = vmatpush1.bf16.msra.mxu0 %v3082
        %3111 = vmatprep.subr.bf16.mxu0 0
        %3112 = vmatpush1.bf16.msra.mxu0 %v3081
        %3113 = vmatprep.subr.bf16.mxu0 0
        %3114 = vmatpush2.bf16.msra.mxu0 0
        %3115 = vmatprep.subr.bf16.mxu0 0
        %3116 = vmatpush2.bf16.msra.mxu0 0
        %3117 = vmatprep.subr.bf16.mxu0 0
        %3118 = vmatpush2.bf16.msra.mxu0 0
        %3119 = vmatprep.subr.bf16.mxu0 0
        %3120 = vmatpush2.bf16.msra.mxu0 0
        %3121 = vmatprep.subr.bf16.mxu0 0
        %3122 = vmatpush2.bf16.msra.mxu0 0
        %3123 = vmatprep.subr.bf16.mxu0 0
        %3124 = vmatpush2.bf16.msra.mxu0 0
        %3125 = vmatprep.subr.bf16.mxu0 0
        %3126 = vmatpush2.bf16.msra.mxu0 0
        %3127 = vmatprep.subr.bf16.mxu0 0
        %3128 = vmatpush2.bf16.msra.mxu0 0
        %3129 = vmatprep.mubr.bf16.mxu0 0
        %3130 = vmatmul.mubr.bf16.gmra.mxu0 %v3025
        %v3131 = vpop.f32.mrf.mxu0
        %v3132 = vadd.f32 %v3047, %v3131
        %v3133 = vpop.f32.mrf.mxu0
        %v3134 = vpop.f32.mrf.mxu0
        %v3135 = vadd.f32 %v3047, %v3134
        %v3136 = vpop.f32.mrf.mxu0
        %3137 = vdwg.mxu0
        %v3138 = vadd.f32 %v2895, %v3132
        %v3139 = vadd.f32 %v2896, %v3135
        %3140 = vst.msk [vmem:[#allocation2] sm:$0xff] %vm651, %v3138
        %3141 = vst.msk [vmem:[#allocation2 + $0x8] sm:$0xff] %vm651, %v3139
        %p3142 = scmp.eq.s32.totalorder %s30, 1
        // Predicated region
        $region77: #{tpu_custom_call.1} parent=71 // pred_check
          %p3143 = pneg %p3142
        $region78: #{tpu_custom_call.1} parent=71 // pred_check_branch
          %3145 = sbr.rel (%p3143) target = $region80
        $region79: #{tpu_custom_call.1} parent=71 // pred_region
          %3146 = vst.msk [vmem:[#allocation3] sm:$0xff] %vm651, %v3138
          %3147 = vst.msk [vmem:[#allocation3 + $0x8] sm:$0xff] %vm651, %v3139
        $region80: #{tpu_custom_call.1} parent=71 // pred_fallthru
          _
        %s3148 = sand.u32 %s392, 1
        %s3149 = scalar_lea.sflag [#allocation6], %s3148
        %s3150 = sand.u32 %s392, 1
        %s3151 = smul.addr %s3150, 16
        %s3152 = scalar_lea.vmem [#allocation5], %s3151
        // Predicated region
        $region81: #{tpu_custom_call.1} parent=71 // pred_check
          %p3153 = pneg %p376
        $region82: #{tpu_custom_call.1} parent=71 // pred_check_branch
          %3155 = sbr.rel (%p3153) target = $region84
        $region83: #{tpu_custom_call.1} parent=71 // pred_region
          %s3157 = ssub.s32 256, 256
          %3158 = vsyncadd [#allocation4], %s3157
          %s3159 = sshll.u32 [#allocation3], 4
          %s3160 = int_to_ptr.vmem [resolvable:$true] %s3159
          %3165 = dma.vmem_to_hbm [thread:$0]  %s3160, 256, %s13, [#allocation4], 128, 128, 8
        $region84: #{tpu_custom_call.1} parent=71 // pred_fallthru
          _
        // Predicated region
        $region85: #{tpu_custom_call.1} parent=71 // pred_check
          %p3166 = pneg %p402
        $region86: #{tpu_custom_call.1} parent=71 // pred_check_branch
          %3168 = sbr.rel (%p3166) target = $region88
        $region87: #{tpu_custom_call.1} parent=71 // pred_region
          %s3170 = ssub.s32 256, 256
          %3171 = vsyncadd %s3149, %s3170
          %s3172 = smul.addr %s30, 2
          %s3173 = smul.addr %s3172, 128
          %s3174 = scalar_lea.hbm %s14, %s3173
          %s3175 = sshll.u32 %s3152, 4
          %s3176 = int_to_ptr.vmem [resolvable:$true] %s3175
          %3181 = dma.vmem_to_hbm [thread:$0]  %s3176, 256, %s3174, %s3149, 128, 128, 8
        $region88: #{tpu_custom_call.1} parent=71 // pred_fallthru
          _
        // Predicated region
        $region89: #{tpu_custom_call.1} parent=71 // pred_check
          %p3182 = pneg %p376
        $region90: #{tpu_custom_call.1} parent=71 // pred_check_branch
          %3184 = sbr.rel (%p3182) target = $region92
        $region91: #{tpu_custom_call.1} parent=71 // pred_region
          %3185 = dma.done [#allocation4], 256
        $region92: #{tpu_custom_call.1} parent=71 // pred_fallthru
          _
      $region72: #{tpu_custom_call.1} parent=5 // pred_fallthru
        _
      %p3186 = scmp.le.s32.totalorder 2, %s25
      // Predicated region
      $region93: #{tpu_custom_call.1} parent=5 // pred_check
        %p3187 = pneg %p3186
      $region94: #{tpu_custom_call.1} parent=5 // pred_check_branch
        %3189 = sbr.rel (%p3187) target = $region96
      $region95: #{tpu_custom_call.1} parent=5 // pred_region
        %s3190 = ssub.s32 %s25, 2
        // Predicated region
        $region97: #{tpu_custom_call.1} parent=95 // pred_check
          %p3191 = pneg %p408
        $region98: #{tpu_custom_call.1} parent=95 // pred_check_branch
          %3193 = sbr.rel (%p3191) target = $region100
        $region99: #{tpu_custom_call.1} parent=95 // pred_region
          %s3194 = sand.u32 %s393, 1
          %s3195 = scalar_lea.sflag [#allocation6], %s3194
          %s3196 = sand.u32 %s393, 1
          %s3197 = smul.addr %s3196, 16
          %s3198 = scalar_lea.vmem [#allocation5], %s3197
          %3199 = dma.done %s3195, 256
        $region100: #{tpu_custom_call.1} parent=95 // pred_fallthru
          _
      $region96: #{tpu_custom_call.1} parent=5 // pred_fallthru
        _
    $region6: #{tpu_custom_call.1} parent=1 // loop_footer
      %s29 = sadd.s32 1, %s25
    $region7: #{tpu_custom_call.1} parent=1 // loop_footer_branch
      %24 = sbr.rel target = $region3
    $region8: #{tpu_custom_call.1} parent=1 // loop_exit
      _
    %3200 = vsyncpa [#allocation4], 1
    %s3201 = scalar_lea.sflag [#allocation4], 1
    %3202 = vsyncpa %s3201, 1
    %3203 = vsyncpa [#allocation6], 1
    %s3204 = scalar_lea.sflag [#allocation6], 1
    %3205 = vsyncpa %s3204, 1

</llo_original>
